<compile_context>
chip_gen: v5e
topology: v5e:2x2
jax: 0.10.0
libtpu: 0.0.40
codegen_flags: <defaults>
</compile_context>

<pallas_src>
import functools

import jax
import jax.numpy as jnp
from jax.experimental import pallas as pl
from jax.experimental.pallas import tpu as pltpu


# ------------------------- tiling helpers -------------------------

def _pick_lane_tile(m, cap):
    """Largest lane tile <= cap that is the full extent or a multiple of 128."""
    if m <= cap:
        return m
    for t in range(cap - cap % 128, 0, -128):
        if m % t == 0:
            return t
    return cap  # non-dividing fallback: Pallas masks the ragged last block


def _pick_batch_tile(b, cap):
    """Largest batch tile <= cap that is the full batch or a multiple of 8."""
    if b <= cap:
        return b
    for t in range(cap - cap % 8, 0, -8):
        if b % t == 0:
            return t
    return cap  # non-dividing fallback: masked ragged last block


# ------------------------- kernel A: conv1 + pool + relu -------------------------

def _conv_pool_kernel(p_ref, w_ref, b_ref, o_ref):
    """Fused conv-as-matmul + bias + 2x2 maxpool + relu (lane-dense output).

    p_ref: [4, CKK, TM] bf16   (4 pool-quadrant im2col patch matrices)
    w_ref: [OC, CKK]    bf16
    b_ref: [OC, 1]      f32
    o_ref: [OC, TM]     bf16   (TM = tile of B*OH2*OW2)
    relu(maxpool(conv + b)) == relu(max_q(conv_q) + b) by monotonicity.
    """
    w = w_ref[...]
    m = jnp.dot(w, p_ref[0], preferred_element_type=jnp.float32)
    for q in range(1, 4):  # static unroll over the 4 pool quadrants
        m = jnp.maximum(m, jnp.dot(w, p_ref[q],
                                   preferred_element_type=jnp.float32))
    o_ref[...] = jnp.maximum(m + b_ref[...], 0.0).astype(o_ref.dtype)


def conv1_pool(x_bhw, w, b, *, tm_max=2048):
    """relu(max_pool2d(conv2d(x) + b, 2)) for the single-input-channel conv1.

    x_bhw: [B, 28, 28] bf16; w: [10, 1, 5, 5] (PyTorch layout); b: [10]
    returns y1: [10, B, 12, 12] bf16 (lane-dense channel-major layout).
    """
    B, H, W = x_bhw.shape
    OC, C, k, _ = w.shape
    oh2, ow2 = (H - k + 1) // 2, (W - k + 1) // 2
    M = B * oh2 * ow2
    ckk = C * k * k

    # Host-side pool-quadrant im2col, in bf16, via strided slices only.
    quads = []
    for pi in range(2):
        for pj in range(2):
            cols = []
            for di in range(k):
                for dj in range(k):
                    sl = x_bhw[:, pi + di: pi + di + 2 * oh2: 2,
                               pj + dj: pj + dj + 2 * ow2: 2]       # [B,12,12]
                    cols.append(sl.reshape(M))
            quads.append(jnp.stack(cols, axis=0))                    # [25, M]
    P1 = jnp.stack(quads, axis=0)                                    # [4, 25, M]

    wm = w.reshape(OC, ckk).astype(jnp.bfloat16)
    bc = b.reshape(OC, 1).astype(jnp.float32)

    tm = _pick_lane_tile(M, tm_max)
    grid_m = pl.cdiv(M, tm)

    y = pl.pallas_call(
        _conv_pool_kernel,
        out_shape=jax.ShapeDtypeStruct((OC, M), jnp.bfloat16),
        grid=(grid_m,),
        in_specs=[
            pl.BlockSpec((4, ckk, tm), lambda i: (0, 0, i)),
            pl.BlockSpec((OC, ckk), lambda i: (0, 0)),   # weights resident
            pl.BlockSpec((OC, 1), lambda i: (0, 0)),     # bias resident
        ],
        out_specs=pl.BlockSpec((OC, tm), lambda i: (0, i)),
        compiler_params=pltpu.CompilerParams(
            dimension_semantics=("parallel",)),
    )(P1, wm, bc)
    return y.reshape(OC, B, oh2, ow2)


# ------------------------- kernel B: conv2 + pool + relu + MLP head -------------------------

def _conv2_head_kernel(p_ref, w2_ref, b2_ref, w1_ref, b1_ref, wf_ref, bf_ref,
                       o_ref, *, n_pos):
    """Fused conv2 + bias + 2x2 maxpool + relu + flatten + fc1 + relu + fc2 +
    log_softmax for one batch tile.

    p_ref : [4, n_pos, TB, 250] bf16  (per pool-quadrant, per output-position patches)
    w2_ref: [250, 20] bf16            (conv2 weight, transposed im2col form)
    b2_ref: [1, 20]   f32
    w1_ref: [n_pos, 20, 50] bf16      (fc1 weight regrouped per spatial position)
    b1_ref: [1, 50]   f32
    wf_ref: [50, 10]  bf16
    bf_ref: [1, 10]   f32
    o_ref : [TB, 10]  f32             (log-probabilities)

    The PyTorch flatten  h = view(y2, [B,320]) @ W1  is computed as
    h = sum_hw y2[:, :, hw] @ W1r[hw]  (mathematically identical), so no
    in-kernel reshape/transpose of the activation is needed.
    """
    tb = o_ref.shape[0]
    w2 = w2_ref[...]
    b2 = b2_ref[...]
    h = jnp.zeros((tb, w1_ref.shape[2]), jnp.float32)          # [TB, 50]
    for hw in range(n_pos):  # static unroll over the 16 pooled positions
        m = jnp.dot(p_ref[0, hw], w2, preferred_element_type=jnp.float32)
        for q in range(1, 4):
            m = jnp.maximum(m, jnp.dot(p_ref[q, hw], w2,
                                       preferred_element_type=jnp.float32))
        y = jnp.maximum(m + b2, 0.0)                           # [TB, 20]
        h = h + jnp.dot(y.astype(jnp.bfloat16), w1_ref[hw],
                        preferred_element_type=jnp.float32)
    h = jnp.maximum(h + b1_ref[...], 0.0)                      # fc1 + relu
    logits = jnp.dot(h.astype(jnp.bfloat16), wf_ref[...],
                     preferred_element_type=jnp.float32) + bf_ref[...]
    mx = jnp.max(logits, axis=-1, keepdims=True)
    s = logits - mx
    lse = jnp.log(jnp.sum(jnp.exp(s), axis=-1, keepdims=True))
    o_ref[...] = (s - lse).astype(o_ref.dtype)


def conv2_head(y1, conv2_w, conv2_b, fc1_w, fc1_b, fc2_w, fc2_b, *, tb_max=128):
    """log_softmax(fc2(relu(fc1(flatten(relu(maxpool(conv2(y1)+b2)))))))

    y1: [10, B, 12, 12] bf16.  Returns [B, 10] f32.
    tb_max=128 keeps the double-buffered patch block ~8 MiB, safe for v7x's
    smaller VMEM while still pipelining / sharding large batches.
    """
    C, B, H, W = y1.shape
    OC, C2, k, _ = conv2_w.shape
    assert C == C2
    oh2, ow2 = (H - k + 1) // 2, (W - k + 1) // 2       # 4, 4
    n_pos = oh2 * ow2                                    # 16
    ckk = C * k * k                                      # 250
    n_hidden = fc1_w.shape[1]                            # 50
    n_out = fc2_w.shape[1]                               # 10

    # Host-side pool-quadrant im2col of y1 (bf16, strided slices), laid out
    # [4, n_pos, B, 250] so the kernel slices per output position and folds
    # the flatten into fc1.
    quads = []
    for qi in range(2):
        for qj in range(2):
            cols = []
            for di in range(k):
                for dj in range(k):
                    cols.append(y1[:, :, qi + di: qi + di + 2 * oh2: 2,
                                   qj + dj: qj + dj + 2 * ow2: 2])   # [C,B,4,4]
            p = jnp.stack(cols, axis=1)               # [C, 25, B, 4, 4]
            p = p.transpose(3, 4, 2, 0, 1)            # [i4, j4, B, C, 25]
            quads.append(p.reshape(n_pos, B, ckk))    # [16, B, 250]
    P2 = jnp.stack(quads, axis=0)                     # [4, 16, B, 250]

    w2t = conv2_w.reshape(OC, ckk).T.astype(jnp.bfloat16)         # [250, 20]
    b2r = conv2_b.reshape(1, OC).astype(jnp.float32)              # [1, 20]
    # fc1 weight regrouped per spatial position: W1r[hw, c, n] = fc1_w[c*16+hw, n]
    w1r = fc1_w.reshape(OC, n_pos, n_hidden).transpose(1, 0, 2) \
               .astype(jnp.bfloat16)                               # [16, 20, 50]
    b1r = fc1_b.reshape(1, n_hidden).astype(jnp.float32)
    wfr = fc2_w.astype(jnp.bfloat16)                               # [50, 10]
    bfr = fc2_b.reshape(1, n_out).astype(jnp.float32)

    tb = _pick_batch_tile(B, tb_max)
    grid_b = pl.cdiv(B, tb)

    kern = functools.partial(_conv2_head_kernel, n_pos=n_pos)
    return pl.pallas_call(
        kern,
        out_shape=jax.ShapeDtypeStruct((B, n_out), jnp.float32),
        grid=(grid_b,),
        in_specs=[
            pl.BlockSpec((4, n_pos, tb, ckk), lambda i: (0, 0, i, 0)),
            pl.BlockSpec((ckk, OC), lambda i: (0, 0)),
            pl.BlockSpec((1, OC), lambda i: (0, 0)),
            pl.BlockSpec((n_pos, OC, n_hidden), lambda i: (0, 0, 0)),
            pl.BlockSpec((1, n_hidden), lambda i: (0, 0)),
            pl.BlockSpec((n_hidden, n_out), lambda i: (0, 0)),
            pl.BlockSpec((1, n_out), lambda i: (0, 0)),
        ],
        out_specs=pl.BlockSpec((tb, n_out), lambda i: (i, 0)),
        compiler_params=pltpu.CompilerParams(
            dimension_semantics=("parallel",)),
    )(P2, w2t, b2r, w1r, b1r, wfr, bfr)


# ------------------------- the Net forward -------------------------

def net_forward(x, params):
    # x: [B, 1, 28, 28] (NCHW, PyTorch convention).  Dropout2d/Dropout = identity (eval).
    B = x.shape[0]
    xb = x.reshape(B, x.shape[2], x.shape[3]).astype(jnp.bfloat16)   # C == 1
    y1 = conv1_pool(xb, params["conv1_w"], params["conv1_b"])        # [10, B, 12, 12]
    return conv2_head(y1, params["conv2_w"], params["conv2_b"],
                      params["fc1_w"], params["fc1_b"],
                      params["fc2_w"], params["fc2_b"])              # [B, 10]


def init_params(key):
    ks = jax.random.split(key, 8)

    def u(k, shape, fan_in):
        bound = 1.0 / jnp.sqrt(jnp.float32(fan_in))
        return jax.random.uniform(k, shape, jnp.float32, -bound, bound)

    return {
        "conv1_w": u(ks[0], (10, 1, 5, 5), 1 * 5 * 5),
        "conv1_b": u(ks[1], (10,), 1 * 5 * 5),
        "conv2_w": u(ks[2], (20, 10, 5, 5), 10 * 5 * 5),
        "conv2_b": u(ks[3], (20,), 10 * 5 * 5),
        # fc weights stored as [in, out] (transposed vs PyTorch's [out, in]);
        # the "in" axis is ordered (channel, h, w) exactly like view(-1, 320).
        "fc1_w": u(ks[4], (320, 50), 320),
        "fc1_b": u(ks[5], (50,), 320),
        "fc2_w": u(ks[6], (50, 10), 50),
        "fc2_b": u(ks[7], (10,), 50),
    }


if __name__ == "__main__":
    key = jax.random.PRNGKey(0)
    pkey, xkey = jax.random.split(key)
    params = init_params(pkey)
    # 28x28 single-channel input is implied by the view(-1, 320) in forward()
    x = jax.random.normal(xkey, (2, 1, 28, 28), jnp.float32)

    out = jax.jit(net_forward)(x, params)
    out = jax.block_until_ready(out)

    assert out.shape == (2, 10), out.shape
    assert bool(jnp.all(jnp.isfinite(out)))
    # log_softmax rows should (approximately) exp-sum to 1
    assert bool(jnp.allclose(jnp.sum(jnp.exp(out), axis=-1), 1.0, atol=1e-4))
    print("KERNEL_OK")
</pallas_src>

<mosaic_0001>
module attributes {stable_mosaic.version = 11 : i64} {
  func.func @_conv_pool_kernel(%arg0: i32, %arg1: memref<4x25x288xbf16, #tpu.memory_space<vmem>>, %arg2: memref<10x25xbf16, #tpu.memory_space<vmem>>, %arg3: memref<10x1xf32, #tpu.memory_space<vmem>>, %arg4: memref<10x288xbf16, #tpu.memory_space<vmem>>) attributes {dimension_semantics = [#tpu.dimension_semantics<parallel>], iteration_bounds = array<i64: 1>, scalar_prefetch = 0 : i64, scratch_operands = 0 : i64, tpu.core_type = #tpu.core_type<tc>, window_params = [{transform_indices = @transform_0, window_bounds = array<i64: 4, 25, 288>}, {pipeline_mode = #tpu.pipeline_mode<synchronous>, transform_indices = @transform_1, window_bounds = array<i64: 10, 25>}, {pipeline_mode = #tpu.pipeline_mode<synchronous>, transform_indices = @transform_2, window_bounds = array<i64: 10, 1>}, {transform_indices = @transform_3, window_bounds = array<i64: 10, 288>}]} {
    %c0 = arith.constant 0 : index
    %c0_0 = arith.constant 0 : index
    %0 = vector.load %arg2[%c0, %c0_0] : memref<10x25xbf16, #tpu.memory_space<vmem>>, vector<10x25xbf16>
    %c0_1 = arith.constant 0 : index
    %c0_2 = arith.constant 0 : index
    %c0_3 = arith.constant 0 : index
    %1 = vector.load %arg1[%c0_1, %c0_2, %c0_3] : memref<4x25x288xbf16, #tpu.memory_space<vmem>>, vector<1x25x288xbf16>
    %2 = vector.shape_cast %1 : vector<1x25x288xbf16> to vector<25x288xbf16>
    %cst = arith.constant dense<0.000000e+00> : vector<10x288xf32>
    %3 = tpu.matmul %0, %2, %cst {dimension_numbers = #tpu.dot_dimension_numbers<[1], [0], [0], [1], [0, 0, 1, 1], [], []>} : vector<10x25xbf16>, vector<25x288xbf16>, vector<10x288xf32> -> vector<10x288xf32>
    %c1 = arith.constant 1 : index
    %c0_4 = arith.constant 0 : index
    %c0_5 = arith.constant 0 : index
    %4 = vector.load %arg1[%c1, %c0_4, %c0_5] : memref<4x25x288xbf16, #tpu.memory_space<vmem>>, vector<1x25x288xbf16>
    %5 = vector.shape_cast %4 : vector<1x25x288xbf16> to vector<25x288xbf16>
    %cst_6 = arith.constant dense<0.000000e+00> : vector<10x288xf32>
    %6 = tpu.matmul %0, %5, %cst_6 {dimension_numbers = #tpu.dot_dimension_numbers<[1], [0], [0], [1], [0, 0, 1, 1], [], []>} : vector<10x25xbf16>, vector<25x288xbf16>, vector<10x288xf32> -> vector<10x288xf32>
    %7 = arith.maximumf %3, %6 : vector<10x288xf32>
    %c2 = arith.constant 2 : index
    %c0_7 = arith.constant 0 : index
    %c0_8 = arith.constant 0 : index
    %8 = vector.load %arg1[%c2, %c0_7, %c0_8] : memref<4x25x288xbf16, #tpu.memory_space<vmem>>, vector<1x25x288xbf16>
    %9 = vector.shape_cast %8 : vector<1x25x288xbf16> to vector<25x288xbf16>
    %cst_9 = arith.constant dense<0.000000e+00> : vector<10x288xf32>
    %10 = tpu.matmul %0, %9, %cst_9 {dimension_numbers = #tpu.dot_dimension_numbers<[1], [0], [0], [1], [0, 0, 1, 1], [], []>} : vector<10x25xbf16>, vector<25x288xbf16>, vector<10x288xf32> -> vector<10x288xf32>
    %11 = arith.maximumf %7, %10 : vector<10x288xf32>
    %c3 = arith.constant 3 : index
    %c0_10 = arith.constant 0 : index
    %c0_11 = arith.constant 0 : index
    %12 = vector.load %arg1[%c3, %c0_10, %c0_11] : memref<4x25x288xbf16, #tpu.memory_space<vmem>>, vector<1x25x288xbf16>
    %13 = vector.shape_cast %12 : vector<1x25x288xbf16> to vector<25x288xbf16>
    %cst_12 = arith.constant dense<0.000000e+00> : vector<10x288xf32>
    %14 = tpu.matmul %0, %13, %cst_12 {dimension_numbers = #tpu.dot_dimension_numbers<[1], [0], [0], [1], [0, 0, 1, 1], [], []>} : vector<10x25xbf16>, vector<25x288xbf16>, vector<10x288xf32> -> vector<10x288xf32>
    %15 = arith.maximumf %11, %14 : vector<10x288xf32>
    %c0_13 = arith.constant 0 : index
    %c0_14 = arith.constant 0 : index
    %16 = vector.load %arg3[%c0_13, %c0_14] : memref<10x1xf32, #tpu.memory_space<vmem>>, vector<10x1xf32>
    %17 = vector.broadcast %16 : vector<10x1xf32> to vector<10x288xf32>
    %18 = arith.addf %15, %17 : vector<10x288xf32>
    %cst_15 = arith.constant 0.000000e+00 : f32
    %19 = vector.broadcast %cst_15 : f32 to vector<10x288xf32>
    %20 = arith.maximumf %18, %19 : vector<10x288xf32>
    %21 = arith.truncf %20 : vector<10x288xf32> to vector<10x288xbf16>
    %c0_16 = arith.constant 0 : index
    %c0_17 = arith.constant 0 : index
    %22 = vector.load %arg4[%c0_16, %c0_17] : memref<10x288xbf16, #tpu.memory_space<vmem>>, vector<10x288xbf16>
    tpu.vector_store %arg4[%c0_16, %c0_17], %21 {strides = array<i32>} : memref<10x288xbf16, #tpu.memory_space<vmem>>, vector<10x288xbf16>,
    return
  }
  func.func @transform_0(%arg0: i32) -> (i32, i32, i32) {
    %c0_i32 = arith.constant 0 : i32
    %c0_i32_0 = arith.constant 0 : i32
    %c0_i32_1 = arith.constant 0 : i32
    return %c0_i32, %c0_i32_0, %arg0 : i32, i32, i32
  }
  func.func @transform_1(%arg0: i32) -> (i32, i32) {
    %c0_i32 = arith.constant 0 : i32
    %c0_i32_0 = arith.constant 0 : i32
    %c0_i32_1 = arith.constant 0 : i32
    return %c0_i32, %c0_i32_0 : i32, i32
  }
  func.func @transform_2(%arg0: i32) -> (i32, i32) {
    %c0_i32 = arith.constant 0 : i32
    %c0_i32_0 = arith.constant 0 : i32
    %c0_i32_1 = arith.constant 0 : i32
    return %c0_i32, %c0_i32_0 : i32, i32
  }
  func.func @transform_3(%arg0: i32) -> (i32, i32) {
    %c0_i32 = arith.constant 0 : i32
    %c0_i32_0 = arith.constant 0 : i32
    return %c0_i32, %arg0 : i32, i32
  }
}

module attributes {stable_mosaic.version = 11 : i64} {
  func.func @_conv2_head_kernel(%arg0: i32, %arg1: memref<4x16x2x250xbf16, #tpu.memory_space<vmem>>, %arg2: memref<250x20xbf16, #tpu.memory_space<vmem>>, %arg3: memref<1x20xf32, #tpu.memory_space<vmem>>, %arg4: memref<16x20x50xbf16, #tpu.memory_space<vmem>>, %arg5: memref<1x50xf32, #tpu.memory_space<vmem>>, %arg6: memref<50x10xbf16, #tpu.memory_space<vmem>>, %arg7: memref<1x10xf32, #tpu.memory_space<vmem>>, %arg8: memref<2x10xf32, #tpu.memory_space<vmem>>) attributes {dimension_semantics = [#tpu.dimension_semantics<parallel>], iteration_bounds = array<i64: 1>, scalar_prefetch = 0 : i64, scratch_operands = 0 : i64, tpu.core_type = #tpu.core_type<tc>, window_params = [{transform_indices = @transform_0, window_bounds = array<i64: 4, 16, 2, 250>}, {pipeline_mode = #tpu.pipeline_mode<synchronous>, transform_indices = @transform_1, window_bounds = array<i64: 250, 20>}, {pipeline_mode = #tpu.pipeline_mode<synchronous>, transform_indices = @transform_2, window_bounds = array<i64: 1, 20>}, {pipeline_mode = #tpu.pipeline_mode<synchronous>, transform_indices = @transform_3, window_bounds = array<i64: 16, 20, 50>}, {pipeline_mode = #tpu.pipeline_mode<synchronous>, transform_indices = @transform_4, window_bounds = array<i64: 1, 50>}, {pipeline_mode = #tpu.pipeline_mode<synchronous>, transform_indices = @transform_5, window_bounds = array<i64: 50, 10>}, {pipeline_mode = #tpu.pipeline_mode<synchronous>, transform_indices = @transform_6, window_bounds = array<i64: 1, 10>}, {transform_indices = @transform_7, window_bounds = array<i64: 2, 10>}]} {
    %c0 = arith.constant 0 : index
    %c0_0 = arith.constant 0 : index
    %0 = vector.load %arg2[%c0, %c0_0] : memref<250x20xbf16, #tpu.memory_space<vmem>>, vector<250x20xbf16>
    %c0_1 = arith.constant 0 : index
    %c0_2 = arith.constant 0 : index
    %1 = vector.load %arg3[%c0_1, %c0_2] : memref<1x20xf32, #tpu.memory_space<vmem>>, vector<1x20xf32>
    %cst = arith.constant 0.000000e+00 : f32
    %2 = vector.broadcast %cst : f32 to vector<2x50xf32>
    %c0_3 = arith.constant 0 : index
    %c0_4 = arith.constant 0 : index
    %c0_5 = arith.constant 0 : index
    %c0_6 = arith.constant 0 : index
    %3 = vector.load %arg1[%c0_3, %c0_4, %c0_5, %c0_6] : memref<4x16x2x250xbf16, #tpu.memory_space<vmem>>, vector<1x1x2x250xbf16>
    %4 = vector.shape_cast %3 : vector<1x1x2x250xbf16> to vector<2x250xbf16>
    %cst_7 = arith.constant dense<0.000000e+00> : vector<2x20xf32>
    %5 = tpu.matmul %4, %0, %cst_7 {dimension_numbers = #tpu.dot_dimension_numbers<[1], [0], [0], [1], [0, 0, 1, 1], [], []>} : vector<2x250xbf16>, vector<250x20xbf16>, vector<2x20xf32> -> vector<2x20xf32>
    %c1 = arith.constant 1 : index
    %c0_8 = arith.constant 0 : index
    %c0_9 = arith.constant 0 : index
    %c0_10 = arith.constant 0 : index
    %6 = vector.load %arg1[%c1, %c0_8, %c0_9, %c0_10] : memref<4x16x2x250xbf16, #tpu.memory_space<vmem>>, vector<1x1x2x250xbf16>
    %7 = vector.shape_cast %6 : vector<1x1x2x250xbf16> to vector<2x250xbf16>
    %cst_11 = arith.constant dense<0.000000e+00> : vector<2x20xf32>
    %8 = tpu.matmul %7, %0, %cst_11 {dimension_numbers = #tpu.dot_dimension_numbers<[1], [0], [0], [1], [0, 0, 1, 1], [], []>} : vector<2x250xbf16>, vector<250x20xbf16>, vector<2x20xf32> -> vector<2x20xf32>
    %9 = arith.maximumf %5, %8 : vector<2x20xf32>
    %c2 = arith.constant 2 : index
    %c0_12 = arith.constant 0 : index
    %c0_13 = arith.constant 0 : index
    %c0_14 = arith.constant 0 : index
    %10 = vector.load %arg1[%c2, %c0_12, %c0_13, %c0_14] : memref<4x16x2x250xbf16, #tpu.memory_space<vmem>>, vector<1x1x2x250xbf16>
    %11 = vector.shape_cast %10 : vector<1x1x2x250xbf16> to vector<2x250xbf16>
    %cst_15 = arith.constant dense<0.000000e+00> : vector<2x20xf32>
    %12 = tpu.matmul %11, %0, %cst_15 {dimension_numbers = #tpu.dot_dimension_numbers<[1], [0], [0], [1], [0, 0, 1, 1], [], []>} : vector<2x250xbf16>, vector<250x20xbf16>, vector<2x20xf32> -> vector<2x20xf32>
    %13 = arith.maximumf %9, %12 : vector<2x20xf32>
    %c3 = arith.constant 3 : index
    %c0_16 = arith.constant 0 : index
    %c0_17 = arith.constant 0 : index
    %c0_18 = arith.constant 0 : index
    %14 = vector.load %arg1[%c3, %c0_16, %c0_17, %c0_18] : memref<4x16x2x250xbf16, #tpu.memory_space<vmem>>, vector<1x1x2x250xbf16>
    %15 = vector.shape_cast %14 : vector<1x1x2x250xbf16> to vector<2x250xbf16>
    %cst_19 = arith.constant dense<0.000000e+00> : vector<2x20xf32>
    %16 = tpu.matmul %15, %0, %cst_19 {dimension_numbers = #tpu.dot_dimension_numbers<[1], [0], [0], [1], [0, 0, 1, 1], [], []>} : vector<2x250xbf16>, vector<250x20xbf16>, vector<2x20xf32> -> vector<2x20xf32>
    %17 = arith.maximumf %13, %16 : vector<2x20xf32>
    %18 = vector.broadcast %1 : vector<1x20xf32> to vector<2x20xf32>
    %19 = arith.addf %17, %18 : vector<2x20xf32>
    %cst_20 = arith.constant 0.000000e+00 : f32
    %20 = vector.broadcast %cst_20 : f32 to vector<2x20xf32>
    %21 = arith.maximumf %19, %20 : vector<2x20xf32>
    %22 = arith.truncf %21 : vector<2x20xf32> to vector<2x20xbf16>
    %c0_21 = arith.constant 0 : index
    %c0_22 = arith.constant 0 : index
    %c0_23 = arith.constant 0 : index
    %23 = vector.load %arg4[%c0_21, %c0_22, %c0_23] : memref<16x20x50xbf16, #tpu.memory_space<vmem>>, vector<1x20x50xbf16>
    %24 = vector.shape_cast %23 : vector<1x20x50xbf16> to vector<20x50xbf16>
    %cst_24 = arith.constant dense<0.000000e+00> : vector<2x50xf32>
    %25 = tpu.matmul %22, %24, %cst_24 {dimension_numbers = #tpu.dot_dimension_numbers<[1], [0], [0], [1], [0, 0, 1, 1], [], []>} : vector<2x20xbf16>, vector<20x50xbf16>, vector<2x50xf32> -> vector<2x50xf32>
    %26 = arith.addf %2, %25 : vector<2x50xf32>
    %c0_25 = arith.constant 0 : index
    %c1_26 = arith.constant 1 : index
    %c0_27 = arith.constant 0 : index
    %c0_28 = arith.constant 0 : index
    %27 = vector.load %arg1[%c0_25, %c1_26, %c0_27, %c0_28] : memref<4x16x2x250xbf16, #tpu.memory_space<vmem>>, vector<1x1x2x250xbf16>
    %28 = vector.shape_cast %27 : vector<1x1x2x250xbf16> to vector<2x250xbf16>
    %cst_29 = arith.constant dense<0.000000e+00> : vector<2x20xf32>
    %29 = tpu.matmul %28, %0, %cst_29 {dimension_numbers = #tpu.dot_dimension_numbers<[1], [0], [0], [1], [0, 0, 1, 1], [], []>} : vector<2x250xbf16>, vector<250x20xbf16>, vector<2x20xf32> -> vector<2x20xf32>
    %c1_30 = arith.constant 1 : index
    %c1_31 = arith.constant 1 : index
    %c0_32 = arith.constant 0 : index
    %c0_33 = arith.constant 0 : index
    %30 = vector.load %arg1[%c1_30, %c1_31, %c0_32, %c0_33] : memref<4x16x2x250xbf16, #tpu.memory_space<vmem>>, vector<1x1x2x250xbf16>
    %31 = vector.shape_cast %30 : vector<1x1x2x250xbf16> to vector<2x250xbf16>
    %cst_34 = arith.constant dense<0.000000e+00> : vector<2x20xf32>
    %32 = tpu.matmul %31, %0, %cst_34 {dimension_numbers = #tpu.dot_dimension_numbers<[1], [0], [0], [1], [0, 0, 1, 1], [], []>} : vector<2x250xbf16>, vector<250x20xbf16>, vector<2x20xf32> -> vector<2x20xf32>
    %33 = arith.maximumf %29, %32 : vector<2x20xf32>
    %c2_35 = arith.constant 2 : index
    %c1_36 = arith.constant 1 : index
    %c0_37 = arith.constant 0 : index
    %c0_38 = arith.constant 0 : index
    %34 = vector.load %arg1[%c2_35, %c1_36, %c0_37, %c0_38] : memref<4x16x2x250xbf16, #tpu.memory_space<vmem>>, vector<1x1x2x250xbf16>
    %35 = vector.shape_cast %34 : vector<1x1x2x250xbf16> to vector<2x250xbf16>
    %cst_39 = arith.constant dense<0.000000e+00> : vector<2x20xf32>
    %36 = tpu.matmul %35, %0, %cst_39 {dimension_numbers = #tpu.dot_dimension_numbers<[1], [0], [0], [1], [0, 0, 1, 1], [], []>} : vector<2x250xbf16>, vector<250x20xbf16>, vector<2x20xf32> -> vector<2x20xf32>
    %37 = arith.maximumf %33, %36 : vector<2x20xf32>
    %c3_40 = arith.constant 3 : index
    %c1_41 = arith.constant 1 : index
    %c0_42 = arith.constant 0 : index
    %c0_43 = arith.constant 0 : index
    %38 = vector.load %arg1[%c3_40, %c1_41, %c0_42, %c0_43] : memref<4x16x2x250xbf16, #tpu.memory_space<vmem>>, vector<1x1x2x250xbf16>
    %39 = vector.shape_cast %38 : vector<1x1x2x250xbf16> to vector<2x250xbf16>
    %cst_44 = arith.constant dense<0.000000e+00> : vector<2x20xf32>
    %40 = tpu.matmul %39, %0, %cst_44 {dimension_numbers = #tpu.dot_dimension_numbers<[1], [0], [0], [1], [0, 0, 1, 1], [], []>} : vector<2x250xbf16>, vector<250x20xbf16>, vector<2x20xf32> -> vector<2x20xf32>
    %41 = arith.maximumf %37, %40 : vector<2x20xf32>
    %42 = vector.broadcast %1 : vector<1x20xf32> to vector<2x20xf32>
    %43 = arith.addf %41, %42 : vector<2x20xf32>
    %cst_45 = arith.constant 0.000000e+00 : f32
    %44 = vector.broadcast %cst_45 : f32 to vector<2x20xf32>
    %45 = arith.maximumf %43, %44 : vector<2x20xf32>
    %46 = arith.truncf %45 : vector<2x20xf32> to vector<2x20xbf16>
    %c1_46 = arith.constant 1 : index
    %c0_47 = arith.constant 0 : index
    %c0_48 = arith.constant 0 : index
    %47 = vector.load %arg4[%c1_46, %c0_47, %c0_48] : memref<16x20x50xbf16, #tpu.memory_space<vmem>>, vector<1x20x50xbf16>
    %48 = vector.shape_cast %47 : vector<1x20x50xbf16> to vector<20x50xbf16>
    %cst_49 = arith.constant dense<0.000000e+00> : vector<2x50xf32>
    %49 = tpu.matmul %46, %48, %cst_49 {dimension_numbers = #tpu.dot_dimension_numbers<[1], [0], [0], [1], [0, 0, 1, 1], [], []>} : vector<2x20xbf16>, vector<20x50xbf16>, vector<2x50xf32> -> vector<2x50xf32>
    %50 = arith.addf %26, %49 : vector<2x50xf32>
    %c0_50 = arith.constant 0 : index
    %c2_51 = arith.constant 2 : index
    %c0_52 = arith.constant 0 : index
    %c0_53 = arith.constant 0 : index
    %51 = vector.load %arg1[%c0_50, %c2_51, %c0_52, %c0_53] : memref<4x16x2x250xbf16, #tpu.memory_space<vmem>>, vector<1x1x2x250xbf16>
    %52 = vector.shape_cast %51 : vector<1x1x2x250xbf16> to vector<2x250xbf16>
    %cst_54 = arith.constant dense<0.000000e+00> : vector<2x20xf32>
    %53 = tpu.matmul %52, %0, %cst_54 {dimension_numbers = #tpu.dot_dimension_numbers<[1], [0], [0], [1], [0, 0, 1, 1], [], []>} : vector<2x250xbf16>, vector<250x20xbf16>, vector<2x20xf32> -> vector<2x20xf32>
    %c1_55 = arith.constant 1 : index
    %c2_56 = arith.constant 2 : index
    %c0_57 = arith.constant 0 : index
    %c0_58 = arith.constant 0 : index
    %54 = vector.load %arg1[%c1_55, %c2_56, %c0_57, %c0_58] : memref<4x16x2x250xbf16, #tpu.memory_space<vmem>>, vector<1x1x2x250xbf16>
    %55 = vector.shape_cast %54 : vector<1x1x2x250xbf16> to vector<2x250xbf16>
    %cst_59 = arith.constant dense<0.000000e+00> : vector<2x20xf32>
    %56 = tpu.matmul %55, %0, %cst_59 {dimension_numbers = #tpu.dot_dimension_numbers<[1], [0], [0], [1], [0, 0, 1, 1], [], []>} : vector<2x250xbf16>, vector<250x20xbf16>, vector<2x20xf32> -> vector<2x20xf32>
    %57 = arith.maximumf %53, %56 : vector<2x20xf32>
    %c2_60 = arith.constant 2 : index
    %c2_61 = arith.constant 2 : index
    %c0_62 = arith.constant 0 : index
    %c0_63 = arith.constant 0 : index
    %58 = vector.load %arg1[%c2_60, %c2_61, %c0_62, %c0_63] : memref<4x16x2x250xbf16, #tpu.memory_space<vmem>>, vector<1x1x2x250xbf16>
    %59 = vector.shape_cast %58 : vector<1x1x2x250xbf16> to vector<2x250xbf16>
    %cst_64 = arith.constant dense<0.000000e+00> : vector<2x20xf32>
    %60 = tpu.matmul %59, %0, %cst_64 {dimension_numbers = #tpu.dot_dimension_numbers<[1], [0], [0], [1], [0, 0, 1, 1], [], []>} : vector<2x250xbf16>, vector<250x20xbf16>, vector<2x20xf32> -> vector<2x20xf32>
    %61 = arith.maximumf %57, %60 : vector<2x20xf32>
    %c3_65 = arith.constant 3 : index
    %c2_66 = arith.constant 2 : index
    %c0_67 = arith.constant 0 : index
    %c0_68 = arith.constant 0 : index
    %62 = vector.load %arg1[%c3_65, %c2_66, %c0_67, %c0_68] : memref<4x16x2x250xbf16, #tpu.memory_space<vmem>>, vector<1x1x2x250xbf16>
    %63 = vector.shape_cast %62 : vector<1x1x2x250xbf16> to vector<2x250xbf16>
    %cst_69 = arith.constant dense<0.000000e+00> : vector<2x20xf32>
    %64 = tpu.matmul %63, %0, %cst_69 {dimension_numbers = #tpu.dot_dimension_numbers<[1], [0], [0], [1], [0, 0, 1, 1], [], []>} : vector<2x250xbf16>, vector<250x20xbf16>, vector<2x20xf32> -> vector<2x20xf32>
    %65 = arith.maximumf %61, %64 : vector<2x20xf32>
    %66 = vector.broadcast %1 : vector<1x20xf32> to vector<2x20xf32>
    %67 = arith.addf %65, %66 : vector<2x20xf32>
    %cst_70 = arith.constant 0.000000e+00 : f32
    %68 = vector.broadcast %cst_70 : f32 to vector<2x20xf32>
    %69 = arith.maximumf %67, %68 : vector<2x20xf32>
    %70 = arith.truncf %69 : vector<2x20xf32> to vector<2x20xbf16>
    %c2_71 = arith.constant 2 : index
    %c0_72 = arith.constant 0 : index
    %c0_73 = arith.constant 0 : index
    %71 = vector.load %arg4[%c2_71, %c0_72, %c0_73] : memref<16x20x50xbf16, #tpu.memory_space<vmem>>, vector<1x20x50xbf16>
    %72 = vector.shape_cast %71 : vector<1x20x50xbf16> to vector<20x50xbf16>
    %cst_74 = arith.constant dense<0.000000e+00> : vector<2x50xf32>
    %73 = tpu.matmul %70, %72, %cst_74 {dimension_numbers = #tpu.dot_dimension_numbers<[1], [0], [0], [1], [0, 0, 1, 1], [], []>} : vector<2x20xbf16>, vector<20x50xbf16>, vector<2x50xf32> -> vector<2x50xf32>
    %74 = arith.addf %50, %73 : vector<2x50xf32>
    %c0_75 = arith.constant 0 : index
    %c3_76 = arith.constant 3 : index
    %c0_77 = arith.constant 0 : index
    %c0_78 = arith.constant 0 : index
    %75 = vector.load %arg1[%c0_75, %c3_76, %c0_77, %c0_78] : memref<4x16x2x250xbf16, #tpu.memory_space<vmem>>, vector<1x1x2x250xbf16>
    %76 = vector.shape_cast %75 : vector<1x1x2x250xbf16> to vector<2x250xbf16>
    %cst_79 = arith.constant dense<0.000000e+00> : vector<2x20xf32>
    %77 = tpu.matmul %76, %0, %cst_79 {dimension_numbers = #tpu.dot_dimension_numbers<[1], [0], [0], [1], [0, 0, 1, 1], [], []>} : vector<2x250xbf16>, vector<250x20xbf16>, vector<2x20xf32> -> vector<2x20xf32>
    %c1_80 = arith.constant 1 : index
    %c3_81 = arith.constant 3 : index
    %c0_82 = arith.constant 0 : index
    %c0_83 = arith.constant 0 : index
    %78 = vector.load %arg1[%c1_80, %c3_81, %c0_82, %c0_83] : memref<4x16x2x250xbf16, #tpu.memory_space<vmem>>, vector<1x1x2x250xbf16>
    %79 = vector.shape_cast %78 : vector<1x1x2x250xbf16> to vector<2x250xbf16>
    %cst_84 = arith.constant dense<0.000000e+00> : vector<2x20xf32>
    %80 = tpu.matmul %79, %0, %cst_84 {dimension_numbers = #tpu.dot_dimension_numbers<[1], [0], [0], [1], [0, 0, 1, 1], [], []>} : vector<2x250xbf16>, vector<250x20xbf16>, vector<2x20xf32> -> vector<2x20xf32>
    %81 = arith.maximumf %77, %80 : vector<2x20xf32>
    %c2_85 = arith.constant 2 : index
    %c3_86 = arith.constant 3 : index
    %c0_87 = arith.constant 0 : index
    %c0_88 = arith.constant 0 : index
    %82 = vector.load %arg1[%c2_85, %c3_86, %c0_87, %c0_88] : memref<4x16x2x250xbf16, #tpu.memory_space<vmem>>, vector<1x1x2x250xbf16>
    %83 = vector.shape_cast %82 : vector<1x1x2x250xbf16> to vector<2x250xbf16>
    %cst_89 = arith.constant dense<0.000000e+00> : vector<2x20xf32>
    %84 = tpu.matmul %83, %0, %cst_89 {dimension_numbers = #tpu.dot_dimension_numbers<[1], [0], [0], [1], [0, 0, 1, 1], [], []>} : vector<2x250xbf16>, vector<250x20xbf16>, vector<2x20xf32> -> vector<2x20xf32>
    %85 = arith.maximumf %81, %84 : vector<2x20xf32>
    %c3_90 = arith.constant 3 : index
    %c3_91 = arith.constant 3 : index
    %c0_92 = arith.constant 0 : index
    %c0_93 = arith.constant 0 : index
    %86 = vector.load %arg1[%c3_90, %c3_91, %c0_92, %c0_93] : memref<4x16x2x250xbf16, #tpu.memory_space<vmem>>, vector<1x1x2x250xbf16>
    %87 = vector.shape_cast %86 : vector<1x1x2x250xbf16> to vector<2x250xbf16>
    %cst_94 = arith.constant dense<0.000000e+00> : vector<2x20xf32>
    %88 = tpu.matmul %87, %0, %cst_94 {dimension_numbers = #tpu.dot_dimension_numbers<[1], [0], [0], [1], [0, 0, 1, 1], [], []>} : vector<2x250xbf16>, vector<250x20xbf16>, vector<2x20xf32> -> vector<2x20xf32>
    %89 = arith.maximumf %85, %88 : vector<2x20xf32>
    %90 = vector.broadcast %1 : vector<1x20xf32> to vector<2x20xf32>
    %91 = arith.addf %89, %90 : vector<2x20xf32>
    %cst_95 = arith.constant 0.000000e+00 : f32
    %92 = vector.broadcast %cst_95 : f32 to vector<2x20xf32>
    %93 = arith.maximumf %91, %92 : vector<2x20xf32>
    %94 = arith.truncf %93 : vector<2x20xf32> to vector<2x20xbf16>
    %c3_96 = arith.constant 3 : index
    %c0_97 = arith.constant 0 : index
    %c0_98 = arith.constant 0 : index
    %95 = vector.load %arg4[%c3_96, %c0_97, %c0_98] : memref<16x20x50xbf16, #tpu.memory_space<vmem>>, vector<1x20x50xbf16>
    %96 = vector.shape_cast %95 : vector<1x20x50xbf16> to vector<20x50xbf16>
    %cst_99 = arith.constant dense<0.000000e+00> : vector<2x50xf32>
    %97 = tpu.matmul %94, %96, %cst_99 {dimension_numbers = #tpu.dot_dimension_numbers<[1], [0], [0], [1], [0, 0, 1, 1], [], []>} : vector<2x20xbf16>, vector<20x50xbf16>, vector<2x50xf32> -> vector<2x50xf32>
    %98 = arith.addf %74, %97 : vector<2x50xf32>
    %c0_100 = arith.constant 0 : index
    %c4 = arith.constant 4 : index
    %c0_101 = arith.constant 0 : index
    %c0_102 = arith.constant 0 : index
    %99 = vector.load %arg1[%c0_100, %c4, %c0_101, %c0_102] : memref<4x16x2x250xbf16, #tpu.memory_space<vmem>>, vector<1x1x2x250xbf16>
    %100 = vector.shape_cast %99 : vector<1x1x2x250xbf16> to vector<2x250xbf16>
    %cst_103 = arith.constant dense<0.000000e+00> : vector<2x20xf32>
    %101 = tpu.matmul %100, %0, %cst_103 {dimension_numbers = #tpu.dot_dimension_numbers<[1], [0], [0], [1], [0, 0, 1, 1], [], []>} : vector<2x250xbf16>, vector<250x20xbf16>, vector<2x20xf32> -> vector<2x20xf32>
    %c1_104 = arith.constant 1 : index
    %c4_105 = arith.constant 4 : index
    %c0_106 = arith.constant 0 : index
    %c0_107 = arith.constant 0 : index
    %102 = vector.load %arg1[%c1_104, %c4_105, %c0_106, %c0_107] : memref<4x16x2x250xbf16, #tpu.memory_space<vmem>>, vector<1x1x2x250xbf16>
    %103 = vector.shape_cast %102 : vector<1x1x2x250xbf16> to vector<2x250xbf16>
    %cst_108 = arith.constant dense<0.000000e+00> : vector<2x20xf32>
    %104 = tpu.matmul %103, %0, %cst_108 {dimension_numbers = #tpu.dot_dimension_numbers<[1], [0], [0], [1], [0, 0, 1, 1], [], []>} : vector<2x250xbf16>, vector<250x20xbf16>, vector<2x20xf32> -> vector<2x20xf32>
    %105 = arith.maximumf %101, %104 : vector<2x20xf32>
    %c2_109 = arith.constant 2 : index
    %c4_110 = arith.constant 4 : index
    %c0_111 = arith.constant 0 : index
    %c0_112 = arith.constant 0 : index
    %106 = vector.load %arg1[%c2_109, %c4_110, %c0_111, %c0_112] : memref<4x16x2x250xbf16, #tpu.memory_space<vmem>>, vector<1x1x2x250xbf16>
    %107 = vector.shape_cast %106 : vector<1x1x2x250xbf16> to vector<2x250xbf16>
    %cst_113 = arith.constant dense<0.000000e+00> : vector<2x20xf32>
    %108 = tpu.matmul %107, %0, %cst_113 {dimension_numbers = #tpu.dot_dimension_numbers<[1], [0], [0], [1], [0, 0, 1, 1], [], []>} : vector<2x250xbf16>, vector<250x20xbf16>, vector<2x20xf32> -> vector<2x20xf32>
    %109 = arith.maximumf %105, %108 : vector<2x20xf32>
    %c3_114 = arith.constant 3 : index
    %c4_115 = arith.constant 4 : index
    %c0_116 = arith.constant 0 : index
    %c0_117 = arith.constant 0 : index
    %110 = vector.load %arg1[%c3_114, %c4_115, %c0_116, %c0_117] : memref<4x16x2x250xbf16, #tpu.memory_space<vmem>>, vector<1x1x2x250xbf16>
    %111 = vector.shape_cast %110 : vector<1x1x2x250xbf16> to vector<2x250xbf16>
    %cst_118 = arith.constant dense<0.000000e+00> : vector<2x20xf32>
    %112 = tpu.matmul %111, %0, %cst_118 {dimension_numbers = #tpu.dot_dimension_numbers<[1], [0], [0], [1], [0, 0, 1, 1], [], []>} : vector<2x250xbf16>, vector<250x20xbf16>, vector<2x20xf32> -> vector<2x20xf32>
    %113 = arith.maximumf %109, %112 : vector<2x20xf32>
    %114 = vector.broadcast %1 : vector<1x20xf32> to vector<2x20xf32>
    %115 = arith.addf %113, %114 : vector<2x20xf32>
    %cst_119 = arith.constant 0.000000e+00 : f32
    %116 = vector.broadcast %cst_119 : f32 to vector<2x20xf32>
    %117 = arith.maximumf %115, %116 : vector<2x20xf32>
    %118 = arith.truncf %117 : vector<2x20xf32> to vector<2x20xbf16>
    %c4_120 = arith.constant 4 : index
    %c0_121 = arith.constant 0 : index
    %c0_122 = arith.constant 0 : index
    %119 = vector.load %arg4[%c4_120, %c0_121, %c0_122] : memref<16x20x50xbf16, #tpu.memory_space<vmem>>, vector<1x20x50xbf16>
    %120 = vector.shape_cast %119 : vector<1x20x50xbf16> to vector<20x50xbf16>
    %cst_123 = arith.constant dense<0.000000e+00> : vector<2x50xf32>
    %121 = tpu.matmul %118, %120, %cst_123 {dimension_numbers = #tpu.dot_dimension_numbers<[1], [0], [0], [1], [0, 0, 1, 1], [], []>} : vector<2x20xbf16>, vector<20x50xbf16>, vector<2x50xf32> -> vector<2x50xf32>
    %122 = arith.addf %98, %121 : vector<2x50xf32>
    %c0_124 = arith.constant 0 : index
    %c5 = arith.constant 5 : index
    %c0_125 = arith.constant 0 : index
    %c0_126 = arith.constant 0 : index
    %123 = vector.load %arg1[%c0_124, %c5, %c0_125, %c0_126] : memref<4x16x2x250xbf16, #tpu.memory_space<vmem>>, vector<1x1x2x250xbf16>
    %124 = vector.shape_cast %123 : vector<1x1x2x250xbf16> to vector<2x250xbf16>
    %cst_127 = arith.constant dense<0.000000e+00> : vector<2x20xf32>
    %125 = tpu.matmul %124, %0, %cst_127 {dimension_numbers = #tpu.dot_dimension_numbers<[1], [0], [0], [1], [0, 0, 1, 1], [], []>} : vector<2x250xbf16>, vector<250x20xbf16>, vector<2x20xf32> -> vector<2x20xf32>
    %c1_128 = arith.constant 1 : index
    %c5_129 = arith.constant 5 : index
    %c0_130 = arith.constant 0 : index
    %c0_131 = arith.constant 0 : index
    %126 = vector.load %arg1[%c1_128, %c5_129, %c0_130, %c0_131] : memref<4x16x2x250xbf16, #tpu.memory_space<vmem>>, vector<1x1x2x250xbf16>
    %127 = vector.shape_cast %126 : vector<1x1x2x250xbf16> to vector<2x250xbf16>
    %cst_132 = arith.constant dense<0.000000e+00> : vector<2x20xf32>
    %128 = tpu.matmul %127, %0, %cst_132 {dimension_numbers = #tpu.dot_dimension_numbers<[1], [0], [0], [1], [0, 0, 1, 1], [], []>} : vector<2x250xbf16>, vector<250x20xbf16>, vector<2x20xf32> -> vector<2x20xf32>
    %129 = arith.maximumf %125, %128 : vector<2x20xf32>
    %c2_133 = arith.constant 2 : index
    %c5_134 = arith.constant 5 : index
    %c0_135 = arith.constant 0 : index
    %c0_136 = arith.constant 0 : index
    %130 = vector.load %arg1[%c2_133, %c5_134, %c0_135, %c0_136] : memref<4x16x2x250xbf16, #tpu.memory_space<vmem>>, vector<1x1x2x250xbf16>
    %131 = vector.shape_cast %130 : vector<1x1x2x250xbf16> to vector<2x250xbf16>
    %cst_137 = arith.constant dense<0.000000e+00> : vector<2x20xf32>
    %132 = tpu.matmul %131, %0, %cst_137 {dimension_numbers = #tpu.dot_dimension_numbers<[1], [0], [0], [1], [0, 0, 1, 1], [], []>} : vector<2x250xbf16>, vector<250x20xbf16>, vector<2x20xf32> -> vector<2x20xf32>
    %133 = arith.maximumf %129, %132 : vector<2x20xf32>
    %c3_138 = arith.constant 3 : index
    %c5_139 = arith.constant 5 : index
    %c0_140 = arith.constant 0 : index
    %c0_141 = arith.constant 0 : index
    %134 = vector.load %arg1[%c3_138, %c5_139, %c0_140, %c0_141] : memref<4x16x2x250xbf16, #tpu.memory_space<vmem>>, vector<1x1x2x250xbf16>
    %135 = vector.shape_cast %134 : vector<1x1x2x250xbf16> to vector<2x250xbf16>
    %cst_142 = arith.constant dense<0.000000e+00> : vector<2x20xf32>
    %136 = tpu.matmul %135, %0, %cst_142 {dimension_numbers = #tpu.dot_dimension_numbers<[1], [0], [0], [1], [0, 0, 1, 1], [], []>} : vector<2x250xbf16>, vector<250x20xbf16>, vector<2x20xf32> -> vector<2x20xf32>
    %137 = arith.maximumf %133, %136 : vector<2x20xf32>
    %138 = vector.broadcast %1 : vector<1x20xf32> to vector<2x20xf32>
    %139 = arith.addf %137, %138 : vector<2x20xf32>
    %cst_143 = arith.constant 0.000000e+00 : f32
    %140 = vector.broadcast %cst_143 : f32 to vector<2x20xf32>
    %141 = arith.maximumf %139, %140 : vector<2x20xf32>
    %142 = arith.truncf %141 : vector<2x20xf32> to vector<2x20xbf16>
    %c5_144 = arith.constant 5 : index
    %c0_145 = arith.constant 0 : index
    %c0_146 = arith.constant 0 : index
    %143 = vector.load %arg4[%c5_144, %c0_145, %c0_146] : memref<16x20x50xbf16, #tpu.memory_space<vmem>>, vector<1x20x50xbf16>
    %144 = vector.shape_cast %143 : vector<1x20x50xbf16> to vector<20x50xbf16>
    %cst_147 = arith.constant dense<0.000000e+00> : vector<2x50xf32>
    %145 = tpu.matmul %142, %144, %cst_147 {dimension_numbers = #tpu.dot_dimension_numbers<[1], [0], [0], [1], [0, 0, 1, 1], [], []>} : vector<2x20xbf16>, vector<20x50xbf16>, vector<2x50xf32> -> vector<2x50xf32>
    %146 = arith.addf %122, %145 : vector<2x50xf32>
    %c0_148 = arith.constant 0 : index
    %c6 = arith.constant 6 : index
    %c0_149 = arith.constant 0 : index
    %c0_150 = arith.constant 0 : index
    %147 = vector.load %arg1[%c0_148, %c6, %c0_149, %c0_150] : memref<4x16x2x250xbf16, #tpu.memory_space<vmem>>, vector<1x1x2x250xbf16>
    %148 = vector.shape_cast %147 : vector<1x1x2x250xbf16> to vector<2x250xbf16>
    %cst_151 = arith.constant dense<0.000000e+00> : vector<2x20xf32>
    %149 = tpu.matmul %148, %0, %cst_151 {dimension_numbers = #tpu.dot_dimension_numbers<[1], [0], [0], [1], [0, 0, 1, 1], [], []>} : vector<2x250xbf16>, vector<250x20xbf16>, vector<2x20xf32> -> vector<2x20xf32>
    %c1_152 = arith.constant 1 : index
    %c6_153 = arith.constant 6 : index
    %c0_154 = arith.constant 0 : index
    %c0_155 = arith.constant 0 : index
    %150 = vector.load %arg1[%c1_152, %c6_153, %c0_154, %c0_155] : memref<4x16x2x250xbf16, #tpu.memory_space<vmem>>, vector<1x1x2x250xbf16>
    %151 = vector.shape_cast %150 : vector<1x1x2x250xbf16> to vector<2x250xbf16>
    %cst_156 = arith.constant dense<0.000000e+00> : vector<2x20xf32>
    %152 = tpu.matmul %151, %0, %cst_156 {dimension_numbers = #tpu.dot_dimension_numbers<[1], [0], [0], [1], [0, 0, 1, 1], [], []>} : vector<2x250xbf16>, vector<250x20xbf16>, vector<2x20xf32> -> vector<2x20xf32>
    %153 = arith.maximumf %149, %152 : vector<2x20xf32>
    %c2_157 = arith.constant 2 : index
    %c6_158 = arith.constant 6 : index
    %c0_159 = arith.constant 0 : index
    %c0_160 = arith.constant 0 : index
    %154 = vector.load %arg1[%c2_157, %c6_158, %c0_159, %c0_160] : memref<4x16x2x250xbf16, #tpu.memory_space<vmem>>, vector<1x1x2x250xbf16>
    %155 = vector.shape_cast %154 : vector<1x1x2x250xbf16> to vector<2x250xbf16>
    %cst_161 = arith.constant dense<0.000000e+00> : vector<2x20xf32>
    %156 = tpu.matmul %155, %0, %cst_161 {dimension_numbers = #tpu.dot_dimension_numbers<[1], [0], [0], [1], [0, 0, 1, 1], [], []>} : vector<2x250xbf16>, vector<250x20xbf16>, vector<2x20xf32> -> vector<2x20xf32>
    %157 = arith.maximumf %153, %156 : vector<2x20xf32>
    %c3_162 = arith.constant 3 : index
    %c6_163 = arith.constant 6 : index
    %c0_164 = arith.constant 0 : index
    %c0_165 = arith.constant 0 : index
    %158 = vector.load %arg1[%c3_162, %c6_163, %c0_164, %c0_165] : memref<4x16x2x250xbf16, #tpu.memory_space<vmem>>, vector<1x1x2x250xbf16>
    %159 = vector.shape_cast %158 : vector<1x1x2x250xbf16> to vector<2x250xbf16>
    %cst_166 = arith.constant dense<0.000000e+00> : vector<2x20xf32>
    %160 = tpu.matmul %159, %0, %cst_166 {dimension_numbers = #tpu.dot_dimension_numbers<[1], [0], [0], [1], [0, 0, 1, 1], [], []>} : vector<2x250xbf16>, vector<250x20xbf16>, vector<2x20xf32> -> vector<2x20xf32>
    %161 = arith.maximumf %157, %160 : vector<2x20xf32>
    %162 = vector.broadcast %1 : vector<1x20xf32> to vector<2x20xf32>
    %163 = arith.addf %161, %162 : vector<2x20xf32>
    %cst_167 = arith.constant 0.000000e+00 : f32
    %164 = vector.broadcast %cst_167 : f32 to vector<2x20xf32>
    %165 = arith.maximumf %163, %164 : vector<2x20xf32>
    %166 = arith.truncf %165 : vector<2x20xf32> to vector<2x20xbf16>
    %c6_168 = arith.constant 6 : index
    %c0_169 = arith.constant 0 : index
    %c0_170 = arith.constant 0 : index
    %167 = vector.load %arg4[%c6_168, %c0_169, %c0_170] : memref<16x20x50xbf16, #tpu.memory_space<vmem>>, vector<1x20x50xbf16>
    %168 = vector.shape_cast %167 : vector<1x20x50xbf16> to vector<20x50xbf16>
    %cst_171 = arith.constant dense<0.000000e+00> : vector<2x50xf32>
    %169 = tpu.matmul %166, %168, %cst_171 {dimension_numbers = #tpu.dot_dimension_numbers<[1], [0], [0], [1], [0, 0, 1, 1], [], []>} : vector<2x20xbf16>, vector<20x50xbf16>, vector<2x50xf32> -> vector<2x50xf32>
    %170 = arith.addf %146, %169 : vector<2x50xf32>
    %c0_172 = arith.constant 0 : index
    %c7 = arith.constant 7 : index
    %c0_173 = arith.constant 0 : index
    %c0_174 = arith.constant 0 : index
    %171 = vector.load %arg1[%c0_172, %c7, %c0_173, %c0_174] : memref<4x16x2x250xbf16, #tpu.memory_space<vmem>>, vector<1x1x2x250xbf16>
    %172 = vector.shape_cast %171 : vector<1x1x2x250xbf16> to vector<2x250xbf16>
    %cst_175 = arith.constant dense<0.000000e+00> : vector<2x20xf32>
    %173 = tpu.matmul %172, %0, %cst_175 {dimension_numbers = #tpu.dot_dimension_numbers<[1], [0], [0], [1], [0, 0, 1, 1], [], []>} : vector<2x250xbf16>, vector<250x20xbf16>, vector<2x20xf32> -> vector<2x20xf32>
    %c1_176 = arith.constant 1 : index
    %c7_177 = arith.constant 7 : index
    %c0_178 = arith.constant 0 : index
    %c0_179 = arith.constant 0 : index
    %174 = vector.load %arg1[%c1_176, %c7_177, %c0_178, %c0_179] : memref<4x16x2x250xbf16, #tpu.memory_space<vmem>>, vector<1x1x2x250xbf16>
    %175 = vector.shape_cast %174 : vector<1x1x2x250xbf16> to vector<2x250xbf16>
    %cst_180 = arith.constant dense<0.000000e+00> : vector<2x20xf32>
    %176 = tpu.matmul %175, %0, %cst_180 {dimension_numbers = #tpu.dot_dimension_numbers<[1], [0], [0], [1], [0, 0, 1, 1], [], []>} : vector<2x250xbf16>, vector<250x20xbf16>, vector<2x20xf32> -> vector<2x20xf32>
    %177 = arith.maximumf %173, %176 : vector<2x20xf32>
    %c2_181 = arith.constant 2 : index
    %c7_182 = arith.constant 7 : index
    %c0_183 = arith.constant 0 : index
    %c0_184 = arith.constant 0 : index
    %178 = vector.load %arg1[%c2_181, %c7_182, %c0_183, %c0_184] : memref<4x16x2x250xbf16, #tpu.memory_space<vmem>>, vector<1x1x2x250xbf16>
    %179 = vector.shape_cast %178 : vector<1x1x2x250xbf16> to vector<2x250xbf16>
    %cst_185 = arith.constant dense<0.000000e+00> : vector<2x20xf32>
    %180 = tpu.matmul %179, %0, %cst_185 {dimension_numbers = #tpu.dot_dimension_numbers<[1], [0], [0], [1], [0, 0, 1, 1], [], []>} : vector<2x250xbf16>, vector<250x20xbf16>, vector<2x20xf32> -> vector<2x20xf32>
    %181 = arith.maximumf %177, %180 : vector<2x20xf32>
    %c3_186 = arith.constant 3 : index
    %c7_187 = arith.constant 7 : index
    %c0_188 = arith.constant 0 : index
    %c0_189 = arith.constant 0 : index
    %182 = vector.load %arg1[%c3_186, %c7_187, %c0_188, %c0_189] : memref<4x16x2x250xbf16, #tpu.memory_space<vmem>>, vector<1x1x2x250xbf16>
    %183 = vector.shape_cast %182 : vector<1x1x2x250xbf16> to vector<2x250xbf16>
    %cst_190 = arith.constant dense<0.000000e+00> : vector<2x20xf32>
    %184 = tpu.matmul %183, %0, %cst_190 {dimension_numbers = #tpu.dot_dimension_numbers<[1], [0], [0], [1], [0, 0, 1, 1], [], []>} : vector<2x250xbf16>, vector<250x20xbf16>, vector<2x20xf32> -> vector<2x20xf32>
    %185 = arith.maximumf %181, %184 : vector<2x20xf32>
    %186 = vector.broadcast %1 : vector<1x20xf32> to vector<2x20xf32>
    %187 = arith.addf %185, %186 : vector<2x20xf32>
    %cst_191 = arith.constant 0.000000e+00 : f32
    %188 = vector.broadcast %cst_191 : f32 to vector<2x20xf32>
    %189 = arith.maximumf %187, %188 : vector<2x20xf32>
    %190 = arith.truncf %189 : vector<2x20xf32> to vector<2x20xbf16>
    %c7_192 = arith.constant 7 : index
    %c0_193 = arith.constant 0 : index
    %c0_194 = arith.constant 0 : index
    %191 = vector.load %arg4[%c7_192, %c0_193, %c0_194] : memref<16x20x50xbf16, #tpu.memory_space<vmem>>, vector<1x20x50xbf16>
    %192 = vector.shape_cast %191 : vector<1x20x50xbf16> to vector<20x50xbf16>
    %cst_195 = arith.constant dense<0.000000e+00> : vector<2x50xf32>
    %193 = tpu.matmul %190, %192, %cst_195 {dimension_numbers = #tpu.dot_dimension_numbers<[1], [0], [0], [1], [0, 0, 1, 1], [], []>} : vector<2x20xbf16>, vector<20x50xbf16>, vector<2x50xf32> -> vector<2x50xf32>
    %194 = arith.addf %170, %193 : vector<2x50xf32>
    %c0_196 = arith.constant 0 : index
    %c8 = arith.constant 8 : index
    %c0_197 = arith.constant 0 : index
    %c0_198 = arith.constant 0 : index
    %195 = vector.load %arg1[%c0_196, %c8, %c0_197, %c0_198] : memref<4x16x2x250xbf16, #tpu.memory_space<vmem>>, vector<1x1x2x250xbf16>
    %196 = vector.shape_cast %195 : vector<1x1x2x250xbf16> to vector<2x250xbf16>
    %cst_199 = arith.constant dense<0.000000e+00> : vector<2x20xf32>
    %197 = tpu.matmul %196, %0, %cst_199 {dimension_numbers = #tpu.dot_dimension_numbers<[1], [0], [0], [1], [0, 0, 1, 1], [], []>} : vector<2x250xbf16>, vector<250x20xbf16>, vector<2x20xf32> -> vector<2x20xf32>
    %c1_200 = arith.constant 1 : index
    %c8_201 = arith.constant 8 : index
    %c0_202 = arith.constant 0 : index
    %c0_203 = arith.constant 0 : index
    %198 = vector.load %arg1[%c1_200, %c8_201, %c0_202, %c0_203] : memref<4x16x2x250xbf16, #tpu.memory_space<vmem>>, vector<1x1x2x250xbf16>
    %199 = vector.shape_cast %198 : vector<1x1x2x250xbf16> to vector<2x250xbf16>
    %cst_204 = arith.constant dense<0.000000e+00> : vector<2x20xf32>
    %200 = tpu.matmul %199, %0, %cst_204 {dimension_numbers = #tpu.dot_dimension_numbers<[1], [0], [0], [1], [0, 0, 1, 1], [], []>} : vector<2x250xbf16>, vector<250x20xbf16>, vector<2x20xf32> -> vector<2x20xf32>
    %201 = arith.maximumf %197, %200 : vector<2x20xf32>
    %c2_205 = arith.constant 2 : index
    %c8_206 = arith.constant 8 : index
    %c0_207 = arith.constant 0 : index
    %c0_208 = arith.constant 0 : index
    %202 = vector.load %arg1[%c2_205, %c8_206, %c0_207, %c0_208] : memref<4x16x2x250xbf16, #tpu.memory_space<vmem>>, vector<1x1x2x250xbf16>
    %203 = vector.shape_cast %202 : vector<1x1x2x250xbf16> to vector<2x250xbf16>
    %cst_209 = arith.constant dense<0.000000e+00> : vector<2x20xf32>
    %204 = tpu.matmul %203, %0, %cst_209 {dimension_numbers = #tpu.dot_dimension_numbers<[1], [0], [0], [1], [0, 0, 1, 1], [], []>} : vector<2x250xbf16>, vector<250x20xbf16>, vector<2x20xf32> -> vector<2x20xf32>
    %205 = arith.maximumf %201, %204 : vector<2x20xf32>
    %c3_210 = arith.constant 3 : index
    %c8_211 = arith.constant 8 : index
    %c0_212 = arith.constant 0 : index
    %c0_213 = arith.constant 0 : index
    %206 = vector.load %arg1[%c3_210, %c8_211, %c0_212, %c0_213] : memref<4x16x2x250xbf16, #tpu.memory_space<vmem>>, vector<1x1x2x250xbf16>
    %207 = vector.shape_cast %206 : vector<1x1x2x250xbf16> to vector<2x250xbf16>
    %cst_214 = arith.constant dense<0.000000e+00> : vector<2x20xf32>
    %208 = tpu.matmul %207, %0, %cst_214 {dimension_numbers = #tpu.dot_dimension_numbers<[1], [0], [0], [1], [0, 0, 1, 1], [], []>} : vector<2x250xbf16>, vector<250x20xbf16>, vector<2x20xf32> -> vector<2x20xf32>
    %209 = arith.maximumf %205, %208 : vector<2x20xf32>
    %210 = vector.broadcast %1 : vector<1x20xf32> to vector<2x20xf32>
    %211 = arith.addf %209, %210 : vector<2x20xf32>
    %cst_215 = arith.constant 0.000000e+00 : f32
    %212 = vector.broadcast %cst_215 : f32 to vector<2x20xf32>
    %213 = arith.maximumf %211, %212 : vector<2x20xf32>
    %214 = arith.truncf %213 : vector<2x20xf32> to vector<2x20xbf16>
    %c8_216 = arith.constant 8 : index
    %c0_217 = arith.constant 0 : index
    %c0_218 = arith.constant 0 : index
    %215 = vector.load %arg4[%c8_216, %c0_217, %c0_218] : memref<16x20x50xbf16, #tpu.memory_space<vmem>>, vector<1x20x50xbf16>
    %216 = vector.shape_cast %215 : vector<1x20x50xbf16> to vector<20x50xbf16>
    %cst_219 = arith.constant dense<0.000000e+00> : vector<2x50xf32>
    %217 = tpu.matmul %214, %216, %cst_219 {dimension_numbers = #tpu.dot_dimension_numbers<[1], [0], [0], [1], [0, 0, 1, 1], [], []>} : vector<2x20xbf16>, vector<20x50xbf16>, vector<2x50xf32> -> vector<2x50xf32>
    %218 = arith.addf %194, %217 : vector<2x50xf32>
    %c0_220 = arith.constant 0 : index
    %c9 = arith.constant 9 : index
    %c0_221 = arith.constant 0 : index
    %c0_222 = arith.constant 0 : index
    %219 = vector.load %arg1[%c0_220, %c9, %c0_221, %c0_222] : memref<4x16x2x250xbf16, #tpu.memory_space<vmem>>, vector<1x1x2x250xbf16>
    %220 = vector.shape_cast %219 : vector<1x1x2x250xbf16> to vector<2x250xbf16>
    %cst_223 = arith.constant dense<0.000000e+00> : vector<2x20xf32>
    %221 = tpu.matmul %220, %0, %cst_223 {dimension_numbers = #tpu.dot_dimension_numbers<[1], [0], [0], [1], [0, 0, 1, 1], [], []>} : vector<2x250xbf16>, vector<250x20xbf16>, vector<2x20xf32> -> vector<2x20xf32>
    %c1_224 = arith.constant 1 : index
    %c9_225 = arith.constant 9 : index
    %c0_226 = arith.constant 0 : index
    %c0_227 = arith.constant 0 : index
    %222 = vector.load %arg1[%c1_224, %c9_225, %c0_226, %c0_227] : memref<4x16x2x250xbf16, #tpu.memory_space<vmem>>, vector<1x1x2x250xbf16>
    %223 = vector.shape_cast %222 : vector<1x1x2x250xbf16> to vector<2x250xbf16>
    %cst_228 = arith.constant dense<0.000000e+00> : vector<2x20xf32>
    %224 = tpu.matmul %223, %0, %cst_228 {dimension_numbers = #tpu.dot_dimension_numbers<[1], [0], [0], [1], [0, 0, 1, 1], [], []>} : vector<2x250xbf16>, vector<250x20xbf16>, vector<2x20xf32> -> vector<2x20xf32>
    %225 = arith.maximumf %221, %224 : vector<2x20xf32>
    %c2_229 = arith.constant 2 : index
    %c9_230 = arith.constant 9 : index
    %c0_231 = arith.constant 0 : index
    %c0_232 = arith.constant 0 : index
    %226 = vector.load %arg1[%c2_229, %c9_230, %c0_231, %c0_232] : memref<4x16x2x250xbf16, #tpu.memory_space<vmem>>, vector<1x1x2x250xbf16>
    %227 = vector.shape_cast %226 : vector<1x1x2x250xbf16> to vector<2x250xbf16>
    %cst_233 = arith.constant dense<0.000000e+00> : vector<2x20xf32>
    %228 = tpu.matmul %227, %0, %cst_233 {dimension_numbers = #tpu.dot_dimension_numbers<[1], [0], [0], [1], [0, 0, 1, 1], [], []>} : vector<2x250xbf16>, vector<250x20xbf16>, vector<2x20xf32> -> vector<2x20xf32>
    %229 = arith.maximumf %225, %228 : vector<2x20xf32>
    %c3_234 = arith.constant 3 : index
    %c9_235 = arith.constant 9 : index
    %c0_236 = arith.constant 0 : index
    %c0_237 = arith.constant 0 : index
    %230 = vector.load %arg1[%c3_234, %c9_235, %c0_236, %c0_237] : memref<4x16x2x250xbf16, #tpu.memory_space<vmem>>, vector<1x1x2x250xbf16>
    %231 = vector.shape_cast %230 : vector<1x1x2x250xbf16> to vector<2x250xbf16>
    %cst_238 = arith.constant dense<0.000000e+00> : vector<2x20xf32>
    %232 = tpu.matmul %231, %0, %cst_238 {dimension_numbers = #tpu.dot_dimension_numbers<[1], [0], [0], [1], [0, 0, 1, 1], [], []>} : vector<2x250xbf16>, vector<250x20xbf16>, vector<2x20xf32> -> vector<2x20xf32>
    %233 = arith.maximumf %229, %232 : vector<2x20xf32>
    %234 = vector.broadcast %1 : vector<1x20xf32> to vector<2x20xf32>
    %235 = arith.addf %233, %234 : vector<2x20xf32>
    %cst_239 = arith.constant 0.000000e+00 : f32
    %236 = vector.broadcast %cst_239 : f32 to vector<2x20xf32>
    %237 = arith.maximumf %235, %236 : vector<2x20xf32>
    %238 = arith.truncf %237 : vector<2x20xf32> to vector<2x20xbf16>
    %c9_240 = arith.constant 9 : index
    %c0_241 = arith.constant 0 : index
    %c0_242 = arith.constant 0 : index
    %239 = vector.load %arg4[%c9_240, %c0_241, %c0_242] : memref<16x20x50xbf16, #tpu.memory_space<vmem>>, vector<1x20x50xbf16>
    %240 = vector.shape_cast %239 : vector<1x20x50xbf16> to vector<20x50xbf16>
    %cst_243 = arith.constant dense<0.000000e+00> : vector<2x50xf32>
    %241 = tpu.matmul %238, %240, %cst_243 {dimension_numbers = #tpu.dot_dimension_numbers<[1], [0], [0], [1], [0, 0, 1, 1], [], []>} : vector<2x20xbf16>, vector<20x50xbf16>, vector<2x50xf32> -> vector<2x50xf32>
    %242 = arith.addf %218, %241 : vector<2x50xf32>
    %c0_244 = arith.constant 0 : index
    %c10 = arith.constant 10 : index
    %c0_245 = arith.constant 0 : index
    %c0_246 = arith.constant 0 : index
    %243 = vector.load %arg1[%c0_244, %c10, %c0_245, %c0_246] : memref<4x16x2x250xbf16, #tpu.memory_space<vmem>>, vector<1x1x2x250xbf16>
    %244 = vector.shape_cast %243 : vector<1x1x2x250xbf16> to vector<2x250xbf16>
    %cst_247 = arith.constant dense<0.000000e+00> : vector<2x20xf32>
    %245 = tpu.matmul %244, %0, %cst_247 {dimension_numbers = #tpu.dot_dimension_numbers<[1], [0], [0], [1], [0, 0, 1, 1], [], []>} : vector<2x250xbf16>, vector<250x20xbf16>, vector<2x20xf32> -> vector<2x20xf32>
    %c1_248 = arith.constant 1 : index
    %c10_249 = arith.constant 10 : index
    %c0_250 = arith.constant 0 : index
    %c0_251 = arith.constant 0 : index
    %246 = vector.load %arg1[%c1_248, %c10_249, %c0_250, %c0_251] : memref<4x16x2x250xbf16, #tpu.memory_space<vmem>>, vector<1x1x2x250xbf16>
    %247 = vector.shape_cast %246 : vector<1x1x2x250xbf16> to vector<2x250xbf16>
    %cst_252 = arith.constant dense<0.000000e+00> : vector<2x20xf32>
    %248 = tpu.matmul %247, %0, %cst_252 {dimension_numbers = #tpu.dot_dimension_numbers<[1], [0], [0], [1], [0, 0, 1, 1], [], []>} : vector<2x250xbf16>, vector<250x20xbf16>, vector<2x20xf32> -> vector<2x20xf32>
    %249 = arith.maximumf %245, %248 : vector<2x20xf32>
    %c2_253 = arith.constant 2 : index
    %c10_254 = arith.constant 10 : index
    %c0_255 = arith.constant 0 : index
    %c0_256 = arith.constant 0 : index
    %250 = vector.load %arg1[%c2_253, %c10_254, %c0_255, %c0_256] : memref<4x16x2x250xbf16, #tpu.memory_space<vmem>>, vector<1x1x2x250xbf16>
    %251 = vector.shape_cast %250 : vector<1x1x2x250xbf16> to vector<2x250xbf16>
    %cst_257 = arith.constant dense<0.000000e+00> : vector<2x20xf32>
    %252 = tpu.matmul %251, %0, %cst_257 {dimension_numbers = #tpu.dot_dimension_numbers<[1], [0], [0], [1], [0, 0, 1, 1], [], []>} : vector<2x250xbf16>, vector<250x20xbf16>, vector<2x20xf32> -> vector<2x20xf32>
    %253 = arith.maximumf %249, %252 : vector<2x20xf32>
    %c3_258 = arith.constant 3 : index
    %c10_259 = arith.constant 10 : index
    %c0_260 = arith.constant 0 : index
    %c0_261 = arith.constant 0 : index
    %254 = vector.load %arg1[%c3_258, %c10_259, %c0_260, %c0_261] : memref<4x16x2x250xbf16, #tpu.memory_space<vmem>>, vector<1x1x2x250xbf16>
    %255 = vector.shape_cast %254 : vector<1x1x2x250xbf16> to vector<2x250xbf16>
    %cst_262 = arith.constant dense<0.000000e+00> : vector<2x20xf32>
    %256 = tpu.matmul %255, %0, %cst_262 {dimension_numbers = #tpu.dot_dimension_numbers<[1], [0], [0], [1], [0, 0, 1, 1], [], []>} : vector<2x250xbf16>, vector<250x20xbf16>, vector<2x20xf32> -> vector<2x20xf32>
    %257 = arith.maximumf %253, %256 : vector<2x20xf32>
    %258 = vector.broadcast %1 : vector<1x20xf32> to vector<2x20xf32>
    %259 = arith.addf %257, %258 : vector<2x20xf32>
    %cst_263 = arith.constant 0.000000e+00 : f32
    %260 = vector.broadcast %cst_263 : f32 to vector<2x20xf32>
    %261 = arith.maximumf %259, %260 : vector<2x20xf32>
    %262 = arith.truncf %261 : vector<2x20xf32> to vector<2x20xbf16>
    %c10_264 = arith.constant 10 : index
    %c0_265 = arith.constant 0 : index
    %c0_266 = arith.constant 0 : index
    %263 = vector.load %arg4[%c10_264, %c0_265, %c0_266] : memref<16x20x50xbf16, #tpu.memory_space<vmem>>, vector<1x20x50xbf16>
    %264 = vector.shape_cast %263 : vector<1x20x50xbf16> to vector<20x50xbf16>
    %cst_267 = arith.constant dense<0.000000e+00> : vector<2x50xf32>
    %265 = tpu.matmul %262, %264, %cst_267 {dimension_numbers = #tpu.dot_dimension_numbers<[1], [0], [0], [1], [0, 0, 1, 1], [], []>} : vector<2x20xbf16>, vector<20x50xbf16>, vector<2x50xf32> -> vector<2x50xf32>
    %266 = arith.addf %242, %265 : vector<2x50xf32>
    %c0_268 = arith.constant 0 : index
    %c11 = arith.constant 11 : index
    %c0_269 = arith.constant 0 : index
    %c0_270 = arith.constant 0 : index
    %267 = vector.load %arg1[%c0_268, %c11, %c0_269, %c0_270] : memref<4x16x2x250xbf16, #tpu.memory_space<vmem>>, vector<1x1x2x250xbf16>
    %268 = vector.shape_cast %267 : vector<1x1x2x250xbf16> to vector<2x250xbf16>
    %cst_271 = arith.constant dense<0.000000e+00> : vector<2x20xf32>
    %269 = tpu.matmul %268, %0, %cst_271 {dimension_numbers = #tpu.dot_dimension_numbers<[1], [0], [0], [1], [0, 0, 1, 1], [], []>} : vector<2x250xbf16>, vector<250x20xbf16>, vector<2x20xf32> -> vector<2x20xf32>
    %c1_272 = arith.constant 1 : index
    %c11_273 = arith.constant 11 : index
    %c0_274 = arith.constant 0 : index
    %c0_275 = arith.constant 0 : index
    %270 = vector.load %arg1[%c1_272, %c11_273, %c0_274, %c0_275] : memref<4x16x2x250xbf16, #tpu.memory_space<vmem>>, vector<1x1x2x250xbf16>
    %271 = vector.shape_cast %270 : vector<1x1x2x250xbf16> to vector<2x250xbf16>
    %cst_276 = arith.constant dense<0.000000e+00> : vector<2x20xf32>
    %272 = tpu.matmul %271, %0, %cst_276 {dimension_numbers = #tpu.dot_dimension_numbers<[1], [0], [0], [1], [0, 0, 1, 1], [], []>} : vector<2x250xbf16>, vector<250x20xbf16>, vector<2x20xf32> -> vector<2x20xf32>
    %273 = arith.maximumf %269, %272 : vector<2x20xf32>
    %c2_277 = arith.constant 2 : index
    %c11_278 = arith.constant 11 : index
    %c0_279 = arith.constant 0 : index
    %c0_280 = arith.constant 0 : index
    %274 = vector.load %arg1[%c2_277, %c11_278, %c0_279, %c0_280] : memref<4x16x2x250xbf16, #tpu.memory_space<vmem>>, vector<1x1x2x250xbf16>
    %275 = vector.shape_cast %274 : vector<1x1x2x250xbf16> to vector<2x250xbf16>
    %cst_281 = arith.constant dense<0.000000e+00> : vector<2x20xf32>
    %276 = tpu.matmul %275, %0, %cst_281 {dimension_numbers = #tpu.dot_dimension_numbers<[1], [0], [0], [1], [0, 0, 1, 1], [], []>} : vector<2x250xbf16>, vector<250x20xbf16>, vector<2x20xf32> -> vector<2x20xf32>
    %277 = arith.maximumf %273, %276 : vector<2x20xf32>
    %c3_282 = arith.constant 3 : index
    %c11_283 = arith.constant 11 : index
    %c0_284 = arith.constant 0 : index
    %c0_285 = arith.constant 0 : index
    %278 = vector.load %arg1[%c3_282, %c11_283, %c0_284, %c0_285] : memref<4x16x2x250xbf16, #tpu.memory_space<vmem>>, vector<1x1x2x250xbf16>
    %279 = vector.shape_cast %278 : vector<1x1x2x250xbf16> to vector<2x250xbf16>
    %cst_286 = arith.constant dense<0.000000e+00> : vector<2x20xf32>
    %280 = tpu.matmul %279, %0, %cst_286 {dimension_numbers = #tpu.dot_dimension_numbers<[1], [0], [0], [1], [0, 0, 1, 1], [], []>} : vector<2x250xbf16>, vector<250x20xbf16>, vector<2x20xf32> -> vector<2x20xf32>
    %281 = arith.maximumf %277, %280 : vector<2x20xf32>
    %282 = vector.broadcast %1 : vector<1x20xf32> to vector<2x20xf32>
    %283 = arith.addf %281, %282 : vector<2x20xf32>
    %cst_287 = arith.constant 0.000000e+00 : f32
    %284 = vector.broadcast %cst_287 : f32 to vector<2x20xf32>
    %285 = arith.maximumf %283, %284 : vector<2x20xf32>
    %286 = arith.truncf %285 : vector<2x20xf32> to vector<2x20xbf16>
    %c11_288 = arith.constant 11 : index
    %c0_289 = arith.constant 0 : index
    %c0_290 = arith.constant 0 : index
    %287 = vector.load %arg4[%c11_288, %c0_289, %c0_290] : memref<16x20x50xbf16, #tpu.memory_space<vmem>>, vector<1x20x50xbf16>
    %288 = vector.shape_cast %287 : vector<1x20x50xbf16> to vector<20x50xbf16>
    %cst_291 = arith.constant dense<0.000000e+00> : vector<2x50xf32>
    %289 = tpu.matmul %286, %288, %cst_291 {dimension_numbers = #tpu.dot_dimension_numbers<[1], [0], [0], [1], [0, 0, 1, 1], [], []>} : vector<2x20xbf16>, vector<20x50xbf16>, vector<2x50xf32> -> vector<2x50xf32>
    %290 = arith.addf %266, %289 : vector<2x50xf32>
    %c0_292 = arith.constant 0 : index
    %c12 = arith.constant 12 : index
    %c0_293 = arith.constant 0 : index
    %c0_294 = arith.constant 0 : index
    %291 = vector.load %arg1[%c0_292, %c12, %c0_293, %c0_294] : memref<4x16x2x250xbf16, #tpu.memory_space<vmem>>, vector<1x1x2x250xbf16>
    %292 = vector.shape_cast %291 : vector<1x1x2x250xbf16> to vector<2x250xbf16>
    %cst_295 = arith.constant dense<0.000000e+00> : vector<2x20xf32>
    %293 = tpu.matmul %292, %0, %cst_295 {dimension_numbers = #tpu.dot_dimension_numbers<[1], [0], [0], [1], [0, 0, 1, 1], [], []>} : vector<2x250xbf16>, vector<250x20xbf16>, vector<2x20xf32> -> vector<2x20xf32>
    %c1_296 = arith.constant 1 : index
    %c12_297 = arith.constant 12 : index
    %c0_298 = arith.constant 0 : index
    %c0_299 = arith.constant 0 : index
    %294 = vector.load %arg1[%c1_296, %c12_297, %c0_298, %c0_299] : memref<4x16x2x250xbf16, #tpu.memory_space<vmem>>, vector<1x1x2x250xbf16>
    %295 = vector.shape_cast %294 : vector<1x1x2x250xbf16> to vector<2x250xbf16>
    %cst_300 = arith.constant dense<0.000000e+00> : vector<2x20xf32>
    %296 = tpu.matmul %295, %0, %cst_300 {dimension_numbers = #tpu.dot_dimension_numbers<[1], [0], [0], [1], [0, 0, 1, 1], [], []>} : vector<2x250xbf16>, vector<250x20xbf16>, vector<2x20xf32> -> vector<2x20xf32>
    %297 = arith.maximumf %293, %296 : vector<2x20xf32>
    %c2_301 = arith.constant 2 : index
    %c12_302 = arith.constant 12 : index
    %c0_303 = arith.constant 0 : index
    %c0_304 = arith.constant 0 : index
    %298 = vector.load %arg1[%c2_301, %c12_302, %c0_303, %c0_304] : memref<4x16x2x250xbf16, #tpu.memory_space<vmem>>, vector<1x1x2x250xbf16>
    %299 = vector.shape_cast %298 : vector<1x1x2x250xbf16> to vector<2x250xbf16>
    %cst_305 = arith.constant dense<0.000000e+00> : vector<2x20xf32>
    %300 = tpu.matmul %299, %0, %cst_305 {dimension_numbers = #tpu.dot_dimension_numbers<[1], [0], [0], [1], [0, 0, 1, 1], [], []>} : vector<2x250xbf16>, vector<250x20xbf16>, vector<2x20xf32> -> vector<2x20xf32>
    %301 = arith.maximumf %297, %300 : vector<2x20xf32>
    %c3_306 = arith.constant 3 : index
    %c12_307 = arith.constant 12 : index
    %c0_308 = arith.constant 0 : index
    %c0_309 = arith.constant 0 : index
    %302 = vector.load %arg1[%c3_306, %c12_307, %c0_308, %c0_309] : memref<4x16x2x250xbf16, #tpu.memory_space<vmem>>, vector<1x1x2x250xbf16>
    %303 = vector.shape_cast %302 : vector<1x1x2x250xbf16> to vector<2x250xbf16>
    %cst_310 = arith.constant dense<0.000000e+00> : vector<2x20xf32>
    %304 = tpu.matmul %303, %0, %cst_310 {dimension_numbers = #tpu.dot_dimension_numbers<[1], [0], [0], [1], [0, 0, 1, 1], [], []>} : vector<2x250xbf16>, vector<250x20xbf16>, vector<2x20xf32> -> vector<2x20xf32>
    %305 = arith.maximumf %301, %304 : vector<2x20xf32>
    %306 = vector.broadcast %1 : vector<1x20xf32> to vector<2x20xf32>
    %307 = arith.addf %305, %306 : vector<2x20xf32>
    %cst_311 = arith.constant 0.000000e+00 : f32
    %308 = vector.broadcast %cst_311 : f32 to vector<2x20xf32>
    %309 = arith.maximumf %307, %308 : vector<2x20xf32>
    %310 = arith.truncf %309 : vector<2x20xf32> to vector<2x20xbf16>
    %c12_312 = arith.constant 12 : index
    %c0_313 = arith.constant 0 : index
    %c0_314 = arith.constant 0 : index
    %311 = vector.load %arg4[%c12_312, %c0_313, %c0_314] : memref<16x20x50xbf16, #tpu.memory_space<vmem>>, vector<1x20x50xbf16>
    %312 = vector.shape_cast %311 : vector<1x20x50xbf16> to vector<20x50xbf16>
    %cst_315 = arith.constant dense<0.000000e+00> : vector<2x50xf32>
    %313 = tpu.matmul %310, %312, %cst_315 {dimension_numbers = #tpu.dot_dimension_numbers<[1], [0], [0], [1], [0, 0, 1, 1], [], []>} : vector<2x20xbf16>, vector<20x50xbf16>, vector<2x50xf32> -> vector<2x50xf32>
    %314 = arith.addf %290, %313 : vector<2x50xf32>
    %c0_316 = arith.constant 0 : index
    %c13 = arith.constant 13 : index
    %c0_317 = arith.constant 0 : index
    %c0_318 = arith.constant 0 : index
    %315 = vector.load %arg1[%c0_316, %c13, %c0_317, %c0_318] : memref<4x16x2x250xbf16, #tpu.memory_space<vmem>>, vector<1x1x2x250xbf16>
    %316 = vector.shape_cast %315 : vector<1x1x2x250xbf16> to vector<2x250xbf16>
    %cst_319 = arith.constant dense<0.000000e+00> : vector<2x20xf32>
    %317 = tpu.matmul %316, %0, %cst_319 {dimension_numbers = #tpu.dot_dimension_numbers<[1], [0], [0], [1], [0, 0, 1, 1], [], []>} : vector<2x250xbf16>, vector<250x20xbf16>, vector<2x20xf32> -> vector<2x20xf32>
    %c1_320 = arith.constant 1 : index
    %c13_321 = arith.constant 13 : index
    %c0_322 = arith.constant 0 : index
    %c0_323 = arith.constant 0 : index
    %318 = vector.load %arg1[%c1_320, %c13_321, %c0_322, %c0_323] : memref<4x16x2x250xbf16, #tpu.memory_space<vmem>>, vector<1x1x2x250xbf16>
    %319 = vector.shape_cast %318 : vector<1x1x2x250xbf16> to vector<2x250xbf16>
    %cst_324 = arith.constant dense<0.000000e+00> : vector<2x20xf32>
    %320 = tpu.matmul %319, %0, %cst_324 {dimension_numbers = #tpu.dot_dimension_numbers<[1], [0], [0], [1], [0, 0, 1, 1], [], []>} : vector<2x250xbf16>, vector<250x20xbf16>, vector<2x20xf32> -> vector<2x20xf32>
    %321 = arith.maximumf %317, %320 : vector<2x20xf32>
    %c2_325 = arith.constant 2 : index
    %c13_326 = arith.constant 13 : index
    %c0_327 = arith.constant 0 : index
    %c0_328 = arith.constant 0 : index
    %322 = vector.load %arg1[%c2_325, %c13_326, %c0_327, %c0_328] : memref<4x16x2x250xbf16, #tpu.memory_space<vmem>>, vector<1x1x2x250xbf16>
    %323 = vector.shape_cast %322 : vector<1x1x2x250xbf16> to vector<2x250xbf16>
    %cst_329 = arith.constant dense<0.000000e+00> : vector<2x20xf32>
    %324 = tpu.matmul %323, %0, %cst_329 {dimension_numbers = #tpu.dot_dimension_numbers<[1], [0], [0], [1], [0, 0, 1, 1], [], []>} : vector<2x250xbf16>, vector<250x20xbf16>, vector<2x20xf32> -> vector<2x20xf32>
    %325 = arith.maximumf %321, %324 : vector<2x20xf32>
    %c3_330 = arith.constant 3 : index
    %c13_331 = arith.constant 13 : index
    %c0_332 = arith.constant 0 : index
    %c0_333 = arith.constant 0 : index
    %326 = vector.load %arg1[%c3_330, %c13_331, %c0_332, %c0_333] : memref<4x16x2x250xbf16, #tpu.memory_space<vmem>>, vector<1x1x2x250xbf16>
    %327 = vector.shape_cast %326 : vector<1x1x2x250xbf16> to vector<2x250xbf16>
    %cst_334 = arith.constant dense<0.000000e+00> : vector<2x20xf32>
    %328 = tpu.matmul %327, %0, %cst_334 {dimension_numbers = #tpu.dot_dimension_numbers<[1], [0], [0], [1], [0, 0, 1, 1], [], []>} : vector<2x250xbf16>, vector<250x20xbf16>, vector<2x20xf32> -> vector<2x20xf32>
    %329 = arith.maximumf %325, %328 : vector<2x20xf32>
    %330 = vector.broadcast %1 : vector<1x20xf32> to vector<2x20xf32>
    %331 = arith.addf %329, %330 : vector<2x20xf32>
    %cst_335 = arith.constant 0.000000e+00 : f32
    %332 = vector.broadcast %cst_335 : f32 to vector<2x20xf32>
    %333 = arith.maximumf %331, %332 : vector<2x20xf32>
    %334 = arith.truncf %333 : vector<2x20xf32> to vector<2x20xbf16>
    %c13_336 = arith.constant 13 : index
    %c0_337 = arith.constant 0 : index
    %c0_338 = arith.constant 0 : index
    %335 = vector.load %arg4[%c13_336, %c0_337, %c0_338] : memref<16x20x50xbf16, #tpu.memory_space<vmem>>, vector<1x20x50xbf16>
    %336 = vector.shape_cast %335 : vector<1x20x50xbf16> to vector<20x50xbf16>
    %cst_339 = arith.constant dense<0.000000e+00> : vector<2x50xf32>
    %337 = tpu.matmul %334, %336, %cst_339 {dimension_numbers = #tpu.dot_dimension_numbers<[1], [0], [0], [1], [0, 0, 1, 1], [], []>} : vector<2x20xbf16>, vector<20x50xbf16>, vector<2x50xf32> -> vector<2x50xf32>
    %338 = arith.addf %314, %337 : vector<2x50xf32>
    %c0_340 = arith.constant 0 : index
    %c14 = arith.constant 14 : index
    %c0_341 = arith.constant 0 : index
    %c0_342 = arith.constant 0 : index
    %339 = vector.load %arg1[%c0_340, %c14, %c0_341, %c0_342] : memref<4x16x2x250xbf16, #tpu.memory_space<vmem>>, vector<1x1x2x250xbf16>
    %340 = vector.shape_cast %339 : vector<1x1x2x250xbf16> to vector<2x250xbf16>
    %cst_343 = arith.constant dense<0.000000e+00> : vector<2x20xf32>
    %341 = tpu.matmul %340, %0, %cst_343 {dimension_numbers = #tpu.dot_dimension_numbers<[1], [0], [0], [1], [0, 0, 1, 1], [], []>} : vector<2x250xbf16>, vector<250x20xbf16>, vector<2x20xf32> -> vector<2x20xf32>
    %c1_344 = arith.constant 1 : index
    %c14_345 = arith.constant 14 : index
    %c0_346 = arith.constant 0 : index
    %c0_347 = arith.constant 0 : index
    %342 = vector.load %arg1[%c1_344, %c14_345, %c0_346, %c0_347] : memref<4x16x2x250xbf16, #tpu.memory_space<vmem>>, vector<1x1x2x250xbf16>
    %343 = vector.shape_cast %342 : vector<1x1x2x250xbf16> to vector<2x250xbf16>
    %cst_348 = arith.constant dense<0.000000e+00> : vector<2x20xf32>
    %344 = tpu.matmul %343, %0, %cst_348 {dimension_numbers = #tpu.dot_dimension_numbers<[1], [0], [0], [1], [0, 0, 1, 1], [], []>} : vector<2x250xbf16>, vector<250x20xbf16>, vector<2x20xf32> -> vector<2x20xf32>
    %345 = arith.maximumf %341, %344 : vector<2x20xf32>
    %c2_349 = arith.constant 2 : index
    %c14_350 = arith.constant 14 : index
    %c0_351 = arith.constant 0 : index
    %c0_352 = arith.constant 0 : index
    %346 = vector.load %arg1[%c2_349, %c14_350, %c0_351, %c0_352] : memref<4x16x2x250xbf16, #tpu.memory_space<vmem>>, vector<1x1x2x250xbf16>
    %347 = vector.shape_cast %346 : vector<1x1x2x250xbf16> to vector<2x250xbf16>
    %cst_353 = arith.constant dense<0.000000e+00> : vector<2x20xf32>
    %348 = tpu.matmul %347, %0, %cst_353 {dimension_numbers = #tpu.dot_dimension_numbers<[1], [0], [0], [1], [0, 0, 1, 1], [], []>} : vector<2x250xbf16>, vector<250x20xbf16>, vector<2x20xf32> -> vector<2x20xf32>
    %349 = arith.maximumf %345, %348 : vector<2x20xf32>
    %c3_354 = arith.constant 3 : index
    %c14_355 = arith.constant 14 : index
    %c0_356 = arith.constant 0 : index
    %c0_357 = arith.constant 0 : index
    %350 = vector.load %arg1[%c3_354, %c14_355, %c0_356, %c0_357] : memref<4x16x2x250xbf16, #tpu.memory_space<vmem>>, vector<1x1x2x250xbf16>
    %351 = vector.shape_cast %350 : vector<1x1x2x250xbf16> to vector<2x250xbf16>
    %cst_358 = arith.constant dense<0.000000e+00> : vector<2x20xf32>
    %352 = tpu.matmul %351, %0, %cst_358 {dimension_numbers = #tpu.dot_dimension_numbers<[1], [0], [0], [1], [0, 0, 1, 1], [], []>} : vector<2x250xbf16>, vector<250x20xbf16>, vector<2x20xf32> -> vector<2x20xf32>
    %353 = arith.maximumf %349, %352 : vector<2x20xf32>
    %354 = vector.broadcast %1 : vector<1x20xf32> to vector<2x20xf32>
    %355 = arith.addf %353, %354 : vector<2x20xf32>
    %cst_359 = arith.constant 0.000000e+00 : f32
    %356 = vector.broadcast %cst_359 : f32 to vector<2x20xf32>
    %357 = arith.maximumf %355, %356 : vector<2x20xf32>
    %358 = arith.truncf %357 : vector<2x20xf32> to vector<2x20xbf16>
    %c14_360 = arith.constant 14 : index
    %c0_361 = arith.constant 0 : index
    %c0_362 = arith.constant 0 : index
    %359 = vector.load %arg4[%c14_360, %c0_361, %c0_362] : memref<16x20x50xbf16, #tpu.memory_space<vmem>>, vector<1x20x50xbf16>
    %360 = vector.shape_cast %359 : vector<1x20x50xbf16> to vector<20x50xbf16>
    %cst_363 = arith.constant dense<0.000000e+00> : vector<2x50xf32>
    %361 = tpu.matmul %358, %360, %cst_363 {dimension_numbers = #tpu.dot_dimension_numbers<[1], [0], [0], [1], [0, 0, 1, 1], [], []>} : vector<2x20xbf16>, vector<20x50xbf16>, vector<2x50xf32> -> vector<2x50xf32>
    %362 = arith.addf %338, %361 : vector<2x50xf32>
    %c0_364 = arith.constant 0 : index
    %c15 = arith.constant 15 : index
    %c0_365 = arith.constant 0 : index
    %c0_366 = arith.constant 0 : index
    %363 = vector.load %arg1[%c0_364, %c15, %c0_365, %c0_366] : memref<4x16x2x250xbf16, #tpu.memory_space<vmem>>, vector<1x1x2x250xbf16>
    %364 = vector.shape_cast %363 : vector<1x1x2x250xbf16> to vector<2x250xbf16>
    %cst_367 = arith.constant dense<0.000000e+00> : vector<2x20xf32>
    %365 = tpu.matmul %364, %0, %cst_367 {dimension_numbers = #tpu.dot_dimension_numbers<[1], [0], [0], [1], [0, 0, 1, 1], [], []>} : vector<2x250xbf16>, vector<250x20xbf16>, vector<2x20xf32> -> vector<2x20xf32>
    %c1_368 = arith.constant 1 : index
    %c15_369 = arith.constant 15 : index
    %c0_370 = arith.constant 0 : index
    %c0_371 = arith.constant 0 : index
    %366 = vector.load %arg1[%c1_368, %c15_369, %c0_370, %c0_371] : memref<4x16x2x250xbf16, #tpu.memory_space<vmem>>, vector<1x1x2x250xbf16>
    %367 = vector.shape_cast %366 : vector<1x1x2x250xbf16> to vector<2x250xbf16>
    %cst_372 = arith.constant dense<0.000000e+00> : vector<2x20xf32>
    %368 = tpu.matmul %367, %0, %cst_372 {dimension_numbers = #tpu.dot_dimension_numbers<[1], [0], [0], [1], [0, 0, 1, 1], [], []>} : vector<2x250xbf16>, vector<250x20xbf16>, vector<2x20xf32> -> vector<2x20xf32>
    %369 = arith.maximumf %365, %368 : vector<2x20xf32>
    %c2_373 = arith.constant 2 : index
    %c15_374 = arith.constant 15 : index
    %c0_375 = arith.constant 0 : index
    %c0_376 = arith.constant 0 : index
    %370 = vector.load %arg1[%c2_373, %c15_374, %c0_375, %c0_376] : memref<4x16x2x250xbf16, #tpu.memory_space<vmem>>, vector<1x1x2x250xbf16>
    %371 = vector.shape_cast %370 : vector<1x1x2x250xbf16> to vector<2x250xbf16>
    %cst_377 = arith.constant dense<0.000000e+00> : vector<2x20xf32>
    %372 = tpu.matmul %371, %0, %cst_377 {dimension_numbers = #tpu.dot_dimension_numbers<[1], [0], [0], [1], [0, 0, 1, 1], [], []>} : vector<2x250xbf16>, vector<250x20xbf16>, vector<2x20xf32> -> vector<2x20xf32>
    %373 = arith.maximumf %369, %372 : vector<2x20xf32>
    %c3_378 = arith.constant 3 : index
    %c15_379 = arith.constant 15 : index
    %c0_380 = arith.constant 0 : index
    %c0_381 = arith.constant 0 : index
    %374 = vector.load %arg1[%c3_378, %c15_379, %c0_380, %c0_381] : memref<4x16x2x250xbf16, #tpu.memory_space<vmem>>, vector<1x1x2x250xbf16>
    %375 = vector.shape_cast %374 : vector<1x1x2x250xbf16> to vector<2x250xbf16>
    %cst_382 = arith.constant dense<0.000000e+00> : vector<2x20xf32>
    %376 = tpu.matmul %375, %0, %cst_382 {dimension_numbers = #tpu.dot_dimension_numbers<[1], [0], [0], [1], [0, 0, 1, 1], [], []>} : vector<2x250xbf16>, vector<250x20xbf16>, vector<2x20xf32> -> vector<2x20xf32>
    %377 = arith.maximumf %373, %376 : vector<2x20xf32>
    %378 = vector.broadcast %1 : vector<1x20xf32> to vector<2x20xf32>
    %379 = arith.addf %377, %378 : vector<2x20xf32>
    %cst_383 = arith.constant 0.000000e+00 : f32
    %380 = vector.broadcast %cst_383 : f32 to vector<2x20xf32>
    %381 = arith.maximumf %379, %380 : vector<2x20xf32>
    %382 = arith.truncf %381 : vector<2x20xf32> to vector<2x20xbf16>
    %c15_384 = arith.constant 15 : index
    %c0_385 = arith.constant 0 : index
    %c0_386 = arith.constant 0 : index
    %383 = vector.load %arg4[%c15_384, %c0_385, %c0_386] : memref<16x20x50xbf16, #tpu.memory_space<vmem>>, vector<1x20x50xbf16>
    %384 = vector.shape_cast %383 : vector<1x20x50xbf16> to vector<20x50xbf16>
    %cst_387 = arith.constant dense<0.000000e+00> : vector<2x50xf32>
    %385 = tpu.matmul %382, %384, %cst_387 {dimension_numbers = #tpu.dot_dimension_numbers<[1], [0], [0], [1], [0, 0, 1, 1], [], []>} : vector<2x20xbf16>, vector<20x50xbf16>, vector<2x50xf32> -> vector<2x50xf32>
    %386 = arith.addf %362, %385 : vector<2x50xf32>
    %c0_388 = arith.constant 0 : index
    %c0_389 = arith.constant 0 : index
    %387 = vector.load %arg5[%c0_388, %c0_389] : memref<1x50xf32, #tpu.memory_space<vmem>>, vector<1x50xf32>
    %388 = vector.broadcast %387 : vector<1x50xf32> to vector<2x50xf32>
    %389 = arith.addf %386, %388 : vector<2x50xf32>
    %cst_390 = arith.constant 0.000000e+00 : f32
    %390 = vector.broadcast %cst_390 : f32 to vector<2x50xf32>
    %391 = arith.maximumf %389, %390 : vector<2x50xf32>
    %392 = arith.truncf %391 : vector<2x50xf32> to vector<2x50xbf16>
    %c0_391 = arith.constant 0 : index
    %c0_392 = arith.constant 0 : index
    %393 = vector.load %arg6[%c0_391, %c0_392] : memref<50x10xbf16, #tpu.memory_space<vmem>>, vector<50x10xbf16>
    %cst_393 = arith.constant dense<0.000000e+00> : vector<2x10xf32>
    %394 = tpu.matmul %392, %393, %cst_393 {dimension_numbers = #tpu.dot_dimension_numbers<[1], [0], [0], [1], [0, 0, 1, 1], [], []>} : vector<2x50xbf16>, vector<50x10xbf16>, vector<2x10xf32> -> vector<2x10xf32>
    %c0_394 = arith.constant 0 : index
    %c0_395 = arith.constant 0 : index
    %395 = vector.load %arg7[%c0_394, %c0_395] : memref<1x10xf32, #tpu.memory_space<vmem>>, vector<1x10xf32>
    %396 = vector.broadcast %395 : vector<1x10xf32> to vector<2x10xf32>
    %397 = arith.addf %394, %396 : vector<2x10xf32>
    %cst_396 = arith.constant dense<0xFF800000> : vector<2xf32>
    %398 = vector.multi_reduction <maximumf>, %397, %cst_396 [1] : vector<2x10xf32> to vector<2xf32>
    %399 = vector.shape_cast %398 : vector<2xf32> to vector<2x1xf32>
    %400 = vector.broadcast %399 : vector<2x1xf32> to vector<2x10xf32>
    %401 = arith.subf %397, %400 : vector<2x10xf32>
    %402 = math.exp %401 : vector<2x10xf32>
    %cst_397 = arith.constant dense<0.000000e+00> : vector<2xf32>
    %403 = vector.multi_reduction <add>, %402, %cst_397 [1] : vector<2x10xf32> to vector<2xf32>
    %404 = vector.shape_cast %403 : vector<2xf32> to vector<2x1xf32>
    %405 = math.log %404 : vector<2x1xf32>
    %406 = vector.broadcast %405 : vector<2x1xf32> to vector<2x10xf32>
    %407 = arith.subf %401, %406 : vector<2x10xf32>
    %c0_398 = arith.constant 0 : index
    %c0_399 = arith.constant 0 : index
    %408 = vector.load %arg8[%c0_398, %c0_399] : memref<2x10xf32, #tpu.memory_space<vmem>>, vector<2x10xf32>
    tpu.vector_store %arg8[%c0_398, %c0_399], %407 {strides = array<i32>} : memref<2x10xf32, #tpu.memory_space<vmem>>, vector<2x10xf32>,
    return
  }
  func.func @transform_0(%arg0: i32) -> (i32, i32, i32, i32) {
    %c0_i32 = arith.constant 0 : i32
    %c0_i32_0 = arith.constant 0 : i32
    %c0_i32_1 = arith.constant 0 : i32
    %c0_i32_2 = arith.constant 0 : i32
    return %c0_i32, %c0_i32_0, %arg0, %c0_i32_1 : i32, i32, i32, i32
  }
  func.func @transform_1(%arg0: i32) -> (i32, i32) {
    %c0_i32 = arith.constant 0 : i32
    %c0_i32_0 = arith.constant 0 : i32
    %c0_i32_1 = arith.constant 0 : i32
    return %c0_i32, %c0_i32_0 : i32, i32
  }
  func.func @transform_2(%arg0: i32) -> (i32, i32) {
    %c0_i32 = arith.constant 0 : i32
    %c0_i32_0 = arith.constant 0 : i32
    %c0_i32_1 = arith.constant 0 : i32
    return %c0_i32, %c0_i32_0 : i32, i32
  }
  func.func @transform_3(%arg0: i32) -> (i32, i32, i32) {
    %c0_i32 = arith.constant 0 : i32
    %c0_i32_0 = arith.constant 0 : i32
    %c0_i32_1 = arith.constant 0 : i32
    %c0_i32_2 = arith.constant 0 : i32
    return %c0_i32, %c0_i32_0, %c0_i32_1 : i32, i32, i32
  }
  func.func @transform_4(%arg0: i32) -> (i32, i32) {
    %c0_i32 = arith.constant 0 : i32
    %c0_i32_0 = arith.constant 0 : i32
    %c0_i32_1 = arith.constant 0 : i32
    return %c0_i32, %c0_i32_0 : i32, i32
  }
  func.func @transform_5(%arg0: i32) -> (i32, i32) {
    %c0_i32 = arith.constant 0 : i32
    %c0_i32_0 = arith.constant 0 : i32
    %c0_i32_1 = arith.constant 0 : i32
    return %c0_i32, %c0_i32_0 : i32, i32
  }
  func.func @transform_6(%arg0: i32) -> (i32, i32) {
    %c0_i32 = arith.constant 0 : i32
    %c0_i32_0 = arith.constant 0 : i32
    %c0_i32_1 = arith.constant 0 : i32
    return %c0_i32, %c0_i32_0 : i32, i32
  }
  func.func @transform_7(%arg0: i32) -> (i32, i32) {
    %c0_i32 = arith.constant 0 : i32
    %c0_i32_0 = arith.constant 0 : i32
    return %arg0, %c0_i32 : i32, i32
  }
}

</mosaic_0001>

<llo_original>
// kernel: net_forward.2
$region0: #{net_forward.2}
  #allocation0 [shape = 'u32[]', space=smem, size = 0x4, offset = 0x4, fixed_abs, tag = 'smem constant byte address 0x4 - core index']
  #allocation1 [shape = 'u32[72,128]{1,0:T(1,128)}', space=vmem, size = 0x9000, scoped, tag = 'internal scratch']
  %s0 = inlined_call_operand.vmem [shape: bf16[4,25,288], index: 0, kind: input, shape index: {}]
  %s1 = inlined_call_operand.vmem [shape: bf16[10,25], index: 1, kind: input, shape index: {}]
  %s2 = inlined_call_operand.vmem [shape: f32[10,1], index: 2, kind: input, shape index: {}]
  %s3 = inlined_call_operand.vmem [shape: bf16[10,288], index: 3, kind: output, shape index: {}]
  %s4 = sld [smem:[#allocation0]]
  $region22: #{net_forward.2} parent=0
    _
  %s6 = ssub.s32 1, %s4
  %s7 = scalar_select 0, %s6, %s4
  // Predicated region
  $region2: #{net_forward.2} parent=0 // pred_check
    _
  $region3: #{net_forward.2} parent=0 // pred_check_branch
    %9 = sbr.rel (0) target = $region5
  $region4: #{net_forward.2} parent=0 // pred_region
    _
  $region5: #{net_forward.2} parent=0 // pred_fallthru
    _
  // Predicated region
  $region6: #{net_forward.2} parent=0 // pred_check
    _
  $region7: #{net_forward.2} parent=0 // pred_check_branch
    %11 = sbr.rel (0) target = $region9
  $region8: #{net_forward.2} parent=0 // pred_region
    _
  $region9: #{net_forward.2} parent=0 // pred_fallthru
    _
  // Predicated region
  $region10: #{net_forward.2} parent=0 // pred_check
    _
  $region11: #{net_forward.2} parent=0 // pred_check_branch
    %13 = sbr.rel (0) target = $region13
  $region12: #{net_forward.2} parent=0 // pred_region
    _
  $region13: #{net_forward.2} parent=0 // pred_fallthru
    _
  %v15 = vld [vmem:[%s1] sm:$0xf]
  %v16 = vld [vmem:[%s1 + $0x4] sm:$0x1]
  %v17 = vld [vmem:[%s0] sm:$0xff]
  %v18 = vld [vmem:[%s0 + $0x8] sm:$0xf]
  %v19 = vld [vmem:[%s0 + $0xc] sm:$0xff]
  %v20 = vld [vmem:[%s0 + $0x14] sm:$0xf]
  %v21 = vld [vmem:[%s0 + $0x18] sm:$0xff]
  %v22 = vld [vmem:[%s0 + $0x20] sm:$0xf]
  %v23 = vld [vmem:[%s0 + $0x24] sm:$0x11]
  %v24 = vld [vmem:[%s0 + $0x2c] sm:$0x1]
  %v27 = vunpack.c.l.b16 %v15
  %v28 = vunpack.c.l.b16 %v16
  %v29 = vpack.c.b16 %v28, %v27
  %v38 = vunpack.c.l.b16 %v17
  %v39 = vunpack.c.h.b16 %v17
  %v40 = vunpack.c.l.b16 %v18
  %v41 = vunpack.c.l.b16 %v19
  %v42 = vunpack.c.h.b16 %v19
  %v43 = vunpack.c.l.b16 %v20
  %v44 = vunpack.c.l.b16 %v21
  %v45 = vunpack.c.h.b16 %v21
  %v46 = vunpack.c.l.b16 %v22
  %v47 = vunpack.c.l.b16 %v23
  %v48 = vunpack.c.h.b16 %v23
  %v49 = vunpack.c.l.b16 %v24
  %v50 = vpack.c.b16 %v41, %v38
  %v51 = vpack.c.b16 %v42, %v39
  %v52 = vpack.c.b16 %v43, %v40
  %v53 = vpack.c.b16 %v47, %v44
  %v54 = vpack.c.b16 %v48, %v45
  %v55 = vpack.c.b16 %v49, %v46
  %vm59 = vcmask 203776
  %v61 = vsel %vm59, %v29, 0
  %vm63 = vcmask 1043456
  %vm64 = vcmask 1044480
  %v65 = vsel %vm63, 4294967295, 65535
  %v66 = vsel %vm64, %v65, 0
  %v68 = vand.u32 %v53, %v66
  %v71 = vand.u32 %v54, %v66
  %v74 = vand.u32 %v55, %v66
  %76 = vmatpush.bf16.msra.mxu0 0
  %77 = vmatpush.bf16.msra.mxu0 0
  %78 = vmatpush.bf16.msra.mxu0 0
  %79 = vmatpush.bf16.msra.mxu0 0
  %80 = vmatpush.bf16.msra.mxu0 0
  %81 = vmatpush.bf16.msra.mxu0 0
  %82 = vmatpush.bf16.msra.mxu0 %v68
  %83 = vmatpush.bf16.msra.mxu0 %v50
  %84 = vmatmul.bf16.gmra.mxu0 %v61
  %v85 = vpop.f32.mrf.mxu0
  %v86 = vadd.f32 0.0, %v85
  %v87 = vpop.f32.mrf.mxu0
  %v88 = vadd.f32 0.0, %v87
  %89 = vdwg.mxu0
  %90 = vmatpush.bf16.msra.mxu0 0
  %91 = vmatpush.bf16.msra.mxu0 0
  %92 = vmatpush.bf16.msra.mxu0 0
  %93 = vmatpush.bf16.msra.mxu0 0
  %94 = vmatpush.bf16.msra.mxu0 0
  %95 = vmatpush.bf16.msra.mxu0 0
  %96 = vmatpush.bf16.msra.mxu0 %v71
  %97 = vmatpush.bf16.msra.mxu0 %v51
  %98 = vmatmul.bf16.gmra.mxu0 %v61
  %v99 = vpop.f32.mrf.mxu0
  %v100 = vadd.f32 0.0, %v99
  %v101 = vpop.f32.mrf.mxu0
  %v102 = vadd.f32 0.0, %v101
  %103 = vdwg.mxu0
  %104 = vmatpush.bf16.msra.mxu0 0
  %105 = vmatpush.bf16.msra.mxu0 0
  %106 = vmatpush.bf16.msra.mxu0 0
  %107 = vmatpush.bf16.msra.mxu0 0
  %108 = vmatpush.bf16.msra.mxu0 0
  %109 = vmatpush.bf16.msra.mxu0 0
  %110 = vmatpush.bf16.msra.mxu0 %v74
  %111 = vmatpush.bf16.msra.mxu0 %v52
  %112 = vmatmul.bf16.gmra.mxu0 %v61
  %v113 = vpop.f32.mrf.mxu0
  %v114 = vadd.f32 0.0, %v113
  %v115 = vpop.f32.mrf.mxu0
  %v116 = vadd.f32 0.0, %v115
  %117 = vdwg.mxu0
  %s118 = scalar_lea.vmem %s0, 48
  %v119 = vld [vmem:[%s118] sm:$0xff]
  %v120 = vld [vmem:[%s118 + $0x8] sm:$0xf]
  %v121 = vld [vmem:[%s118 + $0xc] sm:$0xff]
  %v122 = vld [vmem:[%s118 + $0x14] sm:$0xf]
  %v123 = vld [vmem:[%s118 + $0x18] sm:$0xff]
  %v124 = vld [vmem:[%s118 + $0x20] sm:$0xf]
  %v125 = vld [vmem:[%s118 + $0x24] sm:$0x11]
  %v126 = vld [vmem:[%s118 + $0x2c] sm:$0x1]
  %v135 = vunpack.c.l.b16 %v119
  %v136 = vunpack.c.h.b16 %v119
  %v137 = vunpack.c.l.b16 %v120
  %v138 = vunpack.c.l.b16 %v121
  %v139 = vunpack.c.h.b16 %v121
  %v140 = vunpack.c.l.b16 %v122
  %v141 = vunpack.c.l.b16 %v123
  %v142 = vunpack.c.h.b16 %v123
  %v143 = vunpack.c.l.b16 %v124
  %v144 = vunpack.c.l.b16 %v125
  %v145 = vunpack.c.h.b16 %v125
  %v146 = vunpack.c.l.b16 %v126
  %v147 = vpack.c.b16 %v138, %v135
  %v148 = vpack.c.b16 %v139, %v136
  %v149 = vpack.c.b16 %v140, %v137
  %v150 = vpack.c.b16 %v144, %v141
  %v151 = vpack.c.b16 %v145, %v142
  %v152 = vpack.c.b16 %v146, %v143
  %v157 = vand.u32 %v150, %v66
  %v160 = vand.u32 %v151, %v66
  %v163 = vand.u32 %v152, %v66
  %165 = vmatpush.bf16.msra.mxu0 0
  %166 = vmatpush.bf16.msra.mxu0 0
  %167 = vmatpush.bf16.msra.mxu0 0
  %168 = vmatpush.bf16.msra.mxu0 0
  %169 = vmatpush.bf16.msra.mxu0 0
  %170 = vmatpush.bf16.msra.mxu0 0
  %171 = vmatpush.bf16.msra.mxu0 %v157
  %172 = vmatpush.bf16.msra.mxu0 %v147
  %173 = vmatmul.bf16.gmra.mxu0 %v61
  %v174 = vpop.f32.mrf.mxu0
  %v175 = vadd.f32 0.0, %v174
  %v176 = vpop.f32.mrf.mxu0
  %v177 = vadd.f32 0.0, %v176
  %178 = vdwg.mxu0
  %179 = vmatpush.bf16.msra.mxu0 0
  %180 = vmatpush.bf16.msra.mxu0 0
  %181 = vmatpush.bf16.msra.mxu0 0
  %182 = vmatpush.bf16.msra.mxu0 0
  %183 = vmatpush.bf16.msra.mxu0 0
  %184 = vmatpush.bf16.msra.mxu0 0
  %185 = vmatpush.bf16.msra.mxu0 %v160
  %186 = vmatpush.bf16.msra.mxu0 %v148
  %187 = vmatmul.bf16.gmra.mxu0 %v61
  %v188 = vpop.f32.mrf.mxu0
  %v189 = vadd.f32 0.0, %v188
  %v190 = vpop.f32.mrf.mxu0
  %v191 = vadd.f32 0.0, %v190
  %192 = vdwg.mxu0
  %193 = vmatpush.bf16.msra.mxu0 0
  %194 = vmatpush.bf16.msra.mxu0 0
  %195 = vmatpush.bf16.msra.mxu0 0
  %196 = vmatpush.bf16.msra.mxu0 0
  %197 = vmatpush.bf16.msra.mxu0 0
  %198 = vmatpush.bf16.msra.mxu0 0
  %199 = vmatpush.bf16.msra.mxu0 %v163
  %200 = vmatpush.bf16.msra.mxu0 %v149
  %201 = vmatmul.bf16.gmra.mxu0 %v61
  %v202 = vpop.f32.mrf.mxu0
  %v203 = vadd.f32 0.0, %v202
  %v204 = vpop.f32.mrf.mxu0
  %v205 = vadd.f32 0.0, %v204
  %206 = vdwg.mxu0
  %v207 = vmax.f32 %v86, %v175
  %v208 = vmax.f32 %v100, %v189
  %v209 = vmax.f32 %v114, %v203
  %v210 = vmax.f32 %v88, %v177
  %v211 = vmax.f32 %v102, %v191
  %v212 = vmax.f32 %v116, %v205
  %s213 = scalar_lea.vmem %s0, 96
  %v214 = vld [vmem:[%s213] sm:$0xff]
  %v215 = vld [vmem:[%s213 + $0x8] sm:$0xf]
  %v216 = vld [vmem:[%s213 + $0xc] sm:$0xff]
  %v217 = vld [vmem:[%s213 + $0x14] sm:$0xf]
  %v218 = vld [vmem:[%s213 + $0x18] sm:$0xff]
  %v219 = vld [vmem:[%s213 + $0x20] sm:$0xf]
  %v220 = vld [vmem:[%s213 + $0x24] sm:$0x11]
  %v221 = vld [vmem:[%s213 + $0x2c] sm:$0x1]
  %v230 = vunpack.c.l.b16 %v214
  %v231 = vunpack.c.h.b16 %v214
  %v232 = vunpack.c.l.b16 %v215
  %v233 = vunpack.c.l.b16 %v216
  %v234 = vunpack.c.h.b16 %v216
  %v235 = vunpack.c.l.b16 %v217
  %v236 = vunpack.c.l.b16 %v218
  %v237 = vunpack.c.h.b16 %v218
  %v238 = vunpack.c.l.b16 %v219
  %v239 = vunpack.c.l.b16 %v220
  %v240 = vunpack.c.h.b16 %v220
  %v241 = vunpack.c.l.b16 %v221
  %v242 = vpack.c.b16 %v233, %v230
  %v243 = vpack.c.b16 %v234, %v231
  %v244 = vpack.c.b16 %v235, %v232
  %v245 = vpack.c.b16 %v239, %v236
  %v246 = vpack.c.b16 %v240, %v237
  %v247 = vpack.c.b16 %v241, %v238
  %v252 = vand.u32 %v245, %v66
  %v255 = vand.u32 %v246, %v66
  %v258 = vand.u32 %v247, %v66
  %260 = vmatpush.bf16.msra.mxu0 0
  %261 = vmatpush.bf16.msra.mxu0 0
  %262 = vmatpush.bf16.msra.mxu0 0
  %263 = vmatpush.bf16.msra.mxu0 0
  %264 = vmatpush.bf16.msra.mxu0 0
  %265 = vmatpush.bf16.msra.mxu0 0
  %266 = vmatpush.bf16.msra.mxu0 %v252
  %267 = vmatpush.bf16.msra.mxu0 %v242
  %268 = vmatmul.bf16.gmra.mxu0 %v61
  %v269 = vpop.f32.mrf.mxu0
  %v270 = vadd.f32 0.0, %v269
  %v271 = vpop.f32.mrf.mxu0
  %v272 = vadd.f32 0.0, %v271
  %273 = vdwg.mxu0
  %274 = vmatpush.bf16.msra.mxu0 0
  %275 = vmatpush.bf16.msra.mxu0 0
  %276 = vmatpush.bf16.msra.mxu0 0
  %277 = vmatpush.bf16.msra.mxu0 0
  %278 = vmatpush.bf16.msra.mxu0 0
  %279 = vmatpush.bf16.msra.mxu0 0
  %280 = vmatpush.bf16.msra.mxu0 %v255
  %281 = vmatpush.bf16.msra.mxu0 %v243
  %282 = vmatmul.bf16.gmra.mxu0 %v61
  %v283 = vpop.f32.mrf.mxu0
  %v284 = vadd.f32 0.0, %v283
  %v285 = vpop.f32.mrf.mxu0
  %v286 = vadd.f32 0.0, %v285
  %287 = vdwg.mxu0
  %288 = vmatpush.bf16.msra.mxu0 0
  %289 = vmatpush.bf16.msra.mxu0 0
  %290 = vmatpush.bf16.msra.mxu0 0
  %291 = vmatpush.bf16.msra.mxu0 0
  %292 = vmatpush.bf16.msra.mxu0 0
  %293 = vmatpush.bf16.msra.mxu0 0
  %294 = vmatpush.bf16.msra.mxu0 %v258
  %295 = vmatpush.bf16.msra.mxu0 %v244
  %296 = vmatmul.bf16.gmra.mxu0 %v61
  %v297 = vpop.f32.mrf.mxu0
  %v298 = vadd.f32 0.0, %v297
  %v299 = vpop.f32.mrf.mxu0
  %v300 = vadd.f32 0.0, %v299
  %301 = vdwg.mxu0
  %v302 = vmax.f32 %v207, %v270
  %v303 = vmax.f32 %v208, %v284
  %v304 = vmax.f32 %v209, %v298
  %v305 = vmax.f32 %v210, %v272
  %v306 = vmax.f32 %v211, %v286
  %v307 = vmax.f32 %v212, %v300
  %s308 = scalar_lea.vmem %s0, 144
  %v309 = vld [vmem:[%s308] sm:$0xff]
  %v310 = vld [vmem:[%s308 + $0x8] sm:$0xf]
  %v311 = vld [vmem:[%s308 + $0xc] sm:$0xff]
  %v312 = vld [vmem:[%s308 + $0x14] sm:$0xf]
  %v313 = vld [vmem:[%s308 + $0x18] sm:$0xff]
  %v314 = vld [vmem:[%s308 + $0x20] sm:$0xf]
  %v315 = vld [vmem:[%s308 + $0x24] sm:$0x11]
  %v316 = vld [vmem:[%s308 + $0x2c] sm:$0x1]
  %v325 = vunpack.c.l.b16 %v309
  %v326 = vunpack.c.h.b16 %v309
  %v327 = vunpack.c.l.b16 %v310
  %v328 = vunpack.c.l.b16 %v311
  %v329 = vunpack.c.h.b16 %v311
  %v330 = vunpack.c.l.b16 %v312
  %v331 = vunpack.c.l.b16 %v313
  %v332 = vunpack.c.h.b16 %v313
  %v333 = vunpack.c.l.b16 %v314
  %v334 = vunpack.c.l.b16 %v315
  %v335 = vunpack.c.h.b16 %v315
  %v336 = vunpack.c.l.b16 %v316
  %v337 = vpack.c.b16 %v328, %v325
  %v338 = vpack.c.b16 %v329, %v326
  %v339 = vpack.c.b16 %v330, %v327
  %v340 = vpack.c.b16 %v334, %v331
  %v341 = vpack.c.b16 %v335, %v332
  %v342 = vpack.c.b16 %v336, %v333
  %v347 = vand.u32 %v340, %v66
  %v350 = vand.u32 %v341, %v66
  %v353 = vand.u32 %v342, %v66
  %355 = vmatpush.bf16.msra.mxu0 0
  %356 = vmatpush.bf16.msra.mxu0 0
  %357 = vmatpush.bf16.msra.mxu0 0
  %358 = vmatpush.bf16.msra.mxu0 0
  %359 = vmatpush.bf16.msra.mxu0 0
  %360 = vmatpush.bf16.msra.mxu0 0
  %361 = vmatpush.bf16.msra.mxu0 %v347
  %362 = vmatpush.bf16.msra.mxu0 %v337
  %363 = vmatmul.bf16.gmra.mxu0 %v61
  %v364 = vpop.f32.mrf.mxu0
  %v365 = vadd.f32 0.0, %v364
  %v366 = vpop.f32.mrf.mxu0
  %v367 = vadd.f32 0.0, %v366
  %368 = vdwg.mxu0
  %369 = vmatpush.bf16.msra.mxu0 0
  %370 = vmatpush.bf16.msra.mxu0 0
  %371 = vmatpush.bf16.msra.mxu0 0
  %372 = vmatpush.bf16.msra.mxu0 0
  %373 = vmatpush.bf16.msra.mxu0 0
  %374 = vmatpush.bf16.msra.mxu0 0
  %375 = vmatpush.bf16.msra.mxu0 %v350
  %376 = vmatpush.bf16.msra.mxu0 %v338
  %377 = vmatmul.bf16.gmra.mxu0 %v61
  %v378 = vpop.f32.mrf.mxu0
  %v379 = vadd.f32 0.0, %v378
  %v380 = vpop.f32.mrf.mxu0
  %v381 = vadd.f32 0.0, %v380
  %382 = vdwg.mxu0
  %383 = vmatpush.bf16.msra.mxu0 0
  %384 = vmatpush.bf16.msra.mxu0 0
  %385 = vmatpush.bf16.msra.mxu0 0
  %386 = vmatpush.bf16.msra.mxu0 0
  %387 = vmatpush.bf16.msra.mxu0 0
  %388 = vmatpush.bf16.msra.mxu0 0
  %389 = vmatpush.bf16.msra.mxu0 %v353
  %390 = vmatpush.bf16.msra.mxu0 %v339
  %391 = vmatmul.bf16.gmra.mxu0 %v61
  %v392 = vpop.f32.mrf.mxu0
  %v393 = vadd.f32 0.0, %v392
  %v394 = vpop.f32.mrf.mxu0
  %v395 = vadd.f32 0.0, %v394
  %396 = vdwg.mxu0
  %v397 = vmax.f32 %v302, %v365
  %v398 = vmax.f32 %v303, %v379
  %v399 = vmax.f32 %v304, %v393
  %v400 = vmax.f32 %v305, %v367
  %v401 = vmax.f32 %v306, %v381
  %v402 = vmax.f32 %v307, %v395
  %v403 = vld [vmem:[%s2] sm:$0xff]
  %v404 = vld [vmem:[%s2 + $0x8] sm:$0x3]
  %406 = vset.pattern.permute.xlu0 0
  %407 = vperm.xlu0 %406, %v403
  %v408 = vpop.permute.xlu0 %407
  %411 = vset.pattern.permute.xlu0 0
  %412 = vperm.xlu0 %411, %v404
  %v413 = vpop.permute.xlu0 %412
  %v415 = vadd.f32 %v397, %v408
  %v416 = vadd.f32 %v398, %v408
  %v417 = vadd.f32 %v399, %v408
  %v418 = vadd.f32 %v400, %v413
  %v419 = vadd.f32 %v401, %v413
  %v420 = vadd.f32 %v402, %v413
  %v421 = vmax.f32 %v415, 0.0
  %v422 = vmax.f32 %v416, 0.0
  %v423 = vmax.f32 %v417, 0.0
  %v424 = vmax.f32 %v418, 0.0
  %v425 = vmax.f32 %v419, 0.0
  %v426 = vmax.f32 %v420, 0.0
  %v427 = vpack.c.bf16 %v422, %v421
  %v428 = vpack.c.bf16 %v423, %v423
  %v429 = vpack.c.bf16 %v425, %v424
  %v430 = vpack.c.bf16 %v426, %v426
  %431 = vst [vmem:[%s3] sm:$0xff] %v427
  %vm432 = vcmask 257024
  %433 = vst.msk [vmem:[%s3 + $0x8] sm:$0xf] %vm432, %v428
  %434 = vst [vmem:[%s3 + $0xc] sm:$0x11] %v429
  %vm435 = vcmask 253952
  %436 = vst.msk [vmem:[%s3 + $0x14] sm:$0x1] %vm435, %v430
  // Predicated region
  $region14: #{net_forward.2} parent=0 // pred_check
    _
  $region15: #{net_forward.2} parent=0 // pred_check_branch
    %438 = sbr.rel (0) target = $region17
  $region16: #{net_forward.2} parent=0 // pred_region
    _
  $region17: #{net_forward.2} parent=0 // pred_fallthru
    _
  // Predicated region
  $region18: #{net_forward.2} parent=0 // pred_check
    _
  $region19: #{net_forward.2} parent=0 // pred_check_branch
    %440 = sbr.rel (0) target = $region21
  $region20: #{net_forward.2} parent=0 // pred_region
    _
  $region21: #{net_forward.2} parent=0 // pred_fallthru
    _

// kernel: net_forward.3
$region0: #{net_forward.3}
  #allocation0 [shape = 'u32[]', space=smem, size = 0x4, offset = 0x4, fixed_abs, tag = 'smem constant byte address 0x4 - core index']
  #allocation1 [shape = 'u32[72,128]{1,0:T(1,128)}', space=vmem, size = 0x9000, scoped, tag = 'internal scratch']
  %s0 = inlined_call_operand.vmem [shape: bf16[4,16,2,250], index: 0, kind: input, shape index: {}]
  %s1 = inlined_call_operand.vmem [shape: bf16[250,20], index: 1, kind: input, shape index: {}]
  %s2 = inlined_call_operand.vmem [shape: f32[1,20], index: 2, kind: input, shape index: {}]
  %s3 = inlined_call_operand.vmem [shape: bf16[16,20,50], index: 3, kind: input, shape index: {}]
  %s4 = inlined_call_operand.vmem [shape: f32[1,50], index: 4, kind: input, shape index: {}]
  %s5 = inlined_call_operand.vmem [shape: bf16[50,10], index: 5, kind: input, shape index: {}]
  %s6 = inlined_call_operand.vmem [shape: f32[1,10], index: 6, kind: input, shape index: {}]
  %s7 = inlined_call_operand.hbm [shape: f32[2,10], index: 7, kind: output, shape index: {}]
  %s8 = sld [smem:[#allocation0]]
  $region38: #{net_forward.3} parent=0
    _
  %s10 = ssub.s32 1, %s8
  %s11 = scalar_select 0, %s10, %s8
  $region1: #{net_forward.3} parent=0
    #allocation2 [shape = 'u8[1024]{0}', space=vmem, size = 0x400, scoped, tag = 'output window, operand 0, single buffered']
    #allocation3 [shape = 's32[1]{0}', space=sflag, size = 0x4, scoped, tag = 'scoped memory for net_forward.3']
    %12 = vsyncpa [#allocation3], 0
    // Predicated region
    $region2: #{net_forward.3} parent=1 // pred_check
      _
    $region3: #{net_forward.3} parent=1 // pred_check_branch
      %14 = sbr.rel (0) target = $region5
    $region4: #{net_forward.3} parent=1 // pred_region
      _
    $region5: #{net_forward.3} parent=1 // pred_fallthru
      _
    // Predicated region
    $region6: #{net_forward.3} parent=1 // pred_check
      _
    $region7: #{net_forward.3} parent=1 // pred_check_branch
      %16 = sbr.rel (0) target = $region9
    $region8: #{net_forward.3} parent=1 // pred_region
      _
    $region9: #{net_forward.3} parent=1 // pred_fallthru
      _
    // Predicated region
    $region10: #{net_forward.3} parent=1 // pred_check
      _
    $region11: #{net_forward.3} parent=1 // pred_check_branch
      %18 = sbr.rel (0) target = $region13
    $region12: #{net_forward.3} parent=1 // pred_region
      _
    $region13: #{net_forward.3} parent=1 // pred_fallthru
      _
    // Predicated region
    $region14: #{net_forward.3} parent=1 // pred_check
      _
    $region15: #{net_forward.3} parent=1 // pred_check_branch
      %20 = sbr.rel (0) target = $region17
    $region16: #{net_forward.3} parent=1 // pred_region
      _
    $region17: #{net_forward.3} parent=1 // pred_fallthru
      _
    // Predicated region
    $region18: #{net_forward.3} parent=1 // pred_check
      _
    $region19: #{net_forward.3} parent=1 // pred_check_branch
      %22 = sbr.rel (0) target = $region21
    $region20: #{net_forward.3} parent=1 // pred_region
      _
    $region21: #{net_forward.3} parent=1 // pred_fallthru
      _
    // Predicated region
    $region22: #{net_forward.3} parent=1 // pred_check
      _
    $region23: #{net_forward.3} parent=1 // pred_check_branch
      %24 = sbr.rel (0) target = $region25
    $region24: #{net_forward.3} parent=1 // pred_region
      _
    $region25: #{net_forward.3} parent=1 // pred_fallthru
      _
    // Predicated region
    $region26: #{net_forward.3} parent=1 // pred_check
      _
    $region27: #{net_forward.3} parent=1 // pred_check_branch
      %26 = sbr.rel (0) target = $region29
    $region28: #{net_forward.3} parent=1 // pred_region
      _
    $region29: #{net_forward.3} parent=1 // pred_fallthru
      _
    %v28 = vld [vmem:[%s1] sm:$0xf]
    %v29 = vld [vmem:[%s1 + $0x4] sm:$0xf]
    %v30 = vld [vmem:[%s1 + $0x8] sm:$0xf]
    %v31 = vld [vmem:[%s1 + $0xc] sm:$0xf]
    %v32 = vld [vmem:[%s1 + $0x10] sm:$0xf]
    %v33 = vld [vmem:[%s1 + $0x14] sm:$0xf]
    %v34 = vld [vmem:[%s1 + $0x18] sm:$0xf]
    %v35 = vld [vmem:[%s1 + $0x1c] sm:$0xf]
    %v36 = vld [vmem:[%s1 + $0x20] sm:$0xf]
    %v37 = vld [vmem:[%s1 + $0x24] sm:$0xf]
    %v38 = vld [vmem:[%s1 + $0x28] sm:$0xf]
    %v39 = vld [vmem:[%s1 + $0x2c] sm:$0xf]
    %v40 = vld [vmem:[%s1 + $0x30] sm:$0xf]
    %v41 = vld [vmem:[%s1 + $0x34] sm:$0xf]
    %v42 = vld [vmem:[%s1 + $0x38] sm:$0xf]
    %v43 = vld [vmem:[%s1 + $0x3c] sm:$0xf]
    %v44 = vld [vmem:[%s1 + $0x40] sm:$0xf]
    %v45 = vld [vmem:[%s1 + $0x44] sm:$0xf]
    %v46 = vld [vmem:[%s1 + $0x48] sm:$0xf]
    %v47 = vld [vmem:[%s1 + $0x4c] sm:$0xf]
    %v48 = vld [vmem:[%s1 + $0x50] sm:$0xf]
    %v49 = vld [vmem:[%s1 + $0x54] sm:$0xf]
    %v50 = vld [vmem:[%s1 + $0x58] sm:$0xf]
    %v51 = vld [vmem:[%s1 + $0x5c] sm:$0xf]
    %v52 = vld [vmem:[%s1 + $0x60] sm:$0xf]
    %v53 = vld [vmem:[%s1 + $0x64] sm:$0xf]
    %v54 = vld [vmem:[%s1 + $0x68] sm:$0xf]
    %v55 = vld [vmem:[%s1 + $0x6c] sm:$0xf]
    %v56 = vld [vmem:[%s1 + $0x70] sm:$0xf]
    %v57 = vld [vmem:[%s1 + $0x74] sm:$0xf]
    %v58 = vld [vmem:[%s1 + $0x78] sm:$0xf]
    %v59 = vld [vmem:[%s1 + $0x7c] sm:$0x1]
    %v60 = vld [vmem:[%s2] sm:$0x1]
    %v61 = vld [vmem:[%s0] sm:$0x3]
    %63 = vst [vmem:[#allocation1] ss:$9 sm:$0xff] %v61
    %v64 = vld [vmem:[#allocation1] sm:$0xff]
    %v65 = vld [vmem:[#allocation1 + $0x9] sm:$0xff]
    %v99 = vunpack.c.l.b16 %v28
    %v100 = vunpack.c.l.b16 %v29
    %v101 = vunpack.c.l.b16 %v30
    %v102 = vunpack.c.l.b16 %v31
    %v103 = vunpack.c.l.b16 %v32
    %v104 = vunpack.c.l.b16 %v33
    %v105 = vunpack.c.l.b16 %v34
    %v106 = vunpack.c.l.b16 %v35
    %v107 = vunpack.c.l.b16 %v36
    %v108 = vunpack.c.l.b16 %v37
    %v109 = vunpack.c.l.b16 %v38
    %v110 = vunpack.c.l.b16 %v39
    %v111 = vunpack.c.l.b16 %v40
    %v112 = vunpack.c.l.b16 %v41
    %v113 = vunpack.c.l.b16 %v42
    %v114 = vunpack.c.l.b16 %v43
    %v115 = vunpack.c.l.b16 %v44
    %v116 = vunpack.c.l.b16 %v45
    %v117 = vunpack.c.l.b16 %v46
    %v118 = vunpack.c.l.b16 %v47
    %v119 = vunpack.c.l.b16 %v48
    %v120 = vunpack.c.l.b16 %v49
    %v121 = vunpack.c.l.b16 %v50
    %v122 = vunpack.c.l.b16 %v51
    %v123 = vunpack.c.l.b16 %v52
    %v124 = vunpack.c.l.b16 %v53
    %v125 = vunpack.c.l.b16 %v54
    %v126 = vunpack.c.l.b16 %v55
    %v127 = vunpack.c.l.b16 %v56
    %v128 = vunpack.c.l.b16 %v57
    %v129 = vunpack.c.l.b16 %v58
    %v130 = vunpack.c.l.b16 %v59
    %v131 = vpack.c.b16 %v100, %v99
    %v132 = vpack.c.b16 %v102, %v101
    %v133 = vpack.c.b16 %v104, %v103
    %v134 = vpack.c.b16 %v106, %v105
    %v135 = vpack.c.b16 %v108, %v107
    %v136 = vpack.c.b16 %v110, %v109
    %v137 = vpack.c.b16 %v112, %v111
    %v138 = vpack.c.b16 %v114, %v113
    %v139 = vpack.c.b16 %v116, %v115
    %v140 = vpack.c.b16 %v118, %v117
    %v141 = vpack.c.b16 %v120, %v119
    %v142 = vpack.c.b16 %v122, %v121
    %v143 = vpack.c.b16 %v124, %v123
    %v144 = vpack.c.b16 %v126, %v125
    %v145 = vpack.c.b16 %v128, %v127
    %v146 = vpack.c.b16 %v130, %v129
    %vm162 = vcmask 998400
    %v163 = vsel %vm162, %v65, 0
    %vm165 = vcmask 1044480
    %v167 = vsel %vm165, %v146, 0
    %169 = vmatpush.bf16.msra.mxu0 %v138
    %170 = vmatpush.bf16.msra.mxu0 %v137
    %171 = vmatpush.bf16.msra.mxu0 %v136
    %172 = vmatpush.bf16.msra.mxu0 %v135
    %173 = vmatpush.bf16.msra.mxu0 %v134
    %174 = vmatpush.bf16.msra.mxu0 %v133
    %175 = vmatpush.bf16.msra.mxu0 %v132
    %176 = vmatpush.bf16.msra.mxu0 %v131
    %177 = vmatmul.bf16.gmra.mxu0 %v64
    %v178 = vpop.f32.mrf.mxu0
    %v179 = vadd.f32 0.0, %v178
    %v180 = vpop.f32.mrf.mxu0
    %181 = vdwg.mxu0
    %182 = vmatpush.bf16.msra.mxu0 %v167
    %183 = vmatpush.bf16.msra.mxu0 %v145
    %184 = vmatpush.bf16.msra.mxu0 %v144
    %185 = vmatpush.bf16.msra.mxu0 %v143
    %186 = vmatpush.bf16.msra.mxu0 %v142
    %187 = vmatpush.bf16.msra.mxu0 %v141
    %188 = vmatpush.bf16.msra.mxu0 %v140
    %189 = vmatpush.bf16.msra.mxu0 %v139
    %190 = vmatmul.bf16.gmra.mxu0 %v163
    %v191 = vpop.f32.mrf.mxu0
    %v192 = vadd.f32 %v179, %v191
    %v193 = vpop.f32.mrf.mxu0
    %194 = vdwg.mxu0
    %s195 = scalar_lea.vmem %s0, 32
    %v196 = vld [vmem:[%s195] sm:$0x3]
    %198 = vst [vmem:[#allocation1] ss:$9 sm:$0xff] %v196
    %v199 = vld [vmem:[#allocation1] sm:$0xff]
    %v200 = vld [vmem:[#allocation1 + $0x9] sm:$0xff]
    %v202 = vsel %vm162, %v200, 0
    %204 = vmatpush.bf16.msra.mxu0 %v138
    %205 = vmatpush.bf16.msra.mxu0 %v137
    %206 = vmatpush.bf16.msra.mxu0 %v136
    %207 = vmatpush.bf16.msra.mxu0 %v135
    %208 = vmatpush.bf16.msra.mxu0 %v134
    %209 = vmatpush.bf16.msra.mxu0 %v133
    %210 = vmatpush.bf16.msra.mxu0 %v132
    %211 = vmatpush.bf16.msra.mxu0 %v131
    %212 = vmatmul.bf16.gmra.mxu0 %v199
    %v213 = vpop.f32.mrf.mxu0
    %v214 = vadd.f32 0.0, %v213
    %v215 = vpop.f32.mrf.mxu0
    %216 = vdwg.mxu0
    %217 = vmatpush.bf16.msra.mxu0 %v167
    %218 = vmatpush.bf16.msra.mxu0 %v145
    %219 = vmatpush.bf16.msra.mxu0 %v144
    %220 = vmatpush.bf16.msra.mxu0 %v143
    %221 = vmatpush.bf16.msra.mxu0 %v142
    %222 = vmatpush.bf16.msra.mxu0 %v141
    %223 = vmatpush.bf16.msra.mxu0 %v140
    %224 = vmatpush.bf16.msra.mxu0 %v139
    %225 = vmatmul.bf16.gmra.mxu0 %v202
    %v226 = vpop.f32.mrf.mxu0
    %v227 = vadd.f32 %v214, %v226
    %v228 = vpop.f32.mrf.mxu0
    %229 = vdwg.mxu0
    %v230 = vmax.f32 %v192, %v227
    %s231 = scalar_lea.vmem %s0, 64
    %v232 = vld [vmem:[%s231] sm:$0x3]
    %234 = vst [vmem:[#allocation1] ss:$9 sm:$0xff] %v232
    %v235 = vld [vmem:[#allocation1] sm:$0xff]
    %v236 = vld [vmem:[#allocation1 + $0x9] sm:$0xff]
    %v238 = vsel %vm162, %v236, 0
    %240 = vmatpush.bf16.msra.mxu0 %v138
    %241 = vmatpush.bf16.msra.mxu0 %v137
    %242 = vmatpush.bf16.msra.mxu0 %v136
    %243 = vmatpush.bf16.msra.mxu0 %v135
    %244 = vmatpush.bf16.msra.mxu0 %v134
    %245 = vmatpush.bf16.msra.mxu0 %v133
    %246 = vmatpush.bf16.msra.mxu0 %v132
    %247 = vmatpush.bf16.msra.mxu0 %v131
    %248 = vmatmul.bf16.gmra.mxu0 %v235
    %v249 = vpop.f32.mrf.mxu0
    %v250 = vadd.f32 0.0, %v249
    %v251 = vpop.f32.mrf.mxu0
    %252 = vdwg.mxu0
    %253 = vmatpush.bf16.msra.mxu0 %v167
    %254 = vmatpush.bf16.msra.mxu0 %v145
    %255 = vmatpush.bf16.msra.mxu0 %v144
    %256 = vmatpush.bf16.msra.mxu0 %v143
    %257 = vmatpush.bf16.msra.mxu0 %v142
    %258 = vmatpush.bf16.msra.mxu0 %v141
    %259 = vmatpush.bf16.msra.mxu0 %v140
    %260 = vmatpush.bf16.msra.mxu0 %v139
    %261 = vmatmul.bf16.gmra.mxu0 %v238
    %v262 = vpop.f32.mrf.mxu0
    %v263 = vadd.f32 %v250, %v262
    %v264 = vpop.f32.mrf.mxu0
    %265 = vdwg.mxu0
    %v266 = vmax.f32 %v230, %v263
    %s267 = scalar_lea.vmem %s0, 96
    %v268 = vld [vmem:[%s267] sm:$0x3]
    %270 = vst [vmem:[#allocation1] ss:$9 sm:$0xff] %v268
    %v271 = vld [vmem:[#allocation1] sm:$0xff]
    %v272 = vld [vmem:[#allocation1 + $0x9] sm:$0xff]
    %v274 = vsel %vm162, %v272, 0
    %276 = vmatpush.bf16.msra.mxu0 %v138
    %277 = vmatpush.bf16.msra.mxu0 %v137
    %278 = vmatpush.bf16.msra.mxu0 %v136
    %279 = vmatpush.bf16.msra.mxu0 %v135
    %280 = vmatpush.bf16.msra.mxu0 %v134
    %281 = vmatpush.bf16.msra.mxu0 %v133
    %282 = vmatpush.bf16.msra.mxu0 %v132
    %283 = vmatpush.bf16.msra.mxu0 %v131
    %284 = vmatmul.bf16.gmra.mxu0 %v271
    %v285 = vpop.f32.mrf.mxu0
    %v286 = vadd.f32 0.0, %v285
    %v287 = vpop.f32.mrf.mxu0
    %288 = vdwg.mxu0
    %289 = vmatpush.bf16.msra.mxu0 %v167
    %290 = vmatpush.bf16.msra.mxu0 %v145
    %291 = vmatpush.bf16.msra.mxu0 %v144
    %292 = vmatpush.bf16.msra.mxu0 %v143
    %293 = vmatpush.bf16.msra.mxu0 %v142
    %294 = vmatpush.bf16.msra.mxu0 %v141
    %295 = vmatpush.bf16.msra.mxu0 %v140
    %296 = vmatpush.bf16.msra.mxu0 %v139
    %297 = vmatmul.bf16.gmra.mxu0 %v274
    %v298 = vpop.f32.mrf.mxu0
    %v299 = vadd.f32 %v286, %v298
    %v300 = vpop.f32.mrf.mxu0
    %301 = vdwg.mxu0
    %v302 = vmax.f32 %v266, %v299
    %v304 = vperm.slane %v60, 0
    %v306 = vadd.f32 %v302, %v304
    %v307 = vmax.f32 %v306, 0.0
    %v308 = vpack.c.bf16 %v307, %v307
    %v309 = vld [vmem:[%s3] sm:$0xf]
    %v310 = vld [vmem:[%s3 + $0x4] sm:$0xf]
    %v311 = vld [vmem:[%s3 + $0x8] sm:$0x3]
    %s312 = scalar_lea.vmem %s0, 2
    %v313 = vld [vmem:[%s312] sm:$0x3]
    %315 = vst [vmem:[#allocation1] ss:$9 sm:$0xff] %v313
    %v316 = vld [vmem:[#allocation1] sm:$0xff]
    %v317 = vld [vmem:[#allocation1 + $0x9] sm:$0xff]
    %v319 = vsel %vm162, %v317, 0
    %321 = vmatpush.bf16.msra.mxu0 %v138
    %322 = vmatpush.bf16.msra.mxu0 %v137
    %323 = vmatpush.bf16.msra.mxu0 %v136
    %324 = vmatpush.bf16.msra.mxu0 %v135
    %325 = vmatpush.bf16.msra.mxu0 %v134
    %326 = vmatpush.bf16.msra.mxu0 %v133
    %327 = vmatpush.bf16.msra.mxu0 %v132
    %328 = vmatpush.bf16.msra.mxu0 %v131
    %329 = vmatmul.bf16.gmra.mxu0 %v316
    %v330 = vpop.f32.mrf.mxu0
    %v331 = vadd.f32 0.0, %v330
    %v332 = vpop.f32.mrf.mxu0
    %333 = vdwg.mxu0
    %334 = vmatpush.bf16.msra.mxu0 %v167
    %335 = vmatpush.bf16.msra.mxu0 %v145
    %336 = vmatpush.bf16.msra.mxu0 %v144
    %337 = vmatpush.bf16.msra.mxu0 %v143
    %338 = vmatpush.bf16.msra.mxu0 %v142
    %339 = vmatpush.bf16.msra.mxu0 %v141
    %340 = vmatpush.bf16.msra.mxu0 %v140
    %341 = vmatpush.bf16.msra.mxu0 %v139
    %342 = vmatmul.bf16.gmra.mxu0 %v319
    %v343 = vpop.f32.mrf.mxu0
    %v344 = vadd.f32 %v331, %v343
    %v345 = vpop.f32.mrf.mxu0
    %346 = vdwg.mxu0
    %s347 = scalar_lea.vmem %s0, 34
    %v348 = vld [vmem:[%s347] sm:$0x3]
    %350 = vst [vmem:[#allocation1] ss:$9 sm:$0xff] %v348
    %v351 = vld [vmem:[#allocation1] sm:$0xff]
    %v352 = vld [vmem:[#allocation1 + $0x9] sm:$0xff]
    %v354 = vsel %vm162, %v352, 0
    %356 = vmatpush.bf16.msra.mxu0 %v138
    %357 = vmatpush.bf16.msra.mxu0 %v137
    %358 = vmatpush.bf16.msra.mxu0 %v136
    %359 = vmatpush.bf16.msra.mxu0 %v135
    %360 = vmatpush.bf16.msra.mxu0 %v134
    %361 = vmatpush.bf16.msra.mxu0 %v133
    %362 = vmatpush.bf16.msra.mxu0 %v132
    %363 = vmatpush.bf16.msra.mxu0 %v131
    %364 = vmatmul.bf16.gmra.mxu0 %v351
    %v365 = vpop.f32.mrf.mxu0
    %v366 = vadd.f32 0.0, %v365
    %v367 = vpop.f32.mrf.mxu0
    %368 = vdwg.mxu0
    %369 = vmatpush.bf16.msra.mxu0 %v167
    %370 = vmatpush.bf16.msra.mxu0 %v145
    %371 = vmatpush.bf16.msra.mxu0 %v144
    %372 = vmatpush.bf16.msra.mxu0 %v143
    %373 = vmatpush.bf16.msra.mxu0 %v142
    %374 = vmatpush.bf16.msra.mxu0 %v141
    %375 = vmatpush.bf16.msra.mxu0 %v140
    %376 = vmatpush.bf16.msra.mxu0 %v139
    %377 = vmatmul.bf16.gmra.mxu0 %v354
    %v378 = vpop.f32.mrf.mxu0
    %v379 = vadd.f32 %v366, %v378
    %v380 = vpop.f32.mrf.mxu0
    %381 = vdwg.mxu0
    %v382 = vmax.f32 %v344, %v379
    %s383 = scalar_lea.vmem %s0, 66
    %v384 = vld [vmem:[%s383] sm:$0x3]
    %386 = vst [vmem:[#allocation1] ss:$9 sm:$0xff] %v384
    %v387 = vld [vmem:[#allocation1] sm:$0xff]
    %v388 = vld [vmem:[#allocation1 + $0x9] sm:$0xff]
    %v390 = vsel %vm162, %v388, 0
    %392 = vmatpush.bf16.msra.mxu0 %v138
    %393 = vmatpush.bf16.msra.mxu0 %v137
    %394 = vmatpush.bf16.msra.mxu0 %v136
    %395 = vmatpush.bf16.msra.mxu0 %v135
    %396 = vmatpush.bf16.msra.mxu0 %v134
    %397 = vmatpush.bf16.msra.mxu0 %v133
    %398 = vmatpush.bf16.msra.mxu0 %v132
    %399 = vmatpush.bf16.msra.mxu0 %v131
    %400 = vmatmul.bf16.gmra.mxu0 %v387
    %v401 = vpop.f32.mrf.mxu0
    %v402 = vadd.f32 0.0, %v401
    %v403 = vpop.f32.mrf.mxu0
    %404 = vdwg.mxu0
    %405 = vmatpush.bf16.msra.mxu0 %v167
    %406 = vmatpush.bf16.msra.mxu0 %v145
    %407 = vmatpush.bf16.msra.mxu0 %v144
    %408 = vmatpush.bf16.msra.mxu0 %v143
    %409 = vmatpush.bf16.msra.mxu0 %v142
    %410 = vmatpush.bf16.msra.mxu0 %v141
    %411 = vmatpush.bf16.msra.mxu0 %v140
    %412 = vmatpush.bf16.msra.mxu0 %v139
    %413 = vmatmul.bf16.gmra.mxu0 %v390
    %v414 = vpop.f32.mrf.mxu0
    %v415 = vadd.f32 %v402, %v414
    %v416 = vpop.f32.mrf.mxu0
    %417 = vdwg.mxu0
    %v418 = vmax.f32 %v382, %v415
    %s419 = scalar_lea.vmem %s0, 98
    %v420 = vld [vmem:[%s419] sm:$0x3]
    %422 = vst [vmem:[#allocation1] ss:$9 sm:$0xff] %v420
    %v423 = vld [vmem:[#allocation1] sm:$0xff]
    %v424 = vld [vmem:[#allocation1 + $0x9] sm:$0xff]
    %v426 = vsel %vm162, %v424, 0
    %428 = vmatpush.bf16.msra.mxu0 %v138
    %429 = vmatpush.bf16.msra.mxu0 %v137
    %430 = vmatpush.bf16.msra.mxu0 %v136
    %431 = vmatpush.bf16.msra.mxu0 %v135
    %432 = vmatpush.bf16.msra.mxu0 %v134
    %433 = vmatpush.bf16.msra.mxu0 %v133
    %434 = vmatpush.bf16.msra.mxu0 %v132
    %435 = vmatpush.bf16.msra.mxu0 %v131
    %436 = vmatmul.bf16.gmra.mxu0 %v423
    %v437 = vpop.f32.mrf.mxu0
    %v438 = vadd.f32 0.0, %v437
    %v439 = vpop.f32.mrf.mxu0
    %440 = vdwg.mxu0
    %441 = vmatpush.bf16.msra.mxu0 %v167
    %442 = vmatpush.bf16.msra.mxu0 %v145
    %443 = vmatpush.bf16.msra.mxu0 %v144
    %444 = vmatpush.bf16.msra.mxu0 %v143
    %445 = vmatpush.bf16.msra.mxu0 %v142
    %446 = vmatpush.bf16.msra.mxu0 %v141
    %447 = vmatpush.bf16.msra.mxu0 %v140
    %448 = vmatpush.bf16.msra.mxu0 %v139
    %449 = vmatmul.bf16.gmra.mxu0 %v426
    %v450 = vpop.f32.mrf.mxu0
    %v451 = vadd.f32 %v438, %v450
    %v452 = vpop.f32.mrf.mxu0
    %453 = vdwg.mxu0
    %v454 = vmax.f32 %v418, %v451
    %v455 = vadd.f32 %v454, %v304
    %v456 = vmax.f32 %v455, 0.0
    %v457 = vpack.c.bf16 %v456, %v456
    %s458 = scalar_lea.vmem %s3, 12
    %v459 = vld [vmem:[%s458] sm:$0xf]
    %v460 = vld [vmem:[%s458 + $0x4] sm:$0xf]
    %v461 = vld [vmem:[%s458 + $0x8] sm:$0x3]
    %v465 = vunpack.c.l.b16 %v459
    %v466 = vunpack.c.l.b16 %v460
    %v467 = vunpack.c.l.b16 %v461
    %v468 = vpack.c.b16 %v466, %v465
    %v469 = vpack.c.b16 %v467, %v467
    %vm471 = vcmask 162816
    %v473 = vsel %vm471, %v457, 0
    %vm475 = vcmask 1041408
    %v477 = vsel %vm475, %v469, 0
    %479 = vmatpush.bf16.msra.mxu0 0
    %480 = vmatpush.bf16.msra.mxu0 0
    %481 = vmatpush.bf16.msra.mxu0 0
    %482 = vmatpush.bf16.msra.mxu0 0
    %483 = vmatpush.bf16.msra.mxu0 0
    %484 = vmatpush.bf16.msra.mxu0 0
    %485 = vmatpush.bf16.msra.mxu0 %v477
    %486 = vmatpush.bf16.msra.mxu0 %v468
    %487 = vmatmul.bf16.gmra.mxu0 %v473
    %v488 = vpop.f32.mrf.mxu0
    %v489 = vadd.f32 0.0, %v488
    %v490 = vpop.f32.mrf.mxu0
    %491 = vdwg.mxu0
    %v495 = vunpack.c.l.b16 %v309
    %v496 = vunpack.c.l.b16 %v310
    %v497 = vunpack.c.l.b16 %v311
    %v498 = vpack.c.b16 %v496, %v495
    %v499 = vpack.c.b16 %v497, %v497
    %v502 = vsel %vm471, %v308, 0
    %v505 = vsel %vm475, %v499, 0
    %507 = vmatpush.bf16.msra.mxu0 0
    %508 = vmatpush.bf16.msra.mxu0 0
    %509 = vmatpush.bf16.msra.mxu0 0
    %510 = vmatpush.bf16.msra.mxu0 0
    %511 = vmatpush.bf16.msra.mxu0 0
    %512 = vmatpush.bf16.msra.mxu0 0
    %513 = vmatpush.bf16.msra.mxu0 %v505
    %514 = vmatpush.bf16.msra.mxu0 %v498
    %515 = vmatmul.bf16.gmra.mxu0 %v502
    %v516 = vpop.f32.mrf.mxu0
    %v517 = vadd.f32 %v489, %v516
    %v518 = vpop.f32.mrf.mxu0
    %519 = vdwg.mxu0
    %s520 = scalar_lea.vmem %s0, 4
    %v521 = vld [vmem:[%s520] sm:$0x3]
    %523 = vst [vmem:[#allocation1] ss:$9 sm:$0xff] %v521
    %v524 = vld [vmem:[#allocation1] sm:$0xff]
    %v525 = vld [vmem:[#allocation1 + $0x9] sm:$0xff]
    %v527 = vsel %vm162, %v525, 0
    %529 = vmatpush.bf16.msra.mxu0 %v138
    %530 = vmatpush.bf16.msra.mxu0 %v137
    %531 = vmatpush.bf16.msra.mxu0 %v136
    %532 = vmatpush.bf16.msra.mxu0 %v135
    %533 = vmatpush.bf16.msra.mxu0 %v134
    %534 = vmatpush.bf16.msra.mxu0 %v133
    %535 = vmatpush.bf16.msra.mxu0 %v132
    %536 = vmatpush.bf16.msra.mxu0 %v131
    %537 = vmatmul.bf16.gmra.mxu0 %v524
    %v538 = vpop.f32.mrf.mxu0
    %v539 = vadd.f32 0.0, %v538
    %v540 = vpop.f32.mrf.mxu0
    %541 = vdwg.mxu0
    %542 = vmatpush.bf16.msra.mxu0 %v167
    %543 = vmatpush.bf16.msra.mxu0 %v145
    %544 = vmatpush.bf16.msra.mxu0 %v144
    %545 = vmatpush.bf16.msra.mxu0 %v143
    %546 = vmatpush.bf16.msra.mxu0 %v142
    %547 = vmatpush.bf16.msra.mxu0 %v141
    %548 = vmatpush.bf16.msra.mxu0 %v140
    %549 = vmatpush.bf16.msra.mxu0 %v139
    %550 = vmatmul.bf16.gmra.mxu0 %v527
    %v551 = vpop.f32.mrf.mxu0
    %v552 = vadd.f32 %v539, %v551
    %v553 = vpop.f32.mrf.mxu0
    %554 = vdwg.mxu0
    %s555 = scalar_lea.vmem %s0, 36
    %v556 = vld [vmem:[%s555] sm:$0x3]
    %558 = vst [vmem:[#allocation1] ss:$9 sm:$0xff] %v556
    %v559 = vld [vmem:[#allocation1] sm:$0xff]
    %v560 = vld [vmem:[#allocation1 + $0x9] sm:$0xff]
    %v562 = vsel %vm162, %v560, 0
    %564 = vmatpush.bf16.msra.mxu0 %v138
    %565 = vmatpush.bf16.msra.mxu0 %v137
    %566 = vmatpush.bf16.msra.mxu0 %v136
    %567 = vmatpush.bf16.msra.mxu0 %v135
    %568 = vmatpush.bf16.msra.mxu0 %v134
    %569 = vmatpush.bf16.msra.mxu0 %v133
    %570 = vmatpush.bf16.msra.mxu0 %v132
    %571 = vmatpush.bf16.msra.mxu0 %v131
    %572 = vmatmul.bf16.gmra.mxu0 %v559
    %v573 = vpop.f32.mrf.mxu0
    %v574 = vadd.f32 0.0, %v573
    %v575 = vpop.f32.mrf.mxu0
    %576 = vdwg.mxu0
    %577 = vmatpush.bf16.msra.mxu0 %v167
    %578 = vmatpush.bf16.msra.mxu0 %v145
    %579 = vmatpush.bf16.msra.mxu0 %v144
    %580 = vmatpush.bf16.msra.mxu0 %v143
    %581 = vmatpush.bf16.msra.mxu0 %v142
    %582 = vmatpush.bf16.msra.mxu0 %v141
    %583 = vmatpush.bf16.msra.mxu0 %v140
    %584 = vmatpush.bf16.msra.mxu0 %v139
    %585 = vmatmul.bf16.gmra.mxu0 %v562
    %v586 = vpop.f32.mrf.mxu0
    %v587 = vadd.f32 %v574, %v586
    %v588 = vpop.f32.mrf.mxu0
    %589 = vdwg.mxu0
    %v590 = vmax.f32 %v552, %v587
    %s591 = scalar_lea.vmem %s0, 68
    %v592 = vld [vmem:[%s591] sm:$0x3]
    %594 = vst [vmem:[#allocation1] ss:$9 sm:$0xff] %v592
    %v595 = vld [vmem:[#allocation1] sm:$0xff]
    %v596 = vld [vmem:[#allocation1 + $0x9] sm:$0xff]
    %v598 = vsel %vm162, %v596, 0
    %600 = vmatpush.bf16.msra.mxu0 %v138
    %601 = vmatpush.bf16.msra.mxu0 %v137
    %602 = vmatpush.bf16.msra.mxu0 %v136
    %603 = vmatpush.bf16.msra.mxu0 %v135
    %604 = vmatpush.bf16.msra.mxu0 %v134
    %605 = vmatpush.bf16.msra.mxu0 %v133
    %606 = vmatpush.bf16.msra.mxu0 %v132
    %607 = vmatpush.bf16.msra.mxu0 %v131
    %608 = vmatmul.bf16.gmra.mxu0 %v595
    %v609 = vpop.f32.mrf.mxu0
    %v610 = vadd.f32 0.0, %v609
    %v611 = vpop.f32.mrf.mxu0
    %612 = vdwg.mxu0
    %613 = vmatpush.bf16.msra.mxu0 %v167
    %614 = vmatpush.bf16.msra.mxu0 %v145
    %615 = vmatpush.bf16.msra.mxu0 %v144
    %616 = vmatpush.bf16.msra.mxu0 %v143
    %617 = vmatpush.bf16.msra.mxu0 %v142
    %618 = vmatpush.bf16.msra.mxu0 %v141
    %619 = vmatpush.bf16.msra.mxu0 %v140
    %620 = vmatpush.bf16.msra.mxu0 %v139
    %621 = vmatmul.bf16.gmra.mxu0 %v598
    %v622 = vpop.f32.mrf.mxu0
    %v623 = vadd.f32 %v610, %v622
    %v624 = vpop.f32.mrf.mxu0
    %625 = vdwg.mxu0
    %v626 = vmax.f32 %v590, %v623
    %s627 = scalar_lea.vmem %s0, 100
    %v628 = vld [vmem:[%s627] sm:$0x3]
    %630 = vst [vmem:[#allocation1] ss:$9 sm:$0xff] %v628
    %v631 = vld [vmem:[#allocation1] sm:$0xff]
    %v632 = vld [vmem:[#allocation1 + $0x9] sm:$0xff]
    %v634 = vsel %vm162, %v632, 0
    %636 = vmatpush.bf16.msra.mxu0 %v138
    %637 = vmatpush.bf16.msra.mxu0 %v137
    %638 = vmatpush.bf16.msra.mxu0 %v136
    %639 = vmatpush.bf16.msra.mxu0 %v135
    %640 = vmatpush.bf16.msra.mxu0 %v134
    %641 = vmatpush.bf16.msra.mxu0 %v133
    %642 = vmatpush.bf16.msra.mxu0 %v132
    %643 = vmatpush.bf16.msra.mxu0 %v131
    %644 = vmatmul.bf16.gmra.mxu0 %v631
    %v645 = vpop.f32.mrf.mxu0
    %v646 = vadd.f32 0.0, %v645
    %v647 = vpop.f32.mrf.mxu0
    %648 = vdwg.mxu0
    %649 = vmatpush.bf16.msra.mxu0 %v167
    %650 = vmatpush.bf16.msra.mxu0 %v145
    %651 = vmatpush.bf16.msra.mxu0 %v144
    %652 = vmatpush.bf16.msra.mxu0 %v143
    %653 = vmatpush.bf16.msra.mxu0 %v142
    %654 = vmatpush.bf16.msra.mxu0 %v141
    %655 = vmatpush.bf16.msra.mxu0 %v140
    %656 = vmatpush.bf16.msra.mxu0 %v139
    %657 = vmatmul.bf16.gmra.mxu0 %v634
    %v658 = vpop.f32.mrf.mxu0
    %v659 = vadd.f32 %v646, %v658
    %v660 = vpop.f32.mrf.mxu0
    %661 = vdwg.mxu0
    %v662 = vmax.f32 %v626, %v659
    %v663 = vadd.f32 %v662, %v304
    %v664 = vmax.f32 %v663, 0.0
    %v665 = vpack.c.bf16 %v664, %v664
    %s666 = scalar_lea.vmem %s3, 24
    %v667 = vld [vmem:[%s666] sm:$0xf]
    %v668 = vld [vmem:[%s666 + $0x4] sm:$0xf]
    %v669 = vld [vmem:[%s666 + $0x8] sm:$0x3]
    %v673 = vunpack.c.l.b16 %v667
    %v674 = vunpack.c.l.b16 %v668
    %v675 = vunpack.c.l.b16 %v669
    %v676 = vpack.c.b16 %v674, %v673
    %v677 = vpack.c.b16 %v675, %v675
    %v680 = vsel %vm471, %v665, 0
    %v683 = vsel %vm475, %v677, 0
    %685 = vmatpush.bf16.msra.mxu0 0
    %686 = vmatpush.bf16.msra.mxu0 0
    %687 = vmatpush.bf16.msra.mxu0 0
    %688 = vmatpush.bf16.msra.mxu0 0
    %689 = vmatpush.bf16.msra.mxu0 0
    %690 = vmatpush.bf16.msra.mxu0 0
    %691 = vmatpush.bf16.msra.mxu0 %v683
    %692 = vmatpush.bf16.msra.mxu0 %v676
    %693 = vmatmul.bf16.gmra.mxu0 %v680
    %v694 = vpop.f32.mrf.mxu0
    %v695 = vadd.f32 0.0, %v694
    %v696 = vpop.f32.mrf.mxu0
    %697 = vdwg.mxu0
    %v698 = vadd.f32 %v517, %v695
    %s699 = scalar_lea.vmem %s0, 6
    %v700 = vld [vmem:[%s699] sm:$0x3]
    %702 = vst [vmem:[#allocation1] ss:$9 sm:$0xff] %v700
    %v703 = vld [vmem:[#allocation1] sm:$0xff]
    %v704 = vld [vmem:[#allocation1 + $0x9] sm:$0xff]
    %v706 = vsel %vm162, %v704, 0
    %708 = vmatpush.bf16.msra.mxu0 %v138
    %709 = vmatpush.bf16.msra.mxu0 %v137
    %710 = vmatpush.bf16.msra.mxu0 %v136
    %711 = vmatpush.bf16.msra.mxu0 %v135
    %712 = vmatpush.bf16.msra.mxu0 %v134
    %713 = vmatpush.bf16.msra.mxu0 %v133
    %714 = vmatpush.bf16.msra.mxu0 %v132
    %715 = vmatpush.bf16.msra.mxu0 %v131
    %716 = vmatmul.bf16.gmra.mxu0 %v703
    %v717 = vpop.f32.mrf.mxu0
    %v718 = vadd.f32 0.0, %v717
    %v719 = vpop.f32.mrf.mxu0
    %720 = vdwg.mxu0
    %721 = vmatpush.bf16.msra.mxu0 %v167
    %722 = vmatpush.bf16.msra.mxu0 %v145
    %723 = vmatpush.bf16.msra.mxu0 %v144
    %724 = vmatpush.bf16.msra.mxu0 %v143
    %725 = vmatpush.bf16.msra.mxu0 %v142
    %726 = vmatpush.bf16.msra.mxu0 %v141
    %727 = vmatpush.bf16.msra.mxu0 %v140
    %728 = vmatpush.bf16.msra.mxu0 %v139
    %729 = vmatmul.bf16.gmra.mxu0 %v706
    %v730 = vpop.f32.mrf.mxu0
    %v731 = vadd.f32 %v718, %v730
    %v732 = vpop.f32.mrf.mxu0
    %733 = vdwg.mxu0
    %s734 = scalar_lea.vmem %s0, 38
    %v735 = vld [vmem:[%s734] sm:$0x3]
    %737 = vst [vmem:[#allocation1] ss:$9 sm:$0xff] %v735
    %v738 = vld [vmem:[#allocation1] sm:$0xff]
    %v739 = vld [vmem:[#allocation1 + $0x9] sm:$0xff]
    %v741 = vsel %vm162, %v739, 0
    %743 = vmatpush.bf16.msra.mxu0 %v138
    %744 = vmatpush.bf16.msra.mxu0 %v137
    %745 = vmatpush.bf16.msra.mxu0 %v136
    %746 = vmatpush.bf16.msra.mxu0 %v135
    %747 = vmatpush.bf16.msra.mxu0 %v134
    %748 = vmatpush.bf16.msra.mxu0 %v133
    %749 = vmatpush.bf16.msra.mxu0 %v132
    %750 = vmatpush.bf16.msra.mxu0 %v131
    %751 = vmatmul.bf16.gmra.mxu0 %v738
    %v752 = vpop.f32.mrf.mxu0
    %v753 = vadd.f32 0.0, %v752
    %v754 = vpop.f32.mrf.mxu0
    %755 = vdwg.mxu0
    %756 = vmatpush.bf16.msra.mxu0 %v167
    %757 = vmatpush.bf16.msra.mxu0 %v145
    %758 = vmatpush.bf16.msra.mxu0 %v144
    %759 = vmatpush.bf16.msra.mxu0 %v143
    %760 = vmatpush.bf16.msra.mxu0 %v142
    %761 = vmatpush.bf16.msra.mxu0 %v141
    %762 = vmatpush.bf16.msra.mxu0 %v140
    %763 = vmatpush.bf16.msra.mxu0 %v139
    %764 = vmatmul.bf16.gmra.mxu0 %v741
    %v765 = vpop.f32.mrf.mxu0
    %v766 = vadd.f32 %v753, %v765
    %v767 = vpop.f32.mrf.mxu0
    %768 = vdwg.mxu0
    %v769 = vmax.f32 %v731, %v766
    %s770 = scalar_lea.vmem %s0, 70
    %v771 = vld [vmem:[%s770] sm:$0x3]
    %773 = vst [vmem:[#allocation1] ss:$9 sm:$0xff] %v771
    %v774 = vld [vmem:[#allocation1] sm:$0xff]
    %v775 = vld [vmem:[#allocation1 + $0x9] sm:$0xff]
    %v777 = vsel %vm162, %v775, 0
    %779 = vmatpush.bf16.msra.mxu0 %v138
    %780 = vmatpush.bf16.msra.mxu0 %v137
    %781 = vmatpush.bf16.msra.mxu0 %v136
    %782 = vmatpush.bf16.msra.mxu0 %v135
    %783 = vmatpush.bf16.msra.mxu0 %v134
    %784 = vmatpush.bf16.msra.mxu0 %v133
    %785 = vmatpush.bf16.msra.mxu0 %v132
    %786 = vmatpush.bf16.msra.mxu0 %v131
    %787 = vmatmul.bf16.gmra.mxu0 %v774
    %v788 = vpop.f32.mrf.mxu0
    %v789 = vadd.f32 0.0, %v788
    %v790 = vpop.f32.mrf.mxu0
    %791 = vdwg.mxu0
    %792 = vmatpush.bf16.msra.mxu0 %v167
    %793 = vmatpush.bf16.msra.mxu0 %v145
    %794 = vmatpush.bf16.msra.mxu0 %v144
    %795 = vmatpush.bf16.msra.mxu0 %v143
    %796 = vmatpush.bf16.msra.mxu0 %v142
    %797 = vmatpush.bf16.msra.mxu0 %v141
    %798 = vmatpush.bf16.msra.mxu0 %v140
    %799 = vmatpush.bf16.msra.mxu0 %v139
    %800 = vmatmul.bf16.gmra.mxu0 %v777
    %v801 = vpop.f32.mrf.mxu0
    %v802 = vadd.f32 %v789, %v801
    %v803 = vpop.f32.mrf.mxu0
    %804 = vdwg.mxu0
    %v805 = vmax.f32 %v769, %v802
    %s806 = scalar_lea.vmem %s0, 102
    %v807 = vld [vmem:[%s806] sm:$0x3]
    %809 = vst [vmem:[#allocation1] ss:$9 sm:$0xff] %v807
    %v810 = vld [vmem:[#allocation1] sm:$0xff]
    %v811 = vld [vmem:[#allocation1 + $0x9] sm:$0xff]
    %v813 = vsel %vm162, %v811, 0
    %815 = vmatpush.bf16.msra.mxu0 %v138
    %816 = vmatpush.bf16.msra.mxu0 %v137
    %817 = vmatpush.bf16.msra.mxu0 %v136
    %818 = vmatpush.bf16.msra.mxu0 %v135
    %819 = vmatpush.bf16.msra.mxu0 %v134
    %820 = vmatpush.bf16.msra.mxu0 %v133
    %821 = vmatpush.bf16.msra.mxu0 %v132
    %822 = vmatpush.bf16.msra.mxu0 %v131
    %823 = vmatmul.bf16.gmra.mxu0 %v810
    %v824 = vpop.f32.mrf.mxu0
    %v825 = vadd.f32 0.0, %v824
    %v826 = vpop.f32.mrf.mxu0
    %827 = vdwg.mxu0
    %828 = vmatpush.bf16.msra.mxu0 %v167
    %829 = vmatpush.bf16.msra.mxu0 %v145
    %830 = vmatpush.bf16.msra.mxu0 %v144
    %831 = vmatpush.bf16.msra.mxu0 %v143
    %832 = vmatpush.bf16.msra.mxu0 %v142
    %833 = vmatpush.bf16.msra.mxu0 %v141
    %834 = vmatpush.bf16.msra.mxu0 %v140
    %835 = vmatpush.bf16.msra.mxu0 %v139
    %836 = vmatmul.bf16.gmra.mxu0 %v813
    %v837 = vpop.f32.mrf.mxu0
    %v838 = vadd.f32 %v825, %v837
    %v839 = vpop.f32.mrf.mxu0
    %840 = vdwg.mxu0
    %v841 = vmax.f32 %v805, %v838
    %v842 = vadd.f32 %v841, %v304
    %v843 = vmax.f32 %v842, 0.0
    %v844 = vpack.c.bf16 %v843, %v843
    %s845 = scalar_lea.vmem %s3, 36
    %v846 = vld [vmem:[%s845] sm:$0xf]
    %v847 = vld [vmem:[%s845 + $0x4] sm:$0xf]
    %v848 = vld [vmem:[%s845 + $0x8] sm:$0x3]
    %v852 = vunpack.c.l.b16 %v846
    %v853 = vunpack.c.l.b16 %v847
    %v854 = vunpack.c.l.b16 %v848
    %v855 = vpack.c.b16 %v853, %v852
    %v856 = vpack.c.b16 %v854, %v854
    %v859 = vsel %vm471, %v844, 0
    %v862 = vsel %vm475, %v856, 0
    %864 = vmatpush.bf16.msra.mxu0 0
    %865 = vmatpush.bf16.msra.mxu0 0
    %866 = vmatpush.bf16.msra.mxu0 0
    %867 = vmatpush.bf16.msra.mxu0 0
    %868 = vmatpush.bf16.msra.mxu0 0
    %869 = vmatpush.bf16.msra.mxu0 0
    %870 = vmatpush.bf16.msra.mxu0 %v862
    %871 = vmatpush.bf16.msra.mxu0 %v855
    %872 = vmatmul.bf16.gmra.mxu0 %v859
    %v873 = vpop.f32.mrf.mxu0
    %v874 = vadd.f32 0.0, %v873
    %v875 = vpop.f32.mrf.mxu0
    %876 = vdwg.mxu0
    %v877 = vadd.f32 %v698, %v874
    %s878 = scalar_lea.vmem %s0, 8
    %v879 = vld [vmem:[%s878] sm:$0x3]
    %881 = vst [vmem:[#allocation1] ss:$9 sm:$0xff] %v879
    %v882 = vld [vmem:[#allocation1] sm:$0xff]
    %v883 = vld [vmem:[#allocation1 + $0x9] sm:$0xff]
    %v885 = vsel %vm162, %v883, 0
    %887 = vmatpush.bf16.msra.mxu0 %v138
    %888 = vmatpush.bf16.msra.mxu0 %v137
    %889 = vmatpush.bf16.msra.mxu0 %v136
    %890 = vmatpush.bf16.msra.mxu0 %v135
    %891 = vmatpush.bf16.msra.mxu0 %v134
    %892 = vmatpush.bf16.msra.mxu0 %v133
    %893 = vmatpush.bf16.msra.mxu0 %v132
    %894 = vmatpush.bf16.msra.mxu0 %v131
    %895 = vmatmul.bf16.gmra.mxu0 %v882
    %v896 = vpop.f32.mrf.mxu0
    %v897 = vadd.f32 0.0, %v896
    %v898 = vpop.f32.mrf.mxu0
    %899 = vdwg.mxu0
    %900 = vmatpush.bf16.msra.mxu0 %v167
    %901 = vmatpush.bf16.msra.mxu0 %v145
    %902 = vmatpush.bf16.msra.mxu0 %v144
    %903 = vmatpush.bf16.msra.mxu0 %v143
    %904 = vmatpush.bf16.msra.mxu0 %v142
    %905 = vmatpush.bf16.msra.mxu0 %v141
    %906 = vmatpush.bf16.msra.mxu0 %v140
    %907 = vmatpush.bf16.msra.mxu0 %v139
    %908 = vmatmul.bf16.gmra.mxu0 %v885
    %v909 = vpop.f32.mrf.mxu0
    %v910 = vadd.f32 %v897, %v909
    %v911 = vpop.f32.mrf.mxu0
    %912 = vdwg.mxu0
    %s913 = scalar_lea.vmem %s0, 40
    %v914 = vld [vmem:[%s913] sm:$0x3]
    %916 = vst [vmem:[#allocation1] ss:$9 sm:$0xff] %v914
    %v917 = vld [vmem:[#allocation1] sm:$0xff]
    %v918 = vld [vmem:[#allocation1 + $0x9] sm:$0xff]
    %v920 = vsel %vm162, %v918, 0
    %922 = vmatpush.bf16.msra.mxu0 %v138
    %923 = vmatpush.bf16.msra.mxu0 %v137
    %924 = vmatpush.bf16.msra.mxu0 %v136
    %925 = vmatpush.bf16.msra.mxu0 %v135
    %926 = vmatpush.bf16.msra.mxu0 %v134
    %927 = vmatpush.bf16.msra.mxu0 %v133
    %928 = vmatpush.bf16.msra.mxu0 %v132
    %929 = vmatpush.bf16.msra.mxu0 %v131
    %930 = vmatmul.bf16.gmra.mxu0 %v917
    %v931 = vpop.f32.mrf.mxu0
    %v932 = vadd.f32 0.0, %v931
    %v933 = vpop.f32.mrf.mxu0
    %934 = vdwg.mxu0
    %935 = vmatpush.bf16.msra.mxu0 %v167
    %936 = vmatpush.bf16.msra.mxu0 %v145
    %937 = vmatpush.bf16.msra.mxu0 %v144
    %938 = vmatpush.bf16.msra.mxu0 %v143
    %939 = vmatpush.bf16.msra.mxu0 %v142
    %940 = vmatpush.bf16.msra.mxu0 %v141
    %941 = vmatpush.bf16.msra.mxu0 %v140
    %942 = vmatpush.bf16.msra.mxu0 %v139
    %943 = vmatmul.bf16.gmra.mxu0 %v920
    %v944 = vpop.f32.mrf.mxu0
    %v945 = vadd.f32 %v932, %v944
    %v946 = vpop.f32.mrf.mxu0
    %947 = vdwg.mxu0
    %v948 = vmax.f32 %v910, %v945
    %s949 = scalar_lea.vmem %s0, 72
    %v950 = vld [vmem:[%s949] sm:$0x3]
    %952 = vst [vmem:[#allocation1] ss:$9 sm:$0xff] %v950
    %v953 = vld [vmem:[#allocation1] sm:$0xff]
    %v954 = vld [vmem:[#allocation1 + $0x9] sm:$0xff]
    %v956 = vsel %vm162, %v954, 0
    %958 = vmatpush.bf16.msra.mxu0 %v138
    %959 = vmatpush.bf16.msra.mxu0 %v137
    %960 = vmatpush.bf16.msra.mxu0 %v136
    %961 = vmatpush.bf16.msra.mxu0 %v135
    %962 = vmatpush.bf16.msra.mxu0 %v134
    %963 = vmatpush.bf16.msra.mxu0 %v133
    %964 = vmatpush.bf16.msra.mxu0 %v132
    %965 = vmatpush.bf16.msra.mxu0 %v131
    %966 = vmatmul.bf16.gmra.mxu0 %v953
    %v967 = vpop.f32.mrf.mxu0
    %v968 = vadd.f32 0.0, %v967
    %v969 = vpop.f32.mrf.mxu0
    %970 = vdwg.mxu0
    %971 = vmatpush.bf16.msra.mxu0 %v167
    %972 = vmatpush.bf16.msra.mxu0 %v145
    %973 = vmatpush.bf16.msra.mxu0 %v144
    %974 = vmatpush.bf16.msra.mxu0 %v143
    %975 = vmatpush.bf16.msra.mxu0 %v142
    %976 = vmatpush.bf16.msra.mxu0 %v141
    %977 = vmatpush.bf16.msra.mxu0 %v140
    %978 = vmatpush.bf16.msra.mxu0 %v139
    %979 = vmatmul.bf16.gmra.mxu0 %v956
    %v980 = vpop.f32.mrf.mxu0
    %v981 = vadd.f32 %v968, %v980
    %v982 = vpop.f32.mrf.mxu0
    %983 = vdwg.mxu0
    %v984 = vmax.f32 %v948, %v981
    %s985 = scalar_lea.vmem %s0, 104
    %v986 = vld [vmem:[%s985] sm:$0x3]
    %988 = vst [vmem:[#allocation1] ss:$9 sm:$0xff] %v986
    %v989 = vld [vmem:[#allocation1] sm:$0xff]
    %v990 = vld [vmem:[#allocation1 + $0x9] sm:$0xff]
    %v992 = vsel %vm162, %v990, 0
    %994 = vmatpush.bf16.msra.mxu0 %v138
    %995 = vmatpush.bf16.msra.mxu0 %v137
    %996 = vmatpush.bf16.msra.mxu0 %v136
    %997 = vmatpush.bf16.msra.mxu0 %v135
    %998 = vmatpush.bf16.msra.mxu0 %v134
    %999 = vmatpush.bf16.msra.mxu0 %v133
    %1000 = vmatpush.bf16.msra.mxu0 %v132
    %1001 = vmatpush.bf16.msra.mxu0 %v131
    %1002 = vmatmul.bf16.gmra.mxu0 %v989
    %v1003 = vpop.f32.mrf.mxu0
    %v1004 = vadd.f32 0.0, %v1003
    %v1005 = vpop.f32.mrf.mxu0
    %1006 = vdwg.mxu0
    %1007 = vmatpush.bf16.msra.mxu0 %v167
    %1008 = vmatpush.bf16.msra.mxu0 %v145
    %1009 = vmatpush.bf16.msra.mxu0 %v144
    %1010 = vmatpush.bf16.msra.mxu0 %v143
    %1011 = vmatpush.bf16.msra.mxu0 %v142
    %1012 = vmatpush.bf16.msra.mxu0 %v141
    %1013 = vmatpush.bf16.msra.mxu0 %v140
    %1014 = vmatpush.bf16.msra.mxu0 %v139
    %1015 = vmatmul.bf16.gmra.mxu0 %v992
    %v1016 = vpop.f32.mrf.mxu0
    %v1017 = vadd.f32 %v1004, %v1016
    %v1018 = vpop.f32.mrf.mxu0
    %1019 = vdwg.mxu0
    %v1020 = vmax.f32 %v984, %v1017
    %v1021 = vadd.f32 %v1020, %v304
    %v1022 = vmax.f32 %v1021, 0.0
    %v1023 = vpack.c.bf16 %v1022, %v1022
    %s1024 = scalar_lea.vmem %s3, 48
    %v1025 = vld [vmem:[%s1024] sm:$0xf]
    %v1026 = vld [vmem:[%s1024 + $0x4] sm:$0xf]
    %v1027 = vld [vmem:[%s1024 + $0x8] sm:$0x3]
    %v1031 = vunpack.c.l.b16 %v1025
    %v1032 = vunpack.c.l.b16 %v1026
    %v1033 = vunpack.c.l.b16 %v1027
    %v1034 = vpack.c.b16 %v1032, %v1031
    %v1035 = vpack.c.b16 %v1033, %v1033
    %v1038 = vsel %vm471, %v1023, 0
    %v1041 = vsel %vm475, %v1035, 0
    %1043 = vmatpush.bf16.msra.mxu0 0
    %1044 = vmatpush.bf16.msra.mxu0 0
    %1045 = vmatpush.bf16.msra.mxu0 0
    %1046 = vmatpush.bf16.msra.mxu0 0
    %1047 = vmatpush.bf16.msra.mxu0 0
    %1048 = vmatpush.bf16.msra.mxu0 0
    %1049 = vmatpush.bf16.msra.mxu0 %v1041
    %1050 = vmatpush.bf16.msra.mxu0 %v1034
    %1051 = vmatmul.bf16.gmra.mxu0 %v1038
    %v1052 = vpop.f32.mrf.mxu0
    %v1053 = vadd.f32 0.0, %v1052
    %v1054 = vpop.f32.mrf.mxu0
    %1055 = vdwg.mxu0
    %v1056 = vadd.f32 %v877, %v1053
    %s1057 = scalar_lea.vmem %s0, 10
    %v1058 = vld [vmem:[%s1057] sm:$0x3]
    %1060 = vst [vmem:[#allocation1] ss:$9 sm:$0xff] %v1058
    %v1061 = vld [vmem:[#allocation1] sm:$0xff]
    %v1062 = vld [vmem:[#allocation1 + $0x9] sm:$0xff]
    %v1064 = vsel %vm162, %v1062, 0
    %1066 = vmatpush.bf16.msra.mxu0 %v138
    %1067 = vmatpush.bf16.msra.mxu0 %v137
    %1068 = vmatpush.bf16.msra.mxu0 %v136
    %1069 = vmatpush.bf16.msra.mxu0 %v135
    %1070 = vmatpush.bf16.msra.mxu0 %v134
    %1071 = vmatpush.bf16.msra.mxu0 %v133
    %1072 = vmatpush.bf16.msra.mxu0 %v132
    %1073 = vmatpush.bf16.msra.mxu0 %v131
    %1074 = vmatmul.bf16.gmra.mxu0 %v1061
    %v1075 = vpop.f32.mrf.mxu0
    %v1076 = vadd.f32 0.0, %v1075
    %v1077 = vpop.f32.mrf.mxu0
    %1078 = vdwg.mxu0
    %1079 = vmatpush.bf16.msra.mxu0 %v167
    %1080 = vmatpush.bf16.msra.mxu0 %v145
    %1081 = vmatpush.bf16.msra.mxu0 %v144
    %1082 = vmatpush.bf16.msra.mxu0 %v143
    %1083 = vmatpush.bf16.msra.mxu0 %v142
    %1084 = vmatpush.bf16.msra.mxu0 %v141
    %1085 = vmatpush.bf16.msra.mxu0 %v140
    %1086 = vmatpush.bf16.msra.mxu0 %v139
    %1087 = vmatmul.bf16.gmra.mxu0 %v1064
    %v1088 = vpop.f32.mrf.mxu0
    %v1089 = vadd.f32 %v1076, %v1088
    %v1090 = vpop.f32.mrf.mxu0
    %1091 = vdwg.mxu0
    %s1092 = scalar_lea.vmem %s0, 42
    %v1093 = vld [vmem:[%s1092] sm:$0x3]
    %1095 = vst [vmem:[#allocation1] ss:$9 sm:$0xff] %v1093
    %v1096 = vld [vmem:[#allocation1] sm:$0xff]
    %v1097 = vld [vmem:[#allocation1 + $0x9] sm:$0xff]
    %v1099 = vsel %vm162, %v1097, 0
    %1101 = vmatpush.bf16.msra.mxu0 %v138
    %1102 = vmatpush.bf16.msra.mxu0 %v137
    %1103 = vmatpush.bf16.msra.mxu0 %v136
    %1104 = vmatpush.bf16.msra.mxu0 %v135
    %1105 = vmatpush.bf16.msra.mxu0 %v134
    %1106 = vmatpush.bf16.msra.mxu0 %v133
    %1107 = vmatpush.bf16.msra.mxu0 %v132
    %1108 = vmatpush.bf16.msra.mxu0 %v131
    %1109 = vmatmul.bf16.gmra.mxu0 %v1096
    %v1110 = vpop.f32.mrf.mxu0
    %v1111 = vadd.f32 0.0, %v1110
    %v1112 = vpop.f32.mrf.mxu0
    %1113 = vdwg.mxu0
    %1114 = vmatpush.bf16.msra.mxu0 %v167
    %1115 = vmatpush.bf16.msra.mxu0 %v145
    %1116 = vmatpush.bf16.msra.mxu0 %v144
    %1117 = vmatpush.bf16.msra.mxu0 %v143
    %1118 = vmatpush.bf16.msra.mxu0 %v142
    %1119 = vmatpush.bf16.msra.mxu0 %v141
    %1120 = vmatpush.bf16.msra.mxu0 %v140
    %1121 = vmatpush.bf16.msra.mxu0 %v139
    %1122 = vmatmul.bf16.gmra.mxu0 %v1099
    %v1123 = vpop.f32.mrf.mxu0
    %v1124 = vadd.f32 %v1111, %v1123
    %v1125 = vpop.f32.mrf.mxu0
    %1126 = vdwg.mxu0
    %v1127 = vmax.f32 %v1089, %v1124
    %s1128 = scalar_lea.vmem %s0, 74
    %v1129 = vld [vmem:[%s1128] sm:$0x3]
    %1131 = vst [vmem:[#allocation1] ss:$9 sm:$0xff] %v1129
    %v1132 = vld [vmem:[#allocation1] sm:$0xff]
    %v1133 = vld [vmem:[#allocation1 + $0x9] sm:$0xff]
    %v1135 = vsel %vm162, %v1133, 0
    %1137 = vmatpush.bf16.msra.mxu0 %v138
    %1138 = vmatpush.bf16.msra.mxu0 %v137
    %1139 = vmatpush.bf16.msra.mxu0 %v136
    %1140 = vmatpush.bf16.msra.mxu0 %v135
    %1141 = vmatpush.bf16.msra.mxu0 %v134
    %1142 = vmatpush.bf16.msra.mxu0 %v133
    %1143 = vmatpush.bf16.msra.mxu0 %v132
    %1144 = vmatpush.bf16.msra.mxu0 %v131
    %1145 = vmatmul.bf16.gmra.mxu0 %v1132
    %v1146 = vpop.f32.mrf.mxu0
    %v1147 = vadd.f32 0.0, %v1146
    %v1148 = vpop.f32.mrf.mxu0
    %1149 = vdwg.mxu0
    %1150 = vmatpush.bf16.msra.mxu0 %v167
    %1151 = vmatpush.bf16.msra.mxu0 %v145
    %1152 = vmatpush.bf16.msra.mxu0 %v144
    %1153 = vmatpush.bf16.msra.mxu0 %v143
    %1154 = vmatpush.bf16.msra.mxu0 %v142
    %1155 = vmatpush.bf16.msra.mxu0 %v141
    %1156 = vmatpush.bf16.msra.mxu0 %v140
    %1157 = vmatpush.bf16.msra.mxu0 %v139
    %1158 = vmatmul.bf16.gmra.mxu0 %v1135
    %v1159 = vpop.f32.mrf.mxu0
    %v1160 = vadd.f32 %v1147, %v1159
    %v1161 = vpop.f32.mrf.mxu0
    %1162 = vdwg.mxu0
    %v1163 = vmax.f32 %v1127, %v1160
    %s1164 = scalar_lea.vmem %s0, 106
    %v1165 = vld [vmem:[%s1164] sm:$0x3]
    %1167 = vst [vmem:[#allocation1] ss:$9 sm:$0xff] %v1165
    %v1168 = vld [vmem:[#allocation1] sm:$0xff]
    %v1169 = vld [vmem:[#allocation1 + $0x9] sm:$0xff]
    %v1171 = vsel %vm162, %v1169, 0
    %1173 = vmatpush.bf16.msra.mxu0 %v138
    %1174 = vmatpush.bf16.msra.mxu0 %v137
    %1175 = vmatpush.bf16.msra.mxu0 %v136
    %1176 = vmatpush.bf16.msra.mxu0 %v135
    %1177 = vmatpush.bf16.msra.mxu0 %v134
    %1178 = vmatpush.bf16.msra.mxu0 %v133
    %1179 = vmatpush.bf16.msra.mxu0 %v132
    %1180 = vmatpush.bf16.msra.mxu0 %v131
    %1181 = vmatmul.bf16.gmra.mxu0 %v1168
    %v1182 = vpop.f32.mrf.mxu0
    %v1183 = vadd.f32 0.0, %v1182
    %v1184 = vpop.f32.mrf.mxu0
    %1185 = vdwg.mxu0
    %1186 = vmatpush.bf16.msra.mxu0 %v167
    %1187 = vmatpush.bf16.msra.mxu0 %v145
    %1188 = vmatpush.bf16.msra.mxu0 %v144
    %1189 = vmatpush.bf16.msra.mxu0 %v143
    %1190 = vmatpush.bf16.msra.mxu0 %v142
    %1191 = vmatpush.bf16.msra.mxu0 %v141
    %1192 = vmatpush.bf16.msra.mxu0 %v140
    %1193 = vmatpush.bf16.msra.mxu0 %v139
    %1194 = vmatmul.bf16.gmra.mxu0 %v1171
    %v1195 = vpop.f32.mrf.mxu0
    %v1196 = vadd.f32 %v1183, %v1195
    %v1197 = vpop.f32.mrf.mxu0
    %1198 = vdwg.mxu0
    %v1199 = vmax.f32 %v1163, %v1196
    %v1200 = vadd.f32 %v1199, %v304
    %v1201 = vmax.f32 %v1200, 0.0
    %v1202 = vpack.c.bf16 %v1201, %v1201
    %s1203 = scalar_lea.vmem %s3, 60
    %v1204 = vld [vmem:[%s1203] sm:$0xf]
    %v1205 = vld [vmem:[%s1203 + $0x4] sm:$0xf]
    %v1206 = vld [vmem:[%s1203 + $0x8] sm:$0x3]
    %v1210 = vunpack.c.l.b16 %v1204
    %v1211 = vunpack.c.l.b16 %v1205
    %v1212 = vunpack.c.l.b16 %v1206
    %v1213 = vpack.c.b16 %v1211, %v1210
    %v1214 = vpack.c.b16 %v1212, %v1212
    %v1217 = vsel %vm471, %v1202, 0
    %v1220 = vsel %vm475, %v1214, 0
    %1222 = vmatpush.bf16.msra.mxu0 0
    %1223 = vmatpush.bf16.msra.mxu0 0
    %1224 = vmatpush.bf16.msra.mxu0 0
    %1225 = vmatpush.bf16.msra.mxu0 0
    %1226 = vmatpush.bf16.msra.mxu0 0
    %1227 = vmatpush.bf16.msra.mxu0 0
    %1228 = vmatpush.bf16.msra.mxu0 %v1220
    %1229 = vmatpush.bf16.msra.mxu0 %v1213
    %1230 = vmatmul.bf16.gmra.mxu0 %v1217
    %v1231 = vpop.f32.mrf.mxu0
    %v1232 = vadd.f32 0.0, %v1231
    %v1233 = vpop.f32.mrf.mxu0
    %1234 = vdwg.mxu0
    %v1235 = vadd.f32 %v1056, %v1232
    %s1236 = scalar_lea.vmem %s0, 12
    %v1237 = vld [vmem:[%s1236] sm:$0x3]
    %1239 = vst [vmem:[#allocation1] ss:$9 sm:$0xff] %v1237
    %v1240 = vld [vmem:[#allocation1] sm:$0xff]
    %v1241 = vld [vmem:[#allocation1 + $0x9] sm:$0xff]
    %v1243 = vsel %vm162, %v1241, 0
    %1245 = vmatpush.bf16.msra.mxu0 %v138
    %1246 = vmatpush.bf16.msra.mxu0 %v137
    %1247 = vmatpush.bf16.msra.mxu0 %v136
    %1248 = vmatpush.bf16.msra.mxu0 %v135
    %1249 = vmatpush.bf16.msra.mxu0 %v134
    %1250 = vmatpush.bf16.msra.mxu0 %v133
    %1251 = vmatpush.bf16.msra.mxu0 %v132
    %1252 = vmatpush.bf16.msra.mxu0 %v131
    %1253 = vmatmul.bf16.gmra.mxu0 %v1240
    %v1254 = vpop.f32.mrf.mxu0
    %v1255 = vadd.f32 0.0, %v1254
    %v1256 = vpop.f32.mrf.mxu0
    %1257 = vdwg.mxu0
    %1258 = vmatpush.bf16.msra.mxu0 %v167
    %1259 = vmatpush.bf16.msra.mxu0 %v145
    %1260 = vmatpush.bf16.msra.mxu0 %v144
    %1261 = vmatpush.bf16.msra.mxu0 %v143
    %1262 = vmatpush.bf16.msra.mxu0 %v142
    %1263 = vmatpush.bf16.msra.mxu0 %v141
    %1264 = vmatpush.bf16.msra.mxu0 %v140
    %1265 = vmatpush.bf16.msra.mxu0 %v139
    %1266 = vmatmul.bf16.gmra.mxu0 %v1243
    %v1267 = vpop.f32.mrf.mxu0
    %v1268 = vadd.f32 %v1255, %v1267
    %v1269 = vpop.f32.mrf.mxu0
    %1270 = vdwg.mxu0
    %s1271 = scalar_lea.vmem %s0, 44
    %v1272 = vld [vmem:[%s1271] sm:$0x3]
    %1274 = vst [vmem:[#allocation1] ss:$9 sm:$0xff] %v1272
    %v1275 = vld [vmem:[#allocation1] sm:$0xff]
    %v1276 = vld [vmem:[#allocation1 + $0x9] sm:$0xff]
    %v1278 = vsel %vm162, %v1276, 0
    %1280 = vmatpush.bf16.msra.mxu0 %v138
    %1281 = vmatpush.bf16.msra.mxu0 %v137
    %1282 = vmatpush.bf16.msra.mxu0 %v136
    %1283 = vmatpush.bf16.msra.mxu0 %v135
    %1284 = vmatpush.bf16.msra.mxu0 %v134
    %1285 = vmatpush.bf16.msra.mxu0 %v133
    %1286 = vmatpush.bf16.msra.mxu0 %v132
    %1287 = vmatpush.bf16.msra.mxu0 %v131
    %1288 = vmatmul.bf16.gmra.mxu0 %v1275
    %v1289 = vpop.f32.mrf.mxu0
    %v1290 = vadd.f32 0.0, %v1289
    %v1291 = vpop.f32.mrf.mxu0
    %1292 = vdwg.mxu0
    %1293 = vmatpush.bf16.msra.mxu0 %v167
    %1294 = vmatpush.bf16.msra.mxu0 %v145
    %1295 = vmatpush.bf16.msra.mxu0 %v144
    %1296 = vmatpush.bf16.msra.mxu0 %v143
    %1297 = vmatpush.bf16.msra.mxu0 %v142
    %1298 = vmatpush.bf16.msra.mxu0 %v141
    %1299 = vmatpush.bf16.msra.mxu0 %v140
    %1300 = vmatpush.bf16.msra.mxu0 %v139
    %1301 = vmatmul.bf16.gmra.mxu0 %v1278
    %v1302 = vpop.f32.mrf.mxu0
    %v1303 = vadd.f32 %v1290, %v1302
    %v1304 = vpop.f32.mrf.mxu0
    %1305 = vdwg.mxu0
    %v1306 = vmax.f32 %v1268, %v1303
    %s1307 = scalar_lea.vmem %s0, 76
    %v1308 = vld [vmem:[%s1307] sm:$0x3]
    %1310 = vst [vmem:[#allocation1] ss:$9 sm:$0xff] %v1308
    %v1311 = vld [vmem:[#allocation1] sm:$0xff]
    %v1312 = vld [vmem:[#allocation1 + $0x9] sm:$0xff]
    %v1314 = vsel %vm162, %v1312, 0
    %1316 = vmatpush.bf16.msra.mxu0 %v138
    %1317 = vmatpush.bf16.msra.mxu0 %v137
    %1318 = vmatpush.bf16.msra.mxu0 %v136
    %1319 = vmatpush.bf16.msra.mxu0 %v135
    %1320 = vmatpush.bf16.msra.mxu0 %v134
    %1321 = vmatpush.bf16.msra.mxu0 %v133
    %1322 = vmatpush.bf16.msra.mxu0 %v132
    %1323 = vmatpush.bf16.msra.mxu0 %v131
    %1324 = vmatmul.bf16.gmra.mxu0 %v1311
    %v1325 = vpop.f32.mrf.mxu0
    %v1326 = vadd.f32 0.0, %v1325
    %v1327 = vpop.f32.mrf.mxu0
    %1328 = vdwg.mxu0
    %1329 = vmatpush.bf16.msra.mxu0 %v167
    %1330 = vmatpush.bf16.msra.mxu0 %v145
    %1331 = vmatpush.bf16.msra.mxu0 %v144
    %1332 = vmatpush.bf16.msra.mxu0 %v143
    %1333 = vmatpush.bf16.msra.mxu0 %v142
    %1334 = vmatpush.bf16.msra.mxu0 %v141
    %1335 = vmatpush.bf16.msra.mxu0 %v140
    %1336 = vmatpush.bf16.msra.mxu0 %v139
    %1337 = vmatmul.bf16.gmra.mxu0 %v1314
    %v1338 = vpop.f32.mrf.mxu0
    %v1339 = vadd.f32 %v1326, %v1338
    %v1340 = vpop.f32.mrf.mxu0
    %1341 = vdwg.mxu0
    %v1342 = vmax.f32 %v1306, %v1339
    %s1343 = scalar_lea.vmem %s0, 108
    %v1344 = vld [vmem:[%s1343] sm:$0x3]
    %1346 = vst [vmem:[#allocation1] ss:$9 sm:$0xff] %v1344
    %v1347 = vld [vmem:[#allocation1] sm:$0xff]
    %v1348 = vld [vmem:[#allocation1 + $0x9] sm:$0xff]
    %v1350 = vsel %vm162, %v1348, 0
    %1352 = vmatpush.bf16.msra.mxu0 %v138
    %1353 = vmatpush.bf16.msra.mxu0 %v137
    %1354 = vmatpush.bf16.msra.mxu0 %v136
    %1355 = vmatpush.bf16.msra.mxu0 %v135
    %1356 = vmatpush.bf16.msra.mxu0 %v134
    %1357 = vmatpush.bf16.msra.mxu0 %v133
    %1358 = vmatpush.bf16.msra.mxu0 %v132
    %1359 = vmatpush.bf16.msra.mxu0 %v131
    %1360 = vmatmul.bf16.gmra.mxu0 %v1347
    %v1361 = vpop.f32.mrf.mxu0
    %v1362 = vadd.f32 0.0, %v1361
    %v1363 = vpop.f32.mrf.mxu0
    %1364 = vdwg.mxu0
    %1365 = vmatpush.bf16.msra.mxu0 %v167
    %1366 = vmatpush.bf16.msra.mxu0 %v145
    %1367 = vmatpush.bf16.msra.mxu0 %v144
    %1368 = vmatpush.bf16.msra.mxu0 %v143
    %1369 = vmatpush.bf16.msra.mxu0 %v142
    %1370 = vmatpush.bf16.msra.mxu0 %v141
    %1371 = vmatpush.bf16.msra.mxu0 %v140
    %1372 = vmatpush.bf16.msra.mxu0 %v139
    %1373 = vmatmul.bf16.gmra.mxu0 %v1350
    %v1374 = vpop.f32.mrf.mxu0
    %v1375 = vadd.f32 %v1362, %v1374
    %v1376 = vpop.f32.mrf.mxu0
    %1377 = vdwg.mxu0
    %v1378 = vmax.f32 %v1342, %v1375
    %v1379 = vadd.f32 %v1378, %v304
    %v1380 = vmax.f32 %v1379, 0.0
    %v1381 = vpack.c.bf16 %v1380, %v1380
    %s1382 = scalar_lea.vmem %s3, 72
    %v1383 = vld [vmem:[%s1382] sm:$0xf]
    %v1384 = vld [vmem:[%s1382 + $0x4] sm:$0xf]
    %v1385 = vld [vmem:[%s1382 + $0x8] sm:$0x3]
    %v1389 = vunpack.c.l.b16 %v1383
    %v1390 = vunpack.c.l.b16 %v1384
    %v1391 = vunpack.c.l.b16 %v1385
    %v1392 = vpack.c.b16 %v1390, %v1389
    %v1393 = vpack.c.b16 %v1391, %v1391
    %v1396 = vsel %vm471, %v1381, 0
    %v1399 = vsel %vm475, %v1393, 0
    %1401 = vmatpush.bf16.msra.mxu0 0
    %1402 = vmatpush.bf16.msra.mxu0 0
    %1403 = vmatpush.bf16.msra.mxu0 0
    %1404 = vmatpush.bf16.msra.mxu0 0
    %1405 = vmatpush.bf16.msra.mxu0 0
    %1406 = vmatpush.bf16.msra.mxu0 0
    %1407 = vmatpush.bf16.msra.mxu0 %v1399
    %1408 = vmatpush.bf16.msra.mxu0 %v1392
    %1409 = vmatmul.bf16.gmra.mxu0 %v1396
    %v1410 = vpop.f32.mrf.mxu0
    %v1411 = vadd.f32 0.0, %v1410
    %v1412 = vpop.f32.mrf.mxu0
    %1413 = vdwg.mxu0
    %v1414 = vadd.f32 %v1235, %v1411
    %s1415 = scalar_lea.vmem %s0, 14
    %v1416 = vld [vmem:[%s1415] sm:$0x3]
    %1418 = vst [vmem:[#allocation1] ss:$9 sm:$0xff] %v1416
    %v1419 = vld [vmem:[#allocation1] sm:$0xff]
    %v1420 = vld [vmem:[#allocation1 + $0x9] sm:$0xff]
    %v1422 = vsel %vm162, %v1420, 0
    %1424 = vmatpush.bf16.msra.mxu0 %v138
    %1425 = vmatpush.bf16.msra.mxu0 %v137
    %1426 = vmatpush.bf16.msra.mxu0 %v136
    %1427 = vmatpush.bf16.msra.mxu0 %v135
    %1428 = vmatpush.bf16.msra.mxu0 %v134
    %1429 = vmatpush.bf16.msra.mxu0 %v133
    %1430 = vmatpush.bf16.msra.mxu0 %v132
    %1431 = vmatpush.bf16.msra.mxu0 %v131
    %1432 = vmatmul.bf16.gmra.mxu0 %v1419
    %v1433 = vpop.f32.mrf.mxu0
    %v1434 = vadd.f32 0.0, %v1433
    %v1435 = vpop.f32.mrf.mxu0
    %1436 = vdwg.mxu0
    %1437 = vmatpush.bf16.msra.mxu0 %v167
    %1438 = vmatpush.bf16.msra.mxu0 %v145
    %1439 = vmatpush.bf16.msra.mxu0 %v144
    %1440 = vmatpush.bf16.msra.mxu0 %v143
    %1441 = vmatpush.bf16.msra.mxu0 %v142
    %1442 = vmatpush.bf16.msra.mxu0 %v141
    %1443 = vmatpush.bf16.msra.mxu0 %v140
    %1444 = vmatpush.bf16.msra.mxu0 %v139
    %1445 = vmatmul.bf16.gmra.mxu0 %v1422
    %v1446 = vpop.f32.mrf.mxu0
    %v1447 = vadd.f32 %v1434, %v1446
    %v1448 = vpop.f32.mrf.mxu0
    %1449 = vdwg.mxu0
    %s1450 = scalar_lea.vmem %s0, 46
    %v1451 = vld [vmem:[%s1450] sm:$0x3]
    %1453 = vst [vmem:[#allocation1] ss:$9 sm:$0xff] %v1451
    %v1454 = vld [vmem:[#allocation1] sm:$0xff]
    %v1455 = vld [vmem:[#allocation1 + $0x9] sm:$0xff]
    %v1457 = vsel %vm162, %v1455, 0
    %1459 = vmatpush.bf16.msra.mxu0 %v138
    %1460 = vmatpush.bf16.msra.mxu0 %v137
    %1461 = vmatpush.bf16.msra.mxu0 %v136
    %1462 = vmatpush.bf16.msra.mxu0 %v135
    %1463 = vmatpush.bf16.msra.mxu0 %v134
    %1464 = vmatpush.bf16.msra.mxu0 %v133
    %1465 = vmatpush.bf16.msra.mxu0 %v132
    %1466 = vmatpush.bf16.msra.mxu0 %v131
    %1467 = vmatmul.bf16.gmra.mxu0 %v1454
    %v1468 = vpop.f32.mrf.mxu0
    %v1469 = vadd.f32 0.0, %v1468
    %v1470 = vpop.f32.mrf.mxu0
    %1471 = vdwg.mxu0
    %1472 = vmatpush.bf16.msra.mxu0 %v167
    %1473 = vmatpush.bf16.msra.mxu0 %v145
    %1474 = vmatpush.bf16.msra.mxu0 %v144
    %1475 = vmatpush.bf16.msra.mxu0 %v143
    %1476 = vmatpush.bf16.msra.mxu0 %v142
    %1477 = vmatpush.bf16.msra.mxu0 %v141
    %1478 = vmatpush.bf16.msra.mxu0 %v140
    %1479 = vmatpush.bf16.msra.mxu0 %v139
    %1480 = vmatmul.bf16.gmra.mxu0 %v1457
    %v1481 = vpop.f32.mrf.mxu0
    %v1482 = vadd.f32 %v1469, %v1481
    %v1483 = vpop.f32.mrf.mxu0
    %1484 = vdwg.mxu0
    %v1485 = vmax.f32 %v1447, %v1482
    %s1486 = scalar_lea.vmem %s0, 78
    %v1487 = vld [vmem:[%s1486] sm:$0x3]
    %1489 = vst [vmem:[#allocation1] ss:$9 sm:$0xff] %v1487
    %v1490 = vld [vmem:[#allocation1] sm:$0xff]
    %v1491 = vld [vmem:[#allocation1 + $0x9] sm:$0xff]
    %v1493 = vsel %vm162, %v1491, 0
    %1495 = vmatpush.bf16.msra.mxu0 %v138
    %1496 = vmatpush.bf16.msra.mxu0 %v137
    %1497 = vmatpush.bf16.msra.mxu0 %v136
    %1498 = vmatpush.bf16.msra.mxu0 %v135
    %1499 = vmatpush.bf16.msra.mxu0 %v134
    %1500 = vmatpush.bf16.msra.mxu0 %v133
    %1501 = vmatpush.bf16.msra.mxu0 %v132
    %1502 = vmatpush.bf16.msra.mxu0 %v131
    %1503 = vmatmul.bf16.gmra.mxu0 %v1490
    %v1504 = vpop.f32.mrf.mxu0
    %v1505 = vadd.f32 0.0, %v1504
    %v1506 = vpop.f32.mrf.mxu0
    %1507 = vdwg.mxu0
    %1508 = vmatpush.bf16.msra.mxu0 %v167
    %1509 = vmatpush.bf16.msra.mxu0 %v145
    %1510 = vmatpush.bf16.msra.mxu0 %v144
    %1511 = vmatpush.bf16.msra.mxu0 %v143
    %1512 = vmatpush.bf16.msra.mxu0 %v142
    %1513 = vmatpush.bf16.msra.mxu0 %v141
    %1514 = vmatpush.bf16.msra.mxu0 %v140
    %1515 = vmatpush.bf16.msra.mxu0 %v139
    %1516 = vmatmul.bf16.gmra.mxu0 %v1493
    %v1517 = vpop.f32.mrf.mxu0
    %v1518 = vadd.f32 %v1505, %v1517
    %v1519 = vpop.f32.mrf.mxu0
    %1520 = vdwg.mxu0
    %v1521 = vmax.f32 %v1485, %v1518
    %s1522 = scalar_lea.vmem %s0, 110
    %v1523 = vld [vmem:[%s1522] sm:$0x3]
    %1525 = vst [vmem:[#allocation1] ss:$9 sm:$0xff] %v1523
    %v1526 = vld [vmem:[#allocation1] sm:$0xff]
    %v1527 = vld [vmem:[#allocation1 + $0x9] sm:$0xff]
    %v1529 = vsel %vm162, %v1527, 0
    %1531 = vmatpush.bf16.msra.mxu0 %v138
    %1532 = vmatpush.bf16.msra.mxu0 %v137
    %1533 = vmatpush.bf16.msra.mxu0 %v136
    %1534 = vmatpush.bf16.msra.mxu0 %v135
    %1535 = vmatpush.bf16.msra.mxu0 %v134
    %1536 = vmatpush.bf16.msra.mxu0 %v133
    %1537 = vmatpush.bf16.msra.mxu0 %v132
    %1538 = vmatpush.bf16.msra.mxu0 %v131
    %1539 = vmatmul.bf16.gmra.mxu0 %v1526
    %v1540 = vpop.f32.mrf.mxu0
    %v1541 = vadd.f32 0.0, %v1540
    %v1542 = vpop.f32.mrf.mxu0
    %1543 = vdwg.mxu0
    %1544 = vmatpush.bf16.msra.mxu0 %v167
    %1545 = vmatpush.bf16.msra.mxu0 %v145
    %1546 = vmatpush.bf16.msra.mxu0 %v144
    %1547 = vmatpush.bf16.msra.mxu0 %v143
    %1548 = vmatpush.bf16.msra.mxu0 %v142
    %1549 = vmatpush.bf16.msra.mxu0 %v141
    %1550 = vmatpush.bf16.msra.mxu0 %v140
    %1551 = vmatpush.bf16.msra.mxu0 %v139
    %1552 = vmatmul.bf16.gmra.mxu0 %v1529
    %v1553 = vpop.f32.mrf.mxu0
    %v1554 = vadd.f32 %v1541, %v1553
    %v1555 = vpop.f32.mrf.mxu0
    %1556 = vdwg.mxu0
    %v1557 = vmax.f32 %v1521, %v1554
    %v1558 = vadd.f32 %v1557, %v304
    %v1559 = vmax.f32 %v1558, 0.0
    %v1560 = vpack.c.bf16 %v1559, %v1559
    %s1561 = scalar_lea.vmem %s3, 84
    %v1562 = vld [vmem:[%s1561] sm:$0xf]
    %v1563 = vld [vmem:[%s1561 + $0x4] sm:$0xf]
    %v1564 = vld [vmem:[%s1561 + $0x8] sm:$0x3]
    %v1568 = vunpack.c.l.b16 %v1562
    %v1569 = vunpack.c.l.b16 %v1563
    %v1570 = vunpack.c.l.b16 %v1564
    %v1571 = vpack.c.b16 %v1569, %v1568
    %v1572 = vpack.c.b16 %v1570, %v1570
    %v1575 = vsel %vm471, %v1560, 0
    %v1578 = vsel %vm475, %v1572, 0
    %1580 = vmatpush.bf16.msra.mxu0 0
    %1581 = vmatpush.bf16.msra.mxu0 0
    %1582 = vmatpush.bf16.msra.mxu0 0
    %1583 = vmatpush.bf16.msra.mxu0 0
    %1584 = vmatpush.bf16.msra.mxu0 0
    %1585 = vmatpush.bf16.msra.mxu0 0
    %1586 = vmatpush.bf16.msra.mxu0 %v1578
    %1587 = vmatpush.bf16.msra.mxu0 %v1571
    %1588 = vmatmul.bf16.gmra.mxu0 %v1575
    %v1589 = vpop.f32.mrf.mxu0
    %v1590 = vadd.f32 0.0, %v1589
    %v1591 = vpop.f32.mrf.mxu0
    %1592 = vdwg.mxu0
    %v1593 = vadd.f32 %v1414, %v1590
    %s1594 = scalar_lea.vmem %s0, 16
    %v1595 = vld [vmem:[%s1594] sm:$0x3]
    %1597 = vst [vmem:[#allocation1] ss:$9 sm:$0xff] %v1595
    %v1598 = vld [vmem:[#allocation1] sm:$0xff]
    %v1599 = vld [vmem:[#allocation1 + $0x9] sm:$0xff]
    %v1601 = vsel %vm162, %v1599, 0
    %1603 = vmatpush.bf16.msra.mxu0 %v138
    %1604 = vmatpush.bf16.msra.mxu0 %v137
    %1605 = vmatpush.bf16.msra.mxu0 %v136
    %1606 = vmatpush.bf16.msra.mxu0 %v135
    %1607 = vmatpush.bf16.msra.mxu0 %v134
    %1608 = vmatpush.bf16.msra.mxu0 %v133
    %1609 = vmatpush.bf16.msra.mxu0 %v132
    %1610 = vmatpush.bf16.msra.mxu0 %v131
    %1611 = vmatmul.bf16.gmra.mxu0 %v1598
    %v1612 = vpop.f32.mrf.mxu0
    %v1613 = vadd.f32 0.0, %v1612
    %v1614 = vpop.f32.mrf.mxu0
    %1615 = vdwg.mxu0
    %1616 = vmatpush.bf16.msra.mxu0 %v167
    %1617 = vmatpush.bf16.msra.mxu0 %v145
    %1618 = vmatpush.bf16.msra.mxu0 %v144
    %1619 = vmatpush.bf16.msra.mxu0 %v143
    %1620 = vmatpush.bf16.msra.mxu0 %v142
    %1621 = vmatpush.bf16.msra.mxu0 %v141
    %1622 = vmatpush.bf16.msra.mxu0 %v140
    %1623 = vmatpush.bf16.msra.mxu0 %v139
    %1624 = vmatmul.bf16.gmra.mxu0 %v1601
    %v1625 = vpop.f32.mrf.mxu0
    %v1626 = vadd.f32 %v1613, %v1625
    %v1627 = vpop.f32.mrf.mxu0
    %1628 = vdwg.mxu0
    %s1629 = scalar_lea.vmem %s0, 48
    %v1630 = vld [vmem:[%s1629] sm:$0x3]
    %1632 = vst [vmem:[#allocation1] ss:$9 sm:$0xff] %v1630
    %v1633 = vld [vmem:[#allocation1] sm:$0xff]
    %v1634 = vld [vmem:[#allocation1 + $0x9] sm:$0xff]
    %v1636 = vsel %vm162, %v1634, 0
    %1638 = vmatpush.bf16.msra.mxu0 %v138
    %1639 = vmatpush.bf16.msra.mxu0 %v137
    %1640 = vmatpush.bf16.msra.mxu0 %v136
    %1641 = vmatpush.bf16.msra.mxu0 %v135
    %1642 = vmatpush.bf16.msra.mxu0 %v134
    %1643 = vmatpush.bf16.msra.mxu0 %v133
    %1644 = vmatpush.bf16.msra.mxu0 %v132
    %1645 = vmatpush.bf16.msra.mxu0 %v131
    %1646 = vmatmul.bf16.gmra.mxu0 %v1633
    %v1647 = vpop.f32.mrf.mxu0
    %v1648 = vadd.f32 0.0, %v1647
    %v1649 = vpop.f32.mrf.mxu0
    %1650 = vdwg.mxu0
    %1651 = vmatpush.bf16.msra.mxu0 %v167
    %1652 = vmatpush.bf16.msra.mxu0 %v145
    %1653 = vmatpush.bf16.msra.mxu0 %v144
    %1654 = vmatpush.bf16.msra.mxu0 %v143
    %1655 = vmatpush.bf16.msra.mxu0 %v142
    %1656 = vmatpush.bf16.msra.mxu0 %v141
    %1657 = vmatpush.bf16.msra.mxu0 %v140
    %1658 = vmatpush.bf16.msra.mxu0 %v139
    %1659 = vmatmul.bf16.gmra.mxu0 %v1636
    %v1660 = vpop.f32.mrf.mxu0
    %v1661 = vadd.f32 %v1648, %v1660
    %v1662 = vpop.f32.mrf.mxu0
    %1663 = vdwg.mxu0
    %v1664 = vmax.f32 %v1626, %v1661
    %s1665 = scalar_lea.vmem %s0, 80
    %v1666 = vld [vmem:[%s1665] sm:$0x3]
    %1668 = vst [vmem:[#allocation1] ss:$9 sm:$0xff] %v1666
    %v1669 = vld [vmem:[#allocation1] sm:$0xff]
    %v1670 = vld [vmem:[#allocation1 + $0x9] sm:$0xff]
    %v1672 = vsel %vm162, %v1670, 0
    %1674 = vmatpush.bf16.msra.mxu0 %v138
    %1675 = vmatpush.bf16.msra.mxu0 %v137
    %1676 = vmatpush.bf16.msra.mxu0 %v136
    %1677 = vmatpush.bf16.msra.mxu0 %v135
    %1678 = vmatpush.bf16.msra.mxu0 %v134
    %1679 = vmatpush.bf16.msra.mxu0 %v133
    %1680 = vmatpush.bf16.msra.mxu0 %v132
    %1681 = vmatpush.bf16.msra.mxu0 %v131
    %1682 = vmatmul.bf16.gmra.mxu0 %v1669
    %v1683 = vpop.f32.mrf.mxu0
    %v1684 = vadd.f32 0.0, %v1683
    %v1685 = vpop.f32.mrf.mxu0
    %1686 = vdwg.mxu0
    %1687 = vmatpush.bf16.msra.mxu0 %v167
    %1688 = vmatpush.bf16.msra.mxu0 %v145
    %1689 = vmatpush.bf16.msra.mxu0 %v144
    %1690 = vmatpush.bf16.msra.mxu0 %v143
    %1691 = vmatpush.bf16.msra.mxu0 %v142
    %1692 = vmatpush.bf16.msra.mxu0 %v141
    %1693 = vmatpush.bf16.msra.mxu0 %v140
    %1694 = vmatpush.bf16.msra.mxu0 %v139
    %1695 = vmatmul.bf16.gmra.mxu0 %v1672
    %v1696 = vpop.f32.mrf.mxu0
    %v1697 = vadd.f32 %v1684, %v1696
    %v1698 = vpop.f32.mrf.mxu0
    %1699 = vdwg.mxu0
    %v1700 = vmax.f32 %v1664, %v1697
    %s1701 = scalar_lea.vmem %s0, 112
    %v1702 = vld [vmem:[%s1701] sm:$0x3]
    %1704 = vst [vmem:[#allocation1] ss:$9 sm:$0xff] %v1702
    %v1705 = vld [vmem:[#allocation1] sm:$0xff]
    %v1706 = vld [vmem:[#allocation1 + $0x9] sm:$0xff]
    %v1708 = vsel %vm162, %v1706, 0
    %1710 = vmatpush.bf16.msra.mxu0 %v138
    %1711 = vmatpush.bf16.msra.mxu0 %v137
    %1712 = vmatpush.bf16.msra.mxu0 %v136
    %1713 = vmatpush.bf16.msra.mxu0 %v135
    %1714 = vmatpush.bf16.msra.mxu0 %v134
    %1715 = vmatpush.bf16.msra.mxu0 %v133
    %1716 = vmatpush.bf16.msra.mxu0 %v132
    %1717 = vmatpush.bf16.msra.mxu0 %v131
    %1718 = vmatmul.bf16.gmra.mxu0 %v1705
    %v1719 = vpop.f32.mrf.mxu0
    %v1720 = vadd.f32 0.0, %v1719
    %v1721 = vpop.f32.mrf.mxu0
    %1722 = vdwg.mxu0
    %1723 = vmatpush.bf16.msra.mxu0 %v167
    %1724 = vmatpush.bf16.msra.mxu0 %v145
    %1725 = vmatpush.bf16.msra.mxu0 %v144
    %1726 = vmatpush.bf16.msra.mxu0 %v143
    %1727 = vmatpush.bf16.msra.mxu0 %v142
    %1728 = vmatpush.bf16.msra.mxu0 %v141
    %1729 = vmatpush.bf16.msra.mxu0 %v140
    %1730 = vmatpush.bf16.msra.mxu0 %v139
    %1731 = vmatmul.bf16.gmra.mxu0 %v1708
    %v1732 = vpop.f32.mrf.mxu0
    %v1733 = vadd.f32 %v1720, %v1732
    %v1734 = vpop.f32.mrf.mxu0
    %1735 = vdwg.mxu0
    %v1736 = vmax.f32 %v1700, %v1733
    %v1737 = vadd.f32 %v1736, %v304
    %v1738 = vmax.f32 %v1737, 0.0
    %v1739 = vpack.c.bf16 %v1738, %v1738
    %s1740 = scalar_lea.vmem %s3, 96
    %v1741 = vld [vmem:[%s1740] sm:$0xf]
    %v1742 = vld [vmem:[%s1740 + $0x4] sm:$0xf]
    %v1743 = vld [vmem:[%s1740 + $0x8] sm:$0x3]
    %v1747 = vunpack.c.l.b16 %v1741
    %v1748 = vunpack.c.l.b16 %v1742
    %v1749 = vunpack.c.l.b16 %v1743
    %v1750 = vpack.c.b16 %v1748, %v1747
    %v1751 = vpack.c.b16 %v1749, %v1749
    %v1754 = vsel %vm471, %v1739, 0
    %v1757 = vsel %vm475, %v1751, 0
    %1759 = vmatpush.bf16.msra.mxu0 0
    %1760 = vmatpush.bf16.msra.mxu0 0
    %1761 = vmatpush.bf16.msra.mxu0 0
    %1762 = vmatpush.bf16.msra.mxu0 0
    %1763 = vmatpush.bf16.msra.mxu0 0
    %1764 = vmatpush.bf16.msra.mxu0 0
    %1765 = vmatpush.bf16.msra.mxu0 %v1757
    %1766 = vmatpush.bf16.msra.mxu0 %v1750
    %1767 = vmatmul.bf16.gmra.mxu0 %v1754
    %v1768 = vpop.f32.mrf.mxu0
    %v1769 = vadd.f32 0.0, %v1768
    %v1770 = vpop.f32.mrf.mxu0
    %1771 = vdwg.mxu0
    %v1772 = vadd.f32 %v1593, %v1769
    %s1773 = scalar_lea.vmem %s0, 18
    %v1774 = vld [vmem:[%s1773] sm:$0x3]
    %1776 = vst [vmem:[#allocation1] ss:$9 sm:$0xff] %v1774
    %v1777 = vld [vmem:[#allocation1] sm:$0xff]
    %v1778 = vld [vmem:[#allocation1 + $0x9] sm:$0xff]
    %v1780 = vsel %vm162, %v1778, 0
    %1782 = vmatpush.bf16.msra.mxu0 %v138
    %1783 = vmatpush.bf16.msra.mxu0 %v137
    %1784 = vmatpush.bf16.msra.mxu0 %v136
    %1785 = vmatpush.bf16.msra.mxu0 %v135
    %1786 = vmatpush.bf16.msra.mxu0 %v134
    %1787 = vmatpush.bf16.msra.mxu0 %v133
    %1788 = vmatpush.bf16.msra.mxu0 %v132
    %1789 = vmatpush.bf16.msra.mxu0 %v131
    %1790 = vmatmul.bf16.gmra.mxu0 %v1777
    %v1791 = vpop.f32.mrf.mxu0
    %v1792 = vadd.f32 0.0, %v1791
    %v1793 = vpop.f32.mrf.mxu0
    %1794 = vdwg.mxu0
    %1795 = vmatpush.bf16.msra.mxu0 %v167
    %1796 = vmatpush.bf16.msra.mxu0 %v145
    %1797 = vmatpush.bf16.msra.mxu0 %v144
    %1798 = vmatpush.bf16.msra.mxu0 %v143
    %1799 = vmatpush.bf16.msra.mxu0 %v142
    %1800 = vmatpush.bf16.msra.mxu0 %v141
    %1801 = vmatpush.bf16.msra.mxu0 %v140
    %1802 = vmatpush.bf16.msra.mxu0 %v139
    %1803 = vmatmul.bf16.gmra.mxu0 %v1780
    %v1804 = vpop.f32.mrf.mxu0
    %v1805 = vadd.f32 %v1792, %v1804
    %v1806 = vpop.f32.mrf.mxu0
    %1807 = vdwg.mxu0
    %s1808 = scalar_lea.vmem %s0, 50
    %v1809 = vld [vmem:[%s1808] sm:$0x3]
    %1811 = vst [vmem:[#allocation1] ss:$9 sm:$0xff] %v1809
    %v1812 = vld [vmem:[#allocation1] sm:$0xff]
    %v1813 = vld [vmem:[#allocation1 + $0x9] sm:$0xff]
    %v1815 = vsel %vm162, %v1813, 0
    %1817 = vmatpush.bf16.msra.mxu0 %v138
    %1818 = vmatpush.bf16.msra.mxu0 %v137
    %1819 = vmatpush.bf16.msra.mxu0 %v136
    %1820 = vmatpush.bf16.msra.mxu0 %v135
    %1821 = vmatpush.bf16.msra.mxu0 %v134
    %1822 = vmatpush.bf16.msra.mxu0 %v133
    %1823 = vmatpush.bf16.msra.mxu0 %v132
    %1824 = vmatpush.bf16.msra.mxu0 %v131
    %1825 = vmatmul.bf16.gmra.mxu0 %v1812
    %v1826 = vpop.f32.mrf.mxu0
    %v1827 = vadd.f32 0.0, %v1826
    %v1828 = vpop.f32.mrf.mxu0
    %1829 = vdwg.mxu0
    %1830 = vmatpush.bf16.msra.mxu0 %v167
    %1831 = vmatpush.bf16.msra.mxu0 %v145
    %1832 = vmatpush.bf16.msra.mxu0 %v144
    %1833 = vmatpush.bf16.msra.mxu0 %v143
    %1834 = vmatpush.bf16.msra.mxu0 %v142
    %1835 = vmatpush.bf16.msra.mxu0 %v141
    %1836 = vmatpush.bf16.msra.mxu0 %v140
    %1837 = vmatpush.bf16.msra.mxu0 %v139
    %1838 = vmatmul.bf16.gmra.mxu0 %v1815
    %v1839 = vpop.f32.mrf.mxu0
    %v1840 = vadd.f32 %v1827, %v1839
    %v1841 = vpop.f32.mrf.mxu0
    %1842 = vdwg.mxu0
    %v1843 = vmax.f32 %v1805, %v1840
    %s1844 = scalar_lea.vmem %s0, 82
    %v1845 = vld [vmem:[%s1844] sm:$0x3]
    %1847 = vst [vmem:[#allocation1] ss:$9 sm:$0xff] %v1845
    %v1848 = vld [vmem:[#allocation1] sm:$0xff]
    %v1849 = vld [vmem:[#allocation1 + $0x9] sm:$0xff]
    %v1851 = vsel %vm162, %v1849, 0
    %1853 = vmatpush.bf16.msra.mxu0 %v138
    %1854 = vmatpush.bf16.msra.mxu0 %v137
    %1855 = vmatpush.bf16.msra.mxu0 %v136
    %1856 = vmatpush.bf16.msra.mxu0 %v135
    %1857 = vmatpush.bf16.msra.mxu0 %v134
    %1858 = vmatpush.bf16.msra.mxu0 %v133
    %1859 = vmatpush.bf16.msra.mxu0 %v132
    %1860 = vmatpush.bf16.msra.mxu0 %v131
    %1861 = vmatmul.bf16.gmra.mxu0 %v1848
    %v1862 = vpop.f32.mrf.mxu0
    %v1863 = vadd.f32 0.0, %v1862
    %v1864 = vpop.f32.mrf.mxu0
    %1865 = vdwg.mxu0
    %1866 = vmatpush.bf16.msra.mxu0 %v167
    %1867 = vmatpush.bf16.msra.mxu0 %v145
    %1868 = vmatpush.bf16.msra.mxu0 %v144
    %1869 = vmatpush.bf16.msra.mxu0 %v143
    %1870 = vmatpush.bf16.msra.mxu0 %v142
    %1871 = vmatpush.bf16.msra.mxu0 %v141
    %1872 = vmatpush.bf16.msra.mxu0 %v140
    %1873 = vmatpush.bf16.msra.mxu0 %v139
    %1874 = vmatmul.bf16.gmra.mxu0 %v1851
    %v1875 = vpop.f32.mrf.mxu0
    %v1876 = vadd.f32 %v1863, %v1875
    %v1877 = vpop.f32.mrf.mxu0
    %1878 = vdwg.mxu0
    %v1879 = vmax.f32 %v1843, %v1876
    %s1880 = scalar_lea.vmem %s0, 114
    %v1881 = vld [vmem:[%s1880] sm:$0x3]
    %1883 = vst [vmem:[#allocation1] ss:$9 sm:$0xff] %v1881
    %v1884 = vld [vmem:[#allocation1] sm:$0xff]
    %v1885 = vld [vmem:[#allocation1 + $0x9] sm:$0xff]
    %v1887 = vsel %vm162, %v1885, 0
    %1889 = vmatpush.bf16.msra.mxu0 %v138
    %1890 = vmatpush.bf16.msra.mxu0 %v137
    %1891 = vmatpush.bf16.msra.mxu0 %v136
    %1892 = vmatpush.bf16.msra.mxu0 %v135
    %1893 = vmatpush.bf16.msra.mxu0 %v134
    %1894 = vmatpush.bf16.msra.mxu0 %v133
    %1895 = vmatpush.bf16.msra.mxu0 %v132
    %1896 = vmatpush.bf16.msra.mxu0 %v131
    %1897 = vmatmul.bf16.gmra.mxu0 %v1884
    %v1898 = vpop.f32.mrf.mxu0
    %v1899 = vadd.f32 0.0, %v1898
    %v1900 = vpop.f32.mrf.mxu0
    %1901 = vdwg.mxu0
    %1902 = vmatpush.bf16.msra.mxu0 %v167
    %1903 = vmatpush.bf16.msra.mxu0 %v145
    %1904 = vmatpush.bf16.msra.mxu0 %v144
    %1905 = vmatpush.bf16.msra.mxu0 %v143
    %1906 = vmatpush.bf16.msra.mxu0 %v142
    %1907 = vmatpush.bf16.msra.mxu0 %v141
    %1908 = vmatpush.bf16.msra.mxu0 %v140
    %1909 = vmatpush.bf16.msra.mxu0 %v139
    %1910 = vmatmul.bf16.gmra.mxu0 %v1887
    %v1911 = vpop.f32.mrf.mxu0
    %v1912 = vadd.f32 %v1899, %v1911
    %v1913 = vpop.f32.mrf.mxu0
    %1914 = vdwg.mxu0
    %v1915 = vmax.f32 %v1879, %v1912
    %v1916 = vadd.f32 %v1915, %v304
    %v1917 = vmax.f32 %v1916, 0.0
    %v1918 = vpack.c.bf16 %v1917, %v1917
    %s1919 = scalar_lea.vmem %s3, 108
    %v1920 = vld [vmem:[%s1919] sm:$0xf]
    %v1921 = vld [vmem:[%s1919 + $0x4] sm:$0xf]
    %v1922 = vld [vmem:[%s1919 + $0x8] sm:$0x3]
    %v1926 = vunpack.c.l.b16 %v1920
    %v1927 = vunpack.c.l.b16 %v1921
    %v1928 = vunpack.c.l.b16 %v1922
    %v1929 = vpack.c.b16 %v1927, %v1926
    %v1930 = vpack.c.b16 %v1928, %v1928
    %v1933 = vsel %vm471, %v1918, 0
    %v1936 = vsel %vm475, %v1930, 0
    %1938 = vmatpush.bf16.msra.mxu0 0
    %1939 = vmatpush.bf16.msra.mxu0 0
    %1940 = vmatpush.bf16.msra.mxu0 0
    %1941 = vmatpush.bf16.msra.mxu0 0
    %1942 = vmatpush.bf16.msra.mxu0 0
    %1943 = vmatpush.bf16.msra.mxu0 0
    %1944 = vmatpush.bf16.msra.mxu0 %v1936
    %1945 = vmatpush.bf16.msra.mxu0 %v1929
    %1946 = vmatmul.bf16.gmra.mxu0 %v1933
    %v1947 = vpop.f32.mrf.mxu0
    %v1948 = vadd.f32 0.0, %v1947
    %v1949 = vpop.f32.mrf.mxu0
    %1950 = vdwg.mxu0
    %v1951 = vadd.f32 %v1772, %v1948
    %s1952 = scalar_lea.vmem %s0, 20
    %v1953 = vld [vmem:[%s1952] sm:$0x3]
    %1955 = vst [vmem:[#allocation1] ss:$9 sm:$0xff] %v1953
    %v1956 = vld [vmem:[#allocation1] sm:$0xff]
    %v1957 = vld [vmem:[#allocation1 + $0x9] sm:$0xff]
    %v1959 = vsel %vm162, %v1957, 0
    %1961 = vmatpush.bf16.msra.mxu0 %v138
    %1962 = vmatpush.bf16.msra.mxu0 %v137
    %1963 = vmatpush.bf16.msra.mxu0 %v136
    %1964 = vmatpush.bf16.msra.mxu0 %v135
    %1965 = vmatpush.bf16.msra.mxu0 %v134
    %1966 = vmatpush.bf16.msra.mxu0 %v133
    %1967 = vmatpush.bf16.msra.mxu0 %v132
    %1968 = vmatpush.bf16.msra.mxu0 %v131
    %1969 = vmatmul.bf16.gmra.mxu0 %v1956
    %v1970 = vpop.f32.mrf.mxu0
    %v1971 = vadd.f32 0.0, %v1970
    %v1972 = vpop.f32.mrf.mxu0
    %1973 = vdwg.mxu0
    %1974 = vmatpush.bf16.msra.mxu0 %v167
    %1975 = vmatpush.bf16.msra.mxu0 %v145
    %1976 = vmatpush.bf16.msra.mxu0 %v144
    %1977 = vmatpush.bf16.msra.mxu0 %v143
    %1978 = vmatpush.bf16.msra.mxu0 %v142
    %1979 = vmatpush.bf16.msra.mxu0 %v141
    %1980 = vmatpush.bf16.msra.mxu0 %v140
    %1981 = vmatpush.bf16.msra.mxu0 %v139
    %1982 = vmatmul.bf16.gmra.mxu0 %v1959
    %v1983 = vpop.f32.mrf.mxu0
    %v1984 = vadd.f32 %v1971, %v1983
    %v1985 = vpop.f32.mrf.mxu0
    %1986 = vdwg.mxu0
    %s1987 = scalar_lea.vmem %s0, 52
    %v1988 = vld [vmem:[%s1987] sm:$0x3]
    %1990 = vst [vmem:[#allocation1] ss:$9 sm:$0xff] %v1988
    %v1991 = vld [vmem:[#allocation1] sm:$0xff]
    %v1992 = vld [vmem:[#allocation1 + $0x9] sm:$0xff]
    %v1994 = vsel %vm162, %v1992, 0
    %1996 = vmatpush.bf16.msra.mxu0 %v138
    %1997 = vmatpush.bf16.msra.mxu0 %v137
    %1998 = vmatpush.bf16.msra.mxu0 %v136
    %1999 = vmatpush.bf16.msra.mxu0 %v135
    %2000 = vmatpush.bf16.msra.mxu0 %v134
    %2001 = vmatpush.bf16.msra.mxu0 %v133
    %2002 = vmatpush.bf16.msra.mxu0 %v132
    %2003 = vmatpush.bf16.msra.mxu0 %v131
    %2004 = vmatmul.bf16.gmra.mxu0 %v1991
    %v2005 = vpop.f32.mrf.mxu0
    %v2006 = vadd.f32 0.0, %v2005
    %v2007 = vpop.f32.mrf.mxu0
    %2008 = vdwg.mxu0
    %2009 = vmatpush.bf16.msra.mxu0 %v167
    %2010 = vmatpush.bf16.msra.mxu0 %v145
    %2011 = vmatpush.bf16.msra.mxu0 %v144
    %2012 = vmatpush.bf16.msra.mxu0 %v143
    %2013 = vmatpush.bf16.msra.mxu0 %v142
    %2014 = vmatpush.bf16.msra.mxu0 %v141
    %2015 = vmatpush.bf16.msra.mxu0 %v140
    %2016 = vmatpush.bf16.msra.mxu0 %v139
    %2017 = vmatmul.bf16.gmra.mxu0 %v1994
    %v2018 = vpop.f32.mrf.mxu0
    %v2019 = vadd.f32 %v2006, %v2018
    %v2020 = vpop.f32.mrf.mxu0
    %2021 = vdwg.mxu0
    %v2022 = vmax.f32 %v1984, %v2019
    %s2023 = scalar_lea.vmem %s0, 84
    %v2024 = vld [vmem:[%s2023] sm:$0x3]
    %2026 = vst [vmem:[#allocation1] ss:$9 sm:$0xff] %v2024
    %v2027 = vld [vmem:[#allocation1] sm:$0xff]
    %v2028 = vld [vmem:[#allocation1 + $0x9] sm:$0xff]
    %v2030 = vsel %vm162, %v2028, 0
    %2032 = vmatpush.bf16.msra.mxu0 %v138
    %2033 = vmatpush.bf16.msra.mxu0 %v137
    %2034 = vmatpush.bf16.msra.mxu0 %v136
    %2035 = vmatpush.bf16.msra.mxu0 %v135
    %2036 = vmatpush.bf16.msra.mxu0 %v134
    %2037 = vmatpush.bf16.msra.mxu0 %v133
    %2038 = vmatpush.bf16.msra.mxu0 %v132
    %2039 = vmatpush.bf16.msra.mxu0 %v131
    %2040 = vmatmul.bf16.gmra.mxu0 %v2027
    %v2041 = vpop.f32.mrf.mxu0
    %v2042 = vadd.f32 0.0, %v2041
    %v2043 = vpop.f32.mrf.mxu0
    %2044 = vdwg.mxu0
    %2045 = vmatpush.bf16.msra.mxu0 %v167
    %2046 = vmatpush.bf16.msra.mxu0 %v145
    %2047 = vmatpush.bf16.msra.mxu0 %v144
    %2048 = vmatpush.bf16.msra.mxu0 %v143
    %2049 = vmatpush.bf16.msra.mxu0 %v142
    %2050 = vmatpush.bf16.msra.mxu0 %v141
    %2051 = vmatpush.bf16.msra.mxu0 %v140
    %2052 = vmatpush.bf16.msra.mxu0 %v139
    %2053 = vmatmul.bf16.gmra.mxu0 %v2030
    %v2054 = vpop.f32.mrf.mxu0
    %v2055 = vadd.f32 %v2042, %v2054
    %v2056 = vpop.f32.mrf.mxu0
    %2057 = vdwg.mxu0
    %v2058 = vmax.f32 %v2022, %v2055
    %s2059 = scalar_lea.vmem %s0, 116
    %v2060 = vld [vmem:[%s2059] sm:$0x3]
    %2062 = vst [vmem:[#allocation1] ss:$9 sm:$0xff] %v2060
    %v2063 = vld [vmem:[#allocation1] sm:$0xff]
    %v2064 = vld [vmem:[#allocation1 + $0x9] sm:$0xff]
    %v2066 = vsel %vm162, %v2064, 0
    %2068 = vmatpush.bf16.msra.mxu0 %v138
    %2069 = vmatpush.bf16.msra.mxu0 %v137
    %2070 = vmatpush.bf16.msra.mxu0 %v136
    %2071 = vmatpush.bf16.msra.mxu0 %v135
    %2072 = vmatpush.bf16.msra.mxu0 %v134
    %2073 = vmatpush.bf16.msra.mxu0 %v133
    %2074 = vmatpush.bf16.msra.mxu0 %v132
    %2075 = vmatpush.bf16.msra.mxu0 %v131
    %2076 = vmatmul.bf16.gmra.mxu0 %v2063
    %v2077 = vpop.f32.mrf.mxu0
    %v2078 = vadd.f32 0.0, %v2077
    %v2079 = vpop.f32.mrf.mxu0
    %2080 = vdwg.mxu0
    %2081 = vmatpush.bf16.msra.mxu0 %v167
    %2082 = vmatpush.bf16.msra.mxu0 %v145
    %2083 = vmatpush.bf16.msra.mxu0 %v144
    %2084 = vmatpush.bf16.msra.mxu0 %v143
    %2085 = vmatpush.bf16.msra.mxu0 %v142
    %2086 = vmatpush.bf16.msra.mxu0 %v141
    %2087 = vmatpush.bf16.msra.mxu0 %v140
    %2088 = vmatpush.bf16.msra.mxu0 %v139
    %2089 = vmatmul.bf16.gmra.mxu0 %v2066
    %v2090 = vpop.f32.mrf.mxu0
    %v2091 = vadd.f32 %v2078, %v2090
    %v2092 = vpop.f32.mrf.mxu0
    %2093 = vdwg.mxu0
    %v2094 = vmax.f32 %v2058, %v2091
    %v2095 = vadd.f32 %v2094, %v304
    %v2096 = vmax.f32 %v2095, 0.0
    %v2097 = vpack.c.bf16 %v2096, %v2096
    %s2098 = scalar_lea.vmem %s3, 120
    %v2099 = vld [vmem:[%s2098] sm:$0xf]
    %v2100 = vld [vmem:[%s2098 + $0x4] sm:$0xf]
    %v2101 = vld [vmem:[%s2098 + $0x8] sm:$0x3]
    %v2105 = vunpack.c.l.b16 %v2099
    %v2106 = vunpack.c.l.b16 %v2100
    %v2107 = vunpack.c.l.b16 %v2101
    %v2108 = vpack.c.b16 %v2106, %v2105
    %v2109 = vpack.c.b16 %v2107, %v2107
    %v2112 = vsel %vm471, %v2097, 0
    %v2115 = vsel %vm475, %v2109, 0
    %2117 = vmatpush.bf16.msra.mxu0 0
    %2118 = vmatpush.bf16.msra.mxu0 0
    %2119 = vmatpush.bf16.msra.mxu0 0
    %2120 = vmatpush.bf16.msra.mxu0 0
    %2121 = vmatpush.bf16.msra.mxu0 0
    %2122 = vmatpush.bf16.msra.mxu0 0
    %2123 = vmatpush.bf16.msra.mxu0 %v2115
    %2124 = vmatpush.bf16.msra.mxu0 %v2108
    %2125 = vmatmul.bf16.gmra.mxu0 %v2112
    %v2126 = vpop.f32.mrf.mxu0
    %v2127 = vadd.f32 0.0, %v2126
    %v2128 = vpop.f32.mrf.mxu0
    %2129 = vdwg.mxu0
    %v2130 = vadd.f32 %v1951, %v2127
    %s2131 = scalar_lea.vmem %s0, 22
    %v2132 = vld [vmem:[%s2131] sm:$0x3]
    %2134 = vst [vmem:[#allocation1] ss:$9 sm:$0xff] %v2132
    %v2135 = vld [vmem:[#allocation1] sm:$0xff]
    %v2136 = vld [vmem:[#allocation1 + $0x9] sm:$0xff]
    %v2138 = vsel %vm162, %v2136, 0
    %2140 = vmatpush.bf16.msra.mxu0 %v138
    %2141 = vmatpush.bf16.msra.mxu0 %v137
    %2142 = vmatpush.bf16.msra.mxu0 %v136
    %2143 = vmatpush.bf16.msra.mxu0 %v135
    %2144 = vmatpush.bf16.msra.mxu0 %v134
    %2145 = vmatpush.bf16.msra.mxu0 %v133
    %2146 = vmatpush.bf16.msra.mxu0 %v132
    %2147 = vmatpush.bf16.msra.mxu0 %v131
    %2148 = vmatmul.bf16.gmra.mxu0 %v2135
    %v2149 = vpop.f32.mrf.mxu0
    %v2150 = vadd.f32 0.0, %v2149
    %v2151 = vpop.f32.mrf.mxu0
    %2152 = vdwg.mxu0
    %2153 = vmatpush.bf16.msra.mxu0 %v167
    %2154 = vmatpush.bf16.msra.mxu0 %v145
    %2155 = vmatpush.bf16.msra.mxu0 %v144
    %2156 = vmatpush.bf16.msra.mxu0 %v143
    %2157 = vmatpush.bf16.msra.mxu0 %v142
    %2158 = vmatpush.bf16.msra.mxu0 %v141
    %2159 = vmatpush.bf16.msra.mxu0 %v140
    %2160 = vmatpush.bf16.msra.mxu0 %v139
    %2161 = vmatmul.bf16.gmra.mxu0 %v2138
    %v2162 = vpop.f32.mrf.mxu0
    %v2163 = vadd.f32 %v2150, %v2162
    %v2164 = vpop.f32.mrf.mxu0
    %2165 = vdwg.mxu0
    %s2166 = scalar_lea.vmem %s0, 54
    %v2167 = vld [vmem:[%s2166] sm:$0x3]
    %2169 = vst [vmem:[#allocation1] ss:$9 sm:$0xff] %v2167
    %v2170 = vld [vmem:[#allocation1] sm:$0xff]
    %v2171 = vld [vmem:[#allocation1 + $0x9] sm:$0xff]
    %v2173 = vsel %vm162, %v2171, 0
    %2175 = vmatpush.bf16.msra.mxu0 %v138
    %2176 = vmatpush.bf16.msra.mxu0 %v137
    %2177 = vmatpush.bf16.msra.mxu0 %v136
    %2178 = vmatpush.bf16.msra.mxu0 %v135
    %2179 = vmatpush.bf16.msra.mxu0 %v134
    %2180 = vmatpush.bf16.msra.mxu0 %v133
    %2181 = vmatpush.bf16.msra.mxu0 %v132
    %2182 = vmatpush.bf16.msra.mxu0 %v131
    %2183 = vmatmul.bf16.gmra.mxu0 %v2170
    %v2184 = vpop.f32.mrf.mxu0
    %v2185 = vadd.f32 0.0, %v2184
    %v2186 = vpop.f32.mrf.mxu0
    %2187 = vdwg.mxu0
    %2188 = vmatpush.bf16.msra.mxu0 %v167
    %2189 = vmatpush.bf16.msra.mxu0 %v145
    %2190 = vmatpush.bf16.msra.mxu0 %v144
    %2191 = vmatpush.bf16.msra.mxu0 %v143
    %2192 = vmatpush.bf16.msra.mxu0 %v142
    %2193 = vmatpush.bf16.msra.mxu0 %v141
    %2194 = vmatpush.bf16.msra.mxu0 %v140
    %2195 = vmatpush.bf16.msra.mxu0 %v139
    %2196 = vmatmul.bf16.gmra.mxu0 %v2173
    %v2197 = vpop.f32.mrf.mxu0
    %v2198 = vadd.f32 %v2185, %v2197
    %v2199 = vpop.f32.mrf.mxu0
    %2200 = vdwg.mxu0
    %v2201 = vmax.f32 %v2163, %v2198
    %s2202 = scalar_lea.vmem %s0, 86
    %v2203 = vld [vmem:[%s2202] sm:$0x3]
    %2205 = vst [vmem:[#allocation1] ss:$9 sm:$0xff] %v2203
    %v2206 = vld [vmem:[#allocation1] sm:$0xff]
    %v2207 = vld [vmem:[#allocation1 + $0x9] sm:$0xff]
    %v2209 = vsel %vm162, %v2207, 0
    %2211 = vmatpush.bf16.msra.mxu0 %v138
    %2212 = vmatpush.bf16.msra.mxu0 %v137
    %2213 = vmatpush.bf16.msra.mxu0 %v136
    %2214 = vmatpush.bf16.msra.mxu0 %v135
    %2215 = vmatpush.bf16.msra.mxu0 %v134
    %2216 = vmatpush.bf16.msra.mxu0 %v133
    %2217 = vmatpush.bf16.msra.mxu0 %v132
    %2218 = vmatpush.bf16.msra.mxu0 %v131
    %2219 = vmatmul.bf16.gmra.mxu0 %v2206
    %v2220 = vpop.f32.mrf.mxu0
    %v2221 = vadd.f32 0.0, %v2220
    %v2222 = vpop.f32.mrf.mxu0
    %2223 = vdwg.mxu0
    %2224 = vmatpush.bf16.msra.mxu0 %v167
    %2225 = vmatpush.bf16.msra.mxu0 %v145
    %2226 = vmatpush.bf16.msra.mxu0 %v144
    %2227 = vmatpush.bf16.msra.mxu0 %v143
    %2228 = vmatpush.bf16.msra.mxu0 %v142
    %2229 = vmatpush.bf16.msra.mxu0 %v141
    %2230 = vmatpush.bf16.msra.mxu0 %v140
    %2231 = vmatpush.bf16.msra.mxu0 %v139
    %2232 = vmatmul.bf16.gmra.mxu0 %v2209
    %v2233 = vpop.f32.mrf.mxu0
    %v2234 = vadd.f32 %v2221, %v2233
    %v2235 = vpop.f32.mrf.mxu0
    %2236 = vdwg.mxu0
    %v2237 = vmax.f32 %v2201, %v2234
    %s2238 = scalar_lea.vmem %s0, 118
    %v2239 = vld [vmem:[%s2238] sm:$0x3]
    %2241 = vst [vmem:[#allocation1] ss:$9 sm:$0xff] %v2239
    %v2242 = vld [vmem:[#allocation1] sm:$0xff]
    %v2243 = vld [vmem:[#allocation1 + $0x9] sm:$0xff]
    %v2245 = vsel %vm162, %v2243, 0
    %2247 = vmatpush.bf16.msra.mxu0 %v138
    %2248 = vmatpush.bf16.msra.mxu0 %v137
    %2249 = vmatpush.bf16.msra.mxu0 %v136
    %2250 = vmatpush.bf16.msra.mxu0 %v135
    %2251 = vmatpush.bf16.msra.mxu0 %v134
    %2252 = vmatpush.bf16.msra.mxu0 %v133
    %2253 = vmatpush.bf16.msra.mxu0 %v132
    %2254 = vmatpush.bf16.msra.mxu0 %v131
    %2255 = vmatmul.bf16.gmra.mxu0 %v2242
    %v2256 = vpop.f32.mrf.mxu0
    %v2257 = vadd.f32 0.0, %v2256
    %v2258 = vpop.f32.mrf.mxu0
    %2259 = vdwg.mxu0
    %2260 = vmatpush.bf16.msra.mxu0 %v167
    %2261 = vmatpush.bf16.msra.mxu0 %v145
    %2262 = vmatpush.bf16.msra.mxu0 %v144
    %2263 = vmatpush.bf16.msra.mxu0 %v143
    %2264 = vmatpush.bf16.msra.mxu0 %v142
    %2265 = vmatpush.bf16.msra.mxu0 %v141
    %2266 = vmatpush.bf16.msra.mxu0 %v140
    %2267 = vmatpush.bf16.msra.mxu0 %v139
    %2268 = vmatmul.bf16.gmra.mxu0 %v2245
    %v2269 = vpop.f32.mrf.mxu0
    %v2270 = vadd.f32 %v2257, %v2269
    %v2271 = vpop.f32.mrf.mxu0
    %2272 = vdwg.mxu0
    %v2273 = vmax.f32 %v2237, %v2270
    %v2274 = vadd.f32 %v2273, %v304
    %v2275 = vmax.f32 %v2274, 0.0
    %v2276 = vpack.c.bf16 %v2275, %v2275
    %s2277 = scalar_lea.vmem %s3, 132
    %v2278 = vld [vmem:[%s2277] sm:$0xf]
    %v2279 = vld [vmem:[%s2277 + $0x4] sm:$0xf]
    %v2280 = vld [vmem:[%s2277 + $0x8] sm:$0x3]
    %v2284 = vunpack.c.l.b16 %v2278
    %v2285 = vunpack.c.l.b16 %v2279
    %v2286 = vunpack.c.l.b16 %v2280
    %v2287 = vpack.c.b16 %v2285, %v2284
    %v2288 = vpack.c.b16 %v2286, %v2286
    %v2291 = vsel %vm471, %v2276, 0
    %v2294 = vsel %vm475, %v2288, 0
    %2296 = vmatpush.bf16.msra.mxu0 0
    %2297 = vmatpush.bf16.msra.mxu0 0
    %2298 = vmatpush.bf16.msra.mxu0 0
    %2299 = vmatpush.bf16.msra.mxu0 0
    %2300 = vmatpush.bf16.msra.mxu0 0
    %2301 = vmatpush.bf16.msra.mxu0 0
    %2302 = vmatpush.bf16.msra.mxu0 %v2294
    %2303 = vmatpush.bf16.msra.mxu0 %v2287
    %2304 = vmatmul.bf16.gmra.mxu0 %v2291
    %v2305 = vpop.f32.mrf.mxu0
    %v2306 = vadd.f32 0.0, %v2305
    %v2307 = vpop.f32.mrf.mxu0
    %2308 = vdwg.mxu0
    %v2309 = vadd.f32 %v2130, %v2306
    %s2310 = scalar_lea.vmem %s0, 24
    %v2311 = vld [vmem:[%s2310] sm:$0x3]
    %2313 = vst [vmem:[#allocation1] ss:$9 sm:$0xff] %v2311
    %v2314 = vld [vmem:[#allocation1] sm:$0xff]
    %v2315 = vld [vmem:[#allocation1 + $0x9] sm:$0xff]
    %v2317 = vsel %vm162, %v2315, 0
    %2319 = vmatpush.bf16.msra.mxu0 %v138
    %2320 = vmatpush.bf16.msra.mxu0 %v137
    %2321 = vmatpush.bf16.msra.mxu0 %v136
    %2322 = vmatpush.bf16.msra.mxu0 %v135
    %2323 = vmatpush.bf16.msra.mxu0 %v134
    %2324 = vmatpush.bf16.msra.mxu0 %v133
    %2325 = vmatpush.bf16.msra.mxu0 %v132
    %2326 = vmatpush.bf16.msra.mxu0 %v131
    %2327 = vmatmul.bf16.gmra.mxu0 %v2314
    %v2328 = vpop.f32.mrf.mxu0
    %v2329 = vadd.f32 0.0, %v2328
    %v2330 = vpop.f32.mrf.mxu0
    %2331 = vdwg.mxu0
    %2332 = vmatpush.bf16.msra.mxu0 %v167
    %2333 = vmatpush.bf16.msra.mxu0 %v145
    %2334 = vmatpush.bf16.msra.mxu0 %v144
    %2335 = vmatpush.bf16.msra.mxu0 %v143
    %2336 = vmatpush.bf16.msra.mxu0 %v142
    %2337 = vmatpush.bf16.msra.mxu0 %v141
    %2338 = vmatpush.bf16.msra.mxu0 %v140
    %2339 = vmatpush.bf16.msra.mxu0 %v139
    %2340 = vmatmul.bf16.gmra.mxu0 %v2317
    %v2341 = vpop.f32.mrf.mxu0
    %v2342 = vadd.f32 %v2329, %v2341
    %v2343 = vpop.f32.mrf.mxu0
    %2344 = vdwg.mxu0
    %s2345 = scalar_lea.vmem %s0, 56
    %v2346 = vld [vmem:[%s2345] sm:$0x3]
    %2348 = vst [vmem:[#allocation1] ss:$9 sm:$0xff] %v2346
    %v2349 = vld [vmem:[#allocation1] sm:$0xff]
    %v2350 = vld [vmem:[#allocation1 + $0x9] sm:$0xff]
    %v2352 = vsel %vm162, %v2350, 0
    %2354 = vmatpush.bf16.msra.mxu0 %v138
    %2355 = vmatpush.bf16.msra.mxu0 %v137
    %2356 = vmatpush.bf16.msra.mxu0 %v136
    %2357 = vmatpush.bf16.msra.mxu0 %v135
    %2358 = vmatpush.bf16.msra.mxu0 %v134
    %2359 = vmatpush.bf16.msra.mxu0 %v133
    %2360 = vmatpush.bf16.msra.mxu0 %v132
    %2361 = vmatpush.bf16.msra.mxu0 %v131
    %2362 = vmatmul.bf16.gmra.mxu0 %v2349
    %v2363 = vpop.f32.mrf.mxu0
    %v2364 = vadd.f32 0.0, %v2363
    %v2365 = vpop.f32.mrf.mxu0
    %2366 = vdwg.mxu0
    %2367 = vmatpush.bf16.msra.mxu0 %v167
    %2368 = vmatpush.bf16.msra.mxu0 %v145
    %2369 = vmatpush.bf16.msra.mxu0 %v144
    %2370 = vmatpush.bf16.msra.mxu0 %v143
    %2371 = vmatpush.bf16.msra.mxu0 %v142
    %2372 = vmatpush.bf16.msra.mxu0 %v141
    %2373 = vmatpush.bf16.msra.mxu0 %v140
    %2374 = vmatpush.bf16.msra.mxu0 %v139
    %2375 = vmatmul.bf16.gmra.mxu0 %v2352
    %v2376 = vpop.f32.mrf.mxu0
    %v2377 = vadd.f32 %v2364, %v2376
    %v2378 = vpop.f32.mrf.mxu0
    %2379 = vdwg.mxu0
    %v2380 = vmax.f32 %v2342, %v2377
    %s2381 = scalar_lea.vmem %s0, 88
    %v2382 = vld [vmem:[%s2381] sm:$0x3]
    %2384 = vst [vmem:[#allocation1] ss:$9 sm:$0xff] %v2382
    %v2385 = vld [vmem:[#allocation1] sm:$0xff]
    %v2386 = vld [vmem:[#allocation1 + $0x9] sm:$0xff]
    %v2388 = vsel %vm162, %v2386, 0
    %2390 = vmatpush.bf16.msra.mxu0 %v138
    %2391 = vmatpush.bf16.msra.mxu0 %v137
    %2392 = vmatpush.bf16.msra.mxu0 %v136
    %2393 = vmatpush.bf16.msra.mxu0 %v135
    %2394 = vmatpush.bf16.msra.mxu0 %v134
    %2395 = vmatpush.bf16.msra.mxu0 %v133
    %2396 = vmatpush.bf16.msra.mxu0 %v132
    %2397 = vmatpush.bf16.msra.mxu0 %v131
    %2398 = vmatmul.bf16.gmra.mxu0 %v2385
    %v2399 = vpop.f32.mrf.mxu0
    %v2400 = vadd.f32 0.0, %v2399
    %v2401 = vpop.f32.mrf.mxu0
    %2402 = vdwg.mxu0
    %2403 = vmatpush.bf16.msra.mxu0 %v167
    %2404 = vmatpush.bf16.msra.mxu0 %v145
    %2405 = vmatpush.bf16.msra.mxu0 %v144
    %2406 = vmatpush.bf16.msra.mxu0 %v143
    %2407 = vmatpush.bf16.msra.mxu0 %v142
    %2408 = vmatpush.bf16.msra.mxu0 %v141
    %2409 = vmatpush.bf16.msra.mxu0 %v140
    %2410 = vmatpush.bf16.msra.mxu0 %v139
    %2411 = vmatmul.bf16.gmra.mxu0 %v2388
    %v2412 = vpop.f32.mrf.mxu0
    %v2413 = vadd.f32 %v2400, %v2412
    %v2414 = vpop.f32.mrf.mxu0
    %2415 = vdwg.mxu0
    %v2416 = vmax.f32 %v2380, %v2413
    %s2417 = scalar_lea.vmem %s0, 120
    %v2418 = vld [vmem:[%s2417] sm:$0x3]
    %2420 = vst [vmem:[#allocation1] ss:$9 sm:$0xff] %v2418
    %v2421 = vld [vmem:[#allocation1] sm:$0xff]
    %v2422 = vld [vmem:[#allocation1 + $0x9] sm:$0xff]
    %v2424 = vsel %vm162, %v2422, 0
    %2426 = vmatpush.bf16.msra.mxu0 %v138
    %2427 = vmatpush.bf16.msra.mxu0 %v137
    %2428 = vmatpush.bf16.msra.mxu0 %v136
    %2429 = vmatpush.bf16.msra.mxu0 %v135
    %2430 = vmatpush.bf16.msra.mxu0 %v134
    %2431 = vmatpush.bf16.msra.mxu0 %v133
    %2432 = vmatpush.bf16.msra.mxu0 %v132
    %2433 = vmatpush.bf16.msra.mxu0 %v131
    %2434 = vmatmul.bf16.gmra.mxu0 %v2421
    %v2435 = vpop.f32.mrf.mxu0
    %v2436 = vadd.f32 0.0, %v2435
    %v2437 = vpop.f32.mrf.mxu0
    %2438 = vdwg.mxu0
    %2439 = vmatpush.bf16.msra.mxu0 %v167
    %2440 = vmatpush.bf16.msra.mxu0 %v145
    %2441 = vmatpush.bf16.msra.mxu0 %v144
    %2442 = vmatpush.bf16.msra.mxu0 %v143
    %2443 = vmatpush.bf16.msra.mxu0 %v142
    %2444 = vmatpush.bf16.msra.mxu0 %v141
    %2445 = vmatpush.bf16.msra.mxu0 %v140
    %2446 = vmatpush.bf16.msra.mxu0 %v139
    %2447 = vmatmul.bf16.gmra.mxu0 %v2424
    %v2448 = vpop.f32.mrf.mxu0
    %v2449 = vadd.f32 %v2436, %v2448
    %v2450 = vpop.f32.mrf.mxu0
    %2451 = vdwg.mxu0
    %v2452 = vmax.f32 %v2416, %v2449
    %v2453 = vadd.f32 %v2452, %v304
    %v2454 = vmax.f32 %v2453, 0.0
    %v2455 = vpack.c.bf16 %v2454, %v2454
    %s2456 = scalar_lea.vmem %s3, 144
    %v2457 = vld [vmem:[%s2456] sm:$0xf]
    %v2458 = vld [vmem:[%s2456 + $0x4] sm:$0xf]
    %v2459 = vld [vmem:[%s2456 + $0x8] sm:$0x3]
    %v2463 = vunpack.c.l.b16 %v2457
    %v2464 = vunpack.c.l.b16 %v2458
    %v2465 = vunpack.c.l.b16 %v2459
    %v2466 = vpack.c.b16 %v2464, %v2463
    %v2467 = vpack.c.b16 %v2465, %v2465
    %v2470 = vsel %vm471, %v2455, 0
    %v2473 = vsel %vm475, %v2467, 0
    %2475 = vmatpush.bf16.msra.mxu0 0
    %2476 = vmatpush.bf16.msra.mxu0 0
    %2477 = vmatpush.bf16.msra.mxu0 0
    %2478 = vmatpush.bf16.msra.mxu0 0
    %2479 = vmatpush.bf16.msra.mxu0 0
    %2480 = vmatpush.bf16.msra.mxu0 0
    %2481 = vmatpush.bf16.msra.mxu0 %v2473
    %2482 = vmatpush.bf16.msra.mxu0 %v2466
    %2483 = vmatmul.bf16.gmra.mxu0 %v2470
    %v2484 = vpop.f32.mrf.mxu0
    %v2485 = vadd.f32 0.0, %v2484
    %v2486 = vpop.f32.mrf.mxu0
    %2487 = vdwg.mxu0
    %v2488 = vadd.f32 %v2309, %v2485
    %s2489 = scalar_lea.vmem %s0, 26
    %v2490 = vld [vmem:[%s2489] sm:$0x3]
    %2492 = vst [vmem:[#allocation1] ss:$9 sm:$0xff] %v2490
    %v2493 = vld [vmem:[#allocation1] sm:$0xff]
    %v2494 = vld [vmem:[#allocation1 + $0x9] sm:$0xff]
    %v2496 = vsel %vm162, %v2494, 0
    %2498 = vmatpush.bf16.msra.mxu0 %v138
    %2499 = vmatpush.bf16.msra.mxu0 %v137
    %2500 = vmatpush.bf16.msra.mxu0 %v136
    %2501 = vmatpush.bf16.msra.mxu0 %v135
    %2502 = vmatpush.bf16.msra.mxu0 %v134
    %2503 = vmatpush.bf16.msra.mxu0 %v133
    %2504 = vmatpush.bf16.msra.mxu0 %v132
    %2505 = vmatpush.bf16.msra.mxu0 %v131
    %2506 = vmatmul.bf16.gmra.mxu0 %v2493
    %v2507 = vpop.f32.mrf.mxu0
    %v2508 = vadd.f32 0.0, %v2507
    %v2509 = vpop.f32.mrf.mxu0
    %2510 = vdwg.mxu0
    %2511 = vmatpush.bf16.msra.mxu0 %v167
    %2512 = vmatpush.bf16.msra.mxu0 %v145
    %2513 = vmatpush.bf16.msra.mxu0 %v144
    %2514 = vmatpush.bf16.msra.mxu0 %v143
    %2515 = vmatpush.bf16.msra.mxu0 %v142
    %2516 = vmatpush.bf16.msra.mxu0 %v141
    %2517 = vmatpush.bf16.msra.mxu0 %v140
    %2518 = vmatpush.bf16.msra.mxu0 %v139
    %2519 = vmatmul.bf16.gmra.mxu0 %v2496
    %v2520 = vpop.f32.mrf.mxu0
    %v2521 = vadd.f32 %v2508, %v2520
    %v2522 = vpop.f32.mrf.mxu0
    %2523 = vdwg.mxu0
    %s2524 = scalar_lea.vmem %s0, 58
    %v2525 = vld [vmem:[%s2524] sm:$0x3]
    %2527 = vst [vmem:[#allocation1] ss:$9 sm:$0xff] %v2525
    %v2528 = vld [vmem:[#allocation1] sm:$0xff]
    %v2529 = vld [vmem:[#allocation1 + $0x9] sm:$0xff]
    %v2531 = vsel %vm162, %v2529, 0
    %2533 = vmatpush.bf16.msra.mxu0 %v138
    %2534 = vmatpush.bf16.msra.mxu0 %v137
    %2535 = vmatpush.bf16.msra.mxu0 %v136
    %2536 = vmatpush.bf16.msra.mxu0 %v135
    %2537 = vmatpush.bf16.msra.mxu0 %v134
    %2538 = vmatpush.bf16.msra.mxu0 %v133
    %2539 = vmatpush.bf16.msra.mxu0 %v132
    %2540 = vmatpush.bf16.msra.mxu0 %v131
    %2541 = vmatmul.bf16.gmra.mxu0 %v2528
    %v2542 = vpop.f32.mrf.mxu0
    %v2543 = vadd.f32 0.0, %v2542
    %v2544 = vpop.f32.mrf.mxu0
    %2545 = vdwg.mxu0
    %2546 = vmatpush.bf16.msra.mxu0 %v167
    %2547 = vmatpush.bf16.msra.mxu0 %v145
    %2548 = vmatpush.bf16.msra.mxu0 %v144
    %2549 = vmatpush.bf16.msra.mxu0 %v143
    %2550 = vmatpush.bf16.msra.mxu0 %v142
    %2551 = vmatpush.bf16.msra.mxu0 %v141
    %2552 = vmatpush.bf16.msra.mxu0 %v140
    %2553 = vmatpush.bf16.msra.mxu0 %v139
    %2554 = vmatmul.bf16.gmra.mxu0 %v2531
    %v2555 = vpop.f32.mrf.mxu0
    %v2556 = vadd.f32 %v2543, %v2555
    %v2557 = vpop.f32.mrf.mxu0
    %2558 = vdwg.mxu0
    %v2559 = vmax.f32 %v2521, %v2556
    %s2560 = scalar_lea.vmem %s0, 90
    %v2561 = vld [vmem:[%s2560] sm:$0x3]
    %2563 = vst [vmem:[#allocation1] ss:$9 sm:$0xff] %v2561
    %v2564 = vld [vmem:[#allocation1] sm:$0xff]
    %v2565 = vld [vmem:[#allocation1 + $0x9] sm:$0xff]
    %v2567 = vsel %vm162, %v2565, 0
    %2569 = vmatpush.bf16.msra.mxu0 %v138
    %2570 = vmatpush.bf16.msra.mxu0 %v137
    %2571 = vmatpush.bf16.msra.mxu0 %v136
    %2572 = vmatpush.bf16.msra.mxu0 %v135
    %2573 = vmatpush.bf16.msra.mxu0 %v134
    %2574 = vmatpush.bf16.msra.mxu0 %v133
    %2575 = vmatpush.bf16.msra.mxu0 %v132
    %2576 = vmatpush.bf16.msra.mxu0 %v131
    %2577 = vmatmul.bf16.gmra.mxu0 %v2564
    %v2578 = vpop.f32.mrf.mxu0
    %v2579 = vadd.f32 0.0, %v2578
    %v2580 = vpop.f32.mrf.mxu0
    %2581 = vdwg.mxu0
    %2582 = vmatpush.bf16.msra.mxu0 %v167
    %2583 = vmatpush.bf16.msra.mxu0 %v145
    %2584 = vmatpush.bf16.msra.mxu0 %v144
    %2585 = vmatpush.bf16.msra.mxu0 %v143
    %2586 = vmatpush.bf16.msra.mxu0 %v142
    %2587 = vmatpush.bf16.msra.mxu0 %v141
    %2588 = vmatpush.bf16.msra.mxu0 %v140
    %2589 = vmatpush.bf16.msra.mxu0 %v139
    %2590 = vmatmul.bf16.gmra.mxu0 %v2567
    %v2591 = vpop.f32.mrf.mxu0
    %v2592 = vadd.f32 %v2579, %v2591
    %v2593 = vpop.f32.mrf.mxu0
    %2594 = vdwg.mxu0
    %v2595 = vmax.f32 %v2559, %v2592
    %s2596 = scalar_lea.vmem %s0, 122
    %v2597 = vld [vmem:[%s2596] sm:$0x3]
    %2599 = vst [vmem:[#allocation1] ss:$9 sm:$0xff] %v2597
    %v2600 = vld [vmem:[#allocation1] sm:$0xff]
    %v2601 = vld [vmem:[#allocation1 + $0x9] sm:$0xff]
    %v2603 = vsel %vm162, %v2601, 0
    %2605 = vmatpush.bf16.msra.mxu0 %v138
    %2606 = vmatpush.bf16.msra.mxu0 %v137
    %2607 = vmatpush.bf16.msra.mxu0 %v136
    %2608 = vmatpush.bf16.msra.mxu0 %v135
    %2609 = vmatpush.bf16.msra.mxu0 %v134
    %2610 = vmatpush.bf16.msra.mxu0 %v133
    %2611 = vmatpush.bf16.msra.mxu0 %v132
    %2612 = vmatpush.bf16.msra.mxu0 %v131
    %2613 = vmatmul.bf16.gmra.mxu0 %v2600
    %v2614 = vpop.f32.mrf.mxu0
    %v2615 = vadd.f32 0.0, %v2614
    %v2616 = vpop.f32.mrf.mxu0
    %2617 = vdwg.mxu0
    %2618 = vmatpush.bf16.msra.mxu0 %v167
    %2619 = vmatpush.bf16.msra.mxu0 %v145
    %2620 = vmatpush.bf16.msra.mxu0 %v144
    %2621 = vmatpush.bf16.msra.mxu0 %v143
    %2622 = vmatpush.bf16.msra.mxu0 %v142
    %2623 = vmatpush.bf16.msra.mxu0 %v141
    %2624 = vmatpush.bf16.msra.mxu0 %v140
    %2625 = vmatpush.bf16.msra.mxu0 %v139
    %2626 = vmatmul.bf16.gmra.mxu0 %v2603
    %v2627 = vpop.f32.mrf.mxu0
    %v2628 = vadd.f32 %v2615, %v2627
    %v2629 = vpop.f32.mrf.mxu0
    %2630 = vdwg.mxu0
    %v2631 = vmax.f32 %v2595, %v2628
    %v2632 = vadd.f32 %v2631, %v304
    %v2633 = vmax.f32 %v2632, 0.0
    %v2634 = vpack.c.bf16 %v2633, %v2633
    %s2635 = scalar_lea.vmem %s3, 156
    %v2636 = vld [vmem:[%s2635] sm:$0xf]
    %v2637 = vld [vmem:[%s2635 + $0x4] sm:$0xf]
    %v2638 = vld [vmem:[%s2635 + $0x8] sm:$0x3]
    %v2642 = vunpack.c.l.b16 %v2636
    %v2643 = vunpack.c.l.b16 %v2637
    %v2644 = vunpack.c.l.b16 %v2638
    %v2645 = vpack.c.b16 %v2643, %v2642
    %v2646 = vpack.c.b16 %v2644, %v2644
    %v2649 = vsel %vm471, %v2634, 0
    %v2652 = vsel %vm475, %v2646, 0
    %2654 = vmatpush.bf16.msra.mxu0 0
    %2655 = vmatpush.bf16.msra.mxu0 0
    %2656 = vmatpush.bf16.msra.mxu0 0
    %2657 = vmatpush.bf16.msra.mxu0 0
    %2658 = vmatpush.bf16.msra.mxu0 0
    %2659 = vmatpush.bf16.msra.mxu0 0
    %2660 = vmatpush.bf16.msra.mxu0 %v2652
    %2661 = vmatpush.bf16.msra.mxu0 %v2645
    %2662 = vmatmul.bf16.gmra.mxu0 %v2649
    %v2663 = vpop.f32.mrf.mxu0
    %v2664 = vadd.f32 0.0, %v2663
    %v2665 = vpop.f32.mrf.mxu0
    %2666 = vdwg.mxu0
    %v2667 = vadd.f32 %v2488, %v2664
    %s2668 = scalar_lea.vmem %s0, 28
    %v2669 = vld [vmem:[%s2668] sm:$0x3]
    %2671 = vst [vmem:[#allocation1] ss:$9 sm:$0xff] %v2669
    %v2672 = vld [vmem:[#allocation1] sm:$0xff]
    %v2673 = vld [vmem:[#allocation1 + $0x9] sm:$0xff]
    %v2675 = vsel %vm162, %v2673, 0
    %2677 = vmatpush.bf16.msra.mxu0 %v138
    %2678 = vmatpush.bf16.msra.mxu0 %v137
    %2679 = vmatpush.bf16.msra.mxu0 %v136
    %2680 = vmatpush.bf16.msra.mxu0 %v135
    %2681 = vmatpush.bf16.msra.mxu0 %v134
    %2682 = vmatpush.bf16.msra.mxu0 %v133
    %2683 = vmatpush.bf16.msra.mxu0 %v132
    %2684 = vmatpush.bf16.msra.mxu0 %v131
    %2685 = vmatmul.bf16.gmra.mxu0 %v2672
    %v2686 = vpop.f32.mrf.mxu0
    %v2687 = vadd.f32 0.0, %v2686
    %v2688 = vpop.f32.mrf.mxu0
    %2689 = vdwg.mxu0
    %2690 = vmatpush.bf16.msra.mxu0 %v167
    %2691 = vmatpush.bf16.msra.mxu0 %v145
    %2692 = vmatpush.bf16.msra.mxu0 %v144
    %2693 = vmatpush.bf16.msra.mxu0 %v143
    %2694 = vmatpush.bf16.msra.mxu0 %v142
    %2695 = vmatpush.bf16.msra.mxu0 %v141
    %2696 = vmatpush.bf16.msra.mxu0 %v140
    %2697 = vmatpush.bf16.msra.mxu0 %v139
    %2698 = vmatmul.bf16.gmra.mxu0 %v2675
    %v2699 = vpop.f32.mrf.mxu0
    %v2700 = vadd.f32 %v2687, %v2699
    %v2701 = vpop.f32.mrf.mxu0
    %2702 = vdwg.mxu0
    %s2703 = scalar_lea.vmem %s0, 60
    %v2704 = vld [vmem:[%s2703] sm:$0x3]
    %2706 = vst [vmem:[#allocation1] ss:$9 sm:$0xff] %v2704
    %v2707 = vld [vmem:[#allocation1] sm:$0xff]
    %v2708 = vld [vmem:[#allocation1 + $0x9] sm:$0xff]
    %v2710 = vsel %vm162, %v2708, 0
    %2712 = vmatpush.bf16.msra.mxu0 %v138
    %2713 = vmatpush.bf16.msra.mxu0 %v137
    %2714 = vmatpush.bf16.msra.mxu0 %v136
    %2715 = vmatpush.bf16.msra.mxu0 %v135
    %2716 = vmatpush.bf16.msra.mxu0 %v134
    %2717 = vmatpush.bf16.msra.mxu0 %v133
    %2718 = vmatpush.bf16.msra.mxu0 %v132
    %2719 = vmatpush.bf16.msra.mxu0 %v131
    %2720 = vmatmul.bf16.gmra.mxu0 %v2707
    %v2721 = vpop.f32.mrf.mxu0
    %v2722 = vadd.f32 0.0, %v2721
    %v2723 = vpop.f32.mrf.mxu0
    %2724 = vdwg.mxu0
    %2725 = vmatpush.bf16.msra.mxu0 %v167
    %2726 = vmatpush.bf16.msra.mxu0 %v145
    %2727 = vmatpush.bf16.msra.mxu0 %v144
    %2728 = vmatpush.bf16.msra.mxu0 %v143
    %2729 = vmatpush.bf16.msra.mxu0 %v142
    %2730 = vmatpush.bf16.msra.mxu0 %v141
    %2731 = vmatpush.bf16.msra.mxu0 %v140
    %2732 = vmatpush.bf16.msra.mxu0 %v139
    %2733 = vmatmul.bf16.gmra.mxu0 %v2710
    %v2734 = vpop.f32.mrf.mxu0
    %v2735 = vadd.f32 %v2722, %v2734
    %v2736 = vpop.f32.mrf.mxu0
    %2737 = vdwg.mxu0
    %v2738 = vmax.f32 %v2700, %v2735
    %s2739 = scalar_lea.vmem %s0, 92
    %v2740 = vld [vmem:[%s2739] sm:$0x3]
    %2742 = vst [vmem:[#allocation1] ss:$9 sm:$0xff] %v2740
    %v2743 = vld [vmem:[#allocation1] sm:$0xff]
    %v2744 = vld [vmem:[#allocation1 + $0x9] sm:$0xff]
    %v2746 = vsel %vm162, %v2744, 0
    %2748 = vmatpush.bf16.msra.mxu0 %v138
    %2749 = vmatpush.bf16.msra.mxu0 %v137
    %2750 = vmatpush.bf16.msra.mxu0 %v136
    %2751 = vmatpush.bf16.msra.mxu0 %v135
    %2752 = vmatpush.bf16.msra.mxu0 %v134
    %2753 = vmatpush.bf16.msra.mxu0 %v133
    %2754 = vmatpush.bf16.msra.mxu0 %v132
    %2755 = vmatpush.bf16.msra.mxu0 %v131
    %2756 = vmatmul.bf16.gmra.mxu0 %v2743
    %v2757 = vpop.f32.mrf.mxu0
    %v2758 = vadd.f32 0.0, %v2757
    %v2759 = vpop.f32.mrf.mxu0
    %2760 = vdwg.mxu0
    %2761 = vmatpush.bf16.msra.mxu0 %v167
    %2762 = vmatpush.bf16.msra.mxu0 %v145
    %2763 = vmatpush.bf16.msra.mxu0 %v144
    %2764 = vmatpush.bf16.msra.mxu0 %v143
    %2765 = vmatpush.bf16.msra.mxu0 %v142
    %2766 = vmatpush.bf16.msra.mxu0 %v141
    %2767 = vmatpush.bf16.msra.mxu0 %v140
    %2768 = vmatpush.bf16.msra.mxu0 %v139
    %2769 = vmatmul.bf16.gmra.mxu0 %v2746
    %v2770 = vpop.f32.mrf.mxu0
    %v2771 = vadd.f32 %v2758, %v2770
    %v2772 = vpop.f32.mrf.mxu0
    %2773 = vdwg.mxu0
    %v2774 = vmax.f32 %v2738, %v2771
    %s2775 = scalar_lea.vmem %s0, 124
    %v2776 = vld [vmem:[%s2775] sm:$0x3]
    %2778 = vst [vmem:[#allocation1] ss:$9 sm:$0xff] %v2776
    %v2779 = vld [vmem:[#allocation1] sm:$0xff]
    %v2780 = vld [vmem:[#allocation1 + $0x9] sm:$0xff]
    %v2782 = vsel %vm162, %v2780, 0
    %2784 = vmatpush.bf16.msra.mxu0 %v138
    %2785 = vmatpush.bf16.msra.mxu0 %v137
    %2786 = vmatpush.bf16.msra.mxu0 %v136
    %2787 = vmatpush.bf16.msra.mxu0 %v135
    %2788 = vmatpush.bf16.msra.mxu0 %v134
    %2789 = vmatpush.bf16.msra.mxu0 %v133
    %2790 = vmatpush.bf16.msra.mxu0 %v132
    %2791 = vmatpush.bf16.msra.mxu0 %v131
    %2792 = vmatmul.bf16.gmra.mxu0 %v2779
    %v2793 = vpop.f32.mrf.mxu0
    %v2794 = vadd.f32 0.0, %v2793
    %v2795 = vpop.f32.mrf.mxu0
    %2796 = vdwg.mxu0
    %2797 = vmatpush.bf16.msra.mxu0 %v167
    %2798 = vmatpush.bf16.msra.mxu0 %v145
    %2799 = vmatpush.bf16.msra.mxu0 %v144
    %2800 = vmatpush.bf16.msra.mxu0 %v143
    %2801 = vmatpush.bf16.msra.mxu0 %v142
    %2802 = vmatpush.bf16.msra.mxu0 %v141
    %2803 = vmatpush.bf16.msra.mxu0 %v140
    %2804 = vmatpush.bf16.msra.mxu0 %v139
    %2805 = vmatmul.bf16.gmra.mxu0 %v2782
    %v2806 = vpop.f32.mrf.mxu0
    %v2807 = vadd.f32 %v2794, %v2806
    %v2808 = vpop.f32.mrf.mxu0
    %2809 = vdwg.mxu0
    %v2810 = vmax.f32 %v2774, %v2807
    %v2811 = vadd.f32 %v2810, %v304
    %v2812 = vmax.f32 %v2811, 0.0
    %v2813 = vpack.c.bf16 %v2812, %v2812
    %s2814 = scalar_lea.vmem %s3, 168
    %v2815 = vld [vmem:[%s2814] sm:$0xf]
    %v2816 = vld [vmem:[%s2814 + $0x4] sm:$0xf]
    %v2817 = vld [vmem:[%s2814 + $0x8] sm:$0x3]
    %v2821 = vunpack.c.l.b16 %v2815
    %v2822 = vunpack.c.l.b16 %v2816
    %v2823 = vunpack.c.l.b16 %v2817
    %v2824 = vpack.c.b16 %v2822, %v2821
    %v2825 = vpack.c.b16 %v2823, %v2823
    %v2828 = vsel %vm471, %v2813, 0
    %v2831 = vsel %vm475, %v2825, 0
    %2833 = vmatpush.bf16.msra.mxu0 0
    %2834 = vmatpush.bf16.msra.mxu0 0
    %2835 = vmatpush.bf16.msra.mxu0 0
    %2836 = vmatpush.bf16.msra.mxu0 0
    %2837 = vmatpush.bf16.msra.mxu0 0
    %2838 = vmatpush.bf16.msra.mxu0 0
    %2839 = vmatpush.bf16.msra.mxu0 %v2831
    %2840 = vmatpush.bf16.msra.mxu0 %v2824
    %2841 = vmatmul.bf16.gmra.mxu0 %v2828
    %v2842 = vpop.f32.mrf.mxu0
    %v2843 = vadd.f32 0.0, %v2842
    %v2844 = vpop.f32.mrf.mxu0
    %2845 = vdwg.mxu0
    %v2846 = vadd.f32 %v2667, %v2843
    %s2847 = scalar_lea.vmem %s0, 30
    %v2848 = vld [vmem:[%s2847] sm:$0x3]
    %2850 = vst [vmem:[#allocation1] ss:$9 sm:$0xff] %v2848
    %v2851 = vld [vmem:[#allocation1] sm:$0xff]
    %v2852 = vld [vmem:[#allocation1 + $0x9] sm:$0xff]
    %v2854 = vsel %vm162, %v2852, 0
    %2856 = vmatpush.bf16.msra.mxu0 %v138
    %2857 = vmatpush.bf16.msra.mxu0 %v137
    %2858 = vmatpush.bf16.msra.mxu0 %v136
    %2859 = vmatpush.bf16.msra.mxu0 %v135
    %2860 = vmatpush.bf16.msra.mxu0 %v134
    %2861 = vmatpush.bf16.msra.mxu0 %v133
    %2862 = vmatpush.bf16.msra.mxu0 %v132
    %2863 = vmatpush.bf16.msra.mxu0 %v131
    %2864 = vmatmul.bf16.gmra.mxu0 %v2851
    %v2865 = vpop.f32.mrf.mxu0
    %v2866 = vadd.f32 0.0, %v2865
    %v2867 = vpop.f32.mrf.mxu0
    %2868 = vdwg.mxu0
    %2869 = vmatpush.bf16.msra.mxu0 %v167
    %2870 = vmatpush.bf16.msra.mxu0 %v145
    %2871 = vmatpush.bf16.msra.mxu0 %v144
    %2872 = vmatpush.bf16.msra.mxu0 %v143
    %2873 = vmatpush.bf16.msra.mxu0 %v142
    %2874 = vmatpush.bf16.msra.mxu0 %v141
    %2875 = vmatpush.bf16.msra.mxu0 %v140
    %2876 = vmatpush.bf16.msra.mxu0 %v139
    %2877 = vmatmul.bf16.gmra.mxu0 %v2854
    %v2878 = vpop.f32.mrf.mxu0
    %v2879 = vadd.f32 %v2866, %v2878
    %v2880 = vpop.f32.mrf.mxu0
    %2881 = vdwg.mxu0
    %s2882 = scalar_lea.vmem %s0, 62
    %v2883 = vld [vmem:[%s2882] sm:$0x3]
    %2885 = vst [vmem:[#allocation1] ss:$9 sm:$0xff] %v2883
    %v2886 = vld [vmem:[#allocation1] sm:$0xff]
    %v2887 = vld [vmem:[#allocation1 + $0x9] sm:$0xff]
    %v2889 = vsel %vm162, %v2887, 0
    %2891 = vmatpush.bf16.msra.mxu0 %v138
    %2892 = vmatpush.bf16.msra.mxu0 %v137
    %2893 = vmatpush.bf16.msra.mxu0 %v136
    %2894 = vmatpush.bf16.msra.mxu0 %v135
    %2895 = vmatpush.bf16.msra.mxu0 %v134
    %2896 = vmatpush.bf16.msra.mxu0 %v133
    %2897 = vmatpush.bf16.msra.mxu0 %v132
    %2898 = vmatpush.bf16.msra.mxu0 %v131
    %2899 = vmatmul.bf16.gmra.mxu0 %v2886
    %v2900 = vpop.f32.mrf.mxu0
    %v2901 = vadd.f32 0.0, %v2900
    %v2902 = vpop.f32.mrf.mxu0
    %2903 = vdwg.mxu0
    %2904 = vmatpush.bf16.msra.mxu0 %v167
    %2905 = vmatpush.bf16.msra.mxu0 %v145
    %2906 = vmatpush.bf16.msra.mxu0 %v144
    %2907 = vmatpush.bf16.msra.mxu0 %v143
    %2908 = vmatpush.bf16.msra.mxu0 %v142
    %2909 = vmatpush.bf16.msra.mxu0 %v141
    %2910 = vmatpush.bf16.msra.mxu0 %v140
    %2911 = vmatpush.bf16.msra.mxu0 %v139
    %2912 = vmatmul.bf16.gmra.mxu0 %v2889
    %v2913 = vpop.f32.mrf.mxu0
    %v2914 = vadd.f32 %v2901, %v2913
    %v2915 = vpop.f32.mrf.mxu0
    %2916 = vdwg.mxu0
    %v2917 = vmax.f32 %v2879, %v2914
    %s2918 = scalar_lea.vmem %s0, 94
    %v2919 = vld [vmem:[%s2918] sm:$0x3]
    %2921 = vst [vmem:[#allocation1] ss:$9 sm:$0xff] %v2919
    %v2922 = vld [vmem:[#allocation1] sm:$0xff]
    %v2923 = vld [vmem:[#allocation1 + $0x9] sm:$0xff]
    %v2925 = vsel %vm162, %v2923, 0
    %2927 = vmatpush.bf16.msra.mxu0 %v138
    %2928 = vmatpush.bf16.msra.mxu0 %v137
    %2929 = vmatpush.bf16.msra.mxu0 %v136
    %2930 = vmatpush.bf16.msra.mxu0 %v135
    %2931 = vmatpush.bf16.msra.mxu0 %v134
    %2932 = vmatpush.bf16.msra.mxu0 %v133
    %2933 = vmatpush.bf16.msra.mxu0 %v132
    %2934 = vmatpush.bf16.msra.mxu0 %v131
    %2935 = vmatmul.bf16.gmra.mxu0 %v2922
    %v2936 = vpop.f32.mrf.mxu0
    %v2937 = vadd.f32 0.0, %v2936
    %v2938 = vpop.f32.mrf.mxu0
    %2939 = vdwg.mxu0
    %2940 = vmatpush.bf16.msra.mxu0 %v167
    %2941 = vmatpush.bf16.msra.mxu0 %v145
    %2942 = vmatpush.bf16.msra.mxu0 %v144
    %2943 = vmatpush.bf16.msra.mxu0 %v143
    %2944 = vmatpush.bf16.msra.mxu0 %v142
    %2945 = vmatpush.bf16.msra.mxu0 %v141
    %2946 = vmatpush.bf16.msra.mxu0 %v140
    %2947 = vmatpush.bf16.msra.mxu0 %v139
    %2948 = vmatmul.bf16.gmra.mxu0 %v2925
    %v2949 = vpop.f32.mrf.mxu0
    %v2950 = vadd.f32 %v2937, %v2949
    %v2951 = vpop.f32.mrf.mxu0
    %2952 = vdwg.mxu0
    %v2953 = vmax.f32 %v2917, %v2950
    %s2954 = scalar_lea.vmem %s0, 126
    %v2955 = vld [vmem:[%s2954] sm:$0x3]
    %2957 = vst [vmem:[#allocation1] ss:$9 sm:$0xff] %v2955
    %v2958 = vld [vmem:[#allocation1] sm:$0xff]
    %v2959 = vld [vmem:[#allocation1 + $0x9] sm:$0xff]
    %v2961 = vsel %vm162, %v2959, 0
    %2963 = vmatpush.bf16.msra.mxu0 %v138
    %2964 = vmatpush.bf16.msra.mxu0 %v137
    %2965 = vmatpush.bf16.msra.mxu0 %v136
    %2966 = vmatpush.bf16.msra.mxu0 %v135
    %2967 = vmatpush.bf16.msra.mxu0 %v134
    %2968 = vmatpush.bf16.msra.mxu0 %v133
    %2969 = vmatpush.bf16.msra.mxu0 %v132
    %2970 = vmatpush.bf16.msra.mxu0 %v131
    %2971 = vmatmul.bf16.gmra.mxu0 %v2958
    %v2972 = vpop.f32.mrf.mxu0
    %v2973 = vadd.f32 0.0, %v2972
    %v2974 = vpop.f32.mrf.mxu0
    %2975 = vdwg.mxu0
    %2976 = vmatpush.bf16.msra.mxu0 %v167
    %2977 = vmatpush.bf16.msra.mxu0 %v145
    %2978 = vmatpush.bf16.msra.mxu0 %v144
    %2979 = vmatpush.bf16.msra.mxu0 %v143
    %2980 = vmatpush.bf16.msra.mxu0 %v142
    %2981 = vmatpush.bf16.msra.mxu0 %v141
    %2982 = vmatpush.bf16.msra.mxu0 %v140
    %2983 = vmatpush.bf16.msra.mxu0 %v139
    %2984 = vmatmul.bf16.gmra.mxu0 %v2961
    %v2985 = vpop.f32.mrf.mxu0
    %v2986 = vadd.f32 %v2973, %v2985
    %v2987 = vpop.f32.mrf.mxu0
    %2988 = vdwg.mxu0
    %v2989 = vmax.f32 %v2953, %v2986
    %v2990 = vadd.f32 %v2989, %v304
    %v2991 = vmax.f32 %v2990, 0.0
    %v2992 = vpack.c.bf16 %v2991, %v2991
    %s2993 = scalar_lea.vmem %s3, 180
    %v2994 = vld [vmem:[%s2993] sm:$0xf]
    %v2995 = vld [vmem:[%s2993 + $0x4] sm:$0xf]
    %v2996 = vld [vmem:[%s2993 + $0x8] sm:$0x3]
    %v3000 = vunpack.c.l.b16 %v2994
    %v3001 = vunpack.c.l.b16 %v2995
    %v3002 = vunpack.c.l.b16 %v2996
    %v3003 = vpack.c.b16 %v3001, %v3000
    %v3004 = vpack.c.b16 %v3002, %v3002
    %v3007 = vsel %vm471, %v2992, 0
    %v3010 = vsel %vm475, %v3004, 0
    %3012 = vmatpush.bf16.msra.mxu0 0
    %3013 = vmatpush.bf16.msra.mxu0 0
    %3014 = vmatpush.bf16.msra.mxu0 0
    %3015 = vmatpush.bf16.msra.mxu0 0
    %3016 = vmatpush.bf16.msra.mxu0 0
    %3017 = vmatpush.bf16.msra.mxu0 0
    %3018 = vmatpush.bf16.msra.mxu0 %v3010
    %3019 = vmatpush.bf16.msra.mxu0 %v3003
    %3020 = vmatmul.bf16.gmra.mxu0 %v3007
    %v3021 = vpop.f32.mrf.mxu0
    %v3022 = vadd.f32 0.0, %v3021
    %v3023 = vpop.f32.mrf.mxu0
    %3024 = vdwg.mxu0
    %v3025 = vadd.f32 %v2846, %v3022
    %v3026 = vld [vmem:[%s4] sm:$0x1]
    %v3028 = vperm.slane %v3026, 0
    %v3030 = vadd.f32 %v3025, %v3028
    %v3031 = vmax.f32 %v3030, 0.0
    %v3032 = vpack.c.bf16 %v3031, %v3031
    %v3033 = vld [vmem:[%s5] sm:$0xf]
    %v3034 = vld [vmem:[%s5 + $0x4] sm:$0xf]
    %v3035 = vld [vmem:[%s5 + $0x8] sm:$0xf]
    %v3036 = vld [vmem:[%s5 + $0xc] sm:$0xf]
    %v3037 = vld [vmem:[%s5 + $0x10] sm:$0xf]
    %v3038 = vld [vmem:[%s5 + $0x14] sm:$0xf]
    %v3039 = vld [vmem:[%s5 + $0x18] sm:$0x1]
    %v3040 = vld [vmem:[%s6] sm:$0x1]
    %v3042 = vperm.slane %v3040, 0
    %v3051 = vunpack.c.l.b16 %v3033
    %v3052 = vunpack.c.l.b16 %v3034
    %v3053 = vunpack.c.l.b16 %v3035
    %v3054 = vunpack.c.l.b16 %v3036
    %v3055 = vunpack.c.l.b16 %v3037
    %v3056 = vunpack.c.l.b16 %v3038
    %v3057 = vunpack.c.l.b16 %v3039
    %v3058 = vpack.c.b16 %v3052, %v3051
    %v3059 = vpack.c.b16 %v3054, %v3053
    %v3060 = vpack.c.b16 %v3056, %v3055
    %v3061 = vpack.c.b16 %v3057, %v3057
    %vm3065 = vcmask 408576
    %v3067 = vsel %vm3065, %v3032, 0
    %vm3069 = vcmask 1040384
    %v3071 = vsel %vm3069, %v3061, 0
    %3073 = vmatpush.bf16.msra.mxu0 0
    %3074 = vmatpush.bf16.msra.mxu0 0
    %3075 = vmatpush.bf16.msra.mxu0 0
    %3076 = vmatpush.bf16.msra.mxu0 0
    %3077 = vmatpush.bf16.msra.mxu0 %v3071
    %3078 = vmatpush.bf16.msra.mxu0 %v3060
    %3079 = vmatpush.bf16.msra.mxu0 %v3059
    %3080 = vmatpush.bf16.msra.mxu0 %v3058
    %3081 = vmatmul.bf16.gmra.mxu0 %v3067
    %v3082 = vpop.f32.mrf.mxu0
    %v3083 = vadd.f32 %v3042, %v3082
    %v3084 = vpop.f32.mrf.mxu0
    %3085 = vdwg.mxu0
    %vm3086 = vcmask 74752
    %v3087 = vsel %vm3086, %v3083, -inf
    %3088 = vmax.xlane.f32.xlu0 %v3087
    %v3089 = vpop.xlane.xlu0 %3088
    %v3090 = vsub.f32 %v3083, %v3089
    %v3091 = vmul.f32 %v3090, 1.442695
    %v3092 = vpow.pop %v3091
    %v3093 = vsel %vm3086, %v3092, 0.0
    %3094 = vadd.xlane.f32.xlu0 %v3093
    %v3095 = vpop.xlane.xlu0 %3094
    %v3096 = vlog2.pop %v3095
    %v3097 = vmul.f32 %v3096, 0.6931472
    %v3098 = vsub.f32 %v3090, %v3097
    %3099 = vst.msk [vmem:[#allocation2] sm:$0x3] %vm3086, %v3098
    // Predicated region
    $region30: #{net_forward.3} parent=1 // pred_check
      _
    $region31: #{net_forward.3} parent=1 // pred_check_branch
      %3101 = sbr.rel (0) target = $region33
    $region32: #{net_forward.3} parent=1 // pred_region
      %3103 = vsyncadd [#allocation3], 0
      %s3105 = sshll.u32 [#allocation2], 4
      %s3106 = int_to_ptr.vmem [resolvable:$true] %s3105
      %s3107 = sshll.u32 %s7, 4
      %s3108 = int_to_ptr.hbm [resolvable:$true] %s3107
      %3110 = dma.vmem_to_hbm [thread:$0]  %s3106, 32, %s3108, [#allocation3]
    $region33: #{net_forward.3} parent=1 // pred_fallthru
      _
    // Predicated region
    $region34: #{net_forward.3} parent=1 // pred_check
      _
    $region35: #{net_forward.3} parent=1 // pred_check_branch
      %3112 = sbr.rel (0) target = $region37
    $region36: #{net_forward.3} parent=1 // pred_region
      %3114 = dma.done [#allocation3], 32
    $region37: #{net_forward.3} parent=1 // pred_fallthru
      _
    %3115 = vsyncpa [#allocation3], 1

</llo_original>
